<compile_context>
chip_gen: v7x
topology: tpu7x:2x2x1
jax: 0.10.0
libtpu: 0.0.40
codegen_flags: <defaults>
</compile_context>

<pallas_src>
import jax
import jax.numpy as jnp
from jax.experimental import pallas as pl
from jax.experimental.pallas import tpu as pltpu


def _round_up(x, m):
    return (x + m - 1) // m * m


def _pick_tb(b_pad, cap=256):
    """Batch tile: multiple of 8 dividing b_pad; prefer >=2 blocks (v7x 2 TCs)."""
    divs = [d for d in range(8, b_pad + 1, 8) if b_pad % d == 0]
    if not divs:
        return b_pad
    two_blocks = [d for d in divs if d <= cap and b_pad // d >= 2]
    if two_blocks:
        return max(two_blocks)
    fits = [d for d in divs if d <= cap]
    return max(fits) if fits else b_pad


def _vmem_bytes(TT, TB, E_pad, H_pad):
    emb = 2 * TT * TB * E_pad * 2          # bf16 emb block, double-buffered
    ctx = 2 * TT * TB * H_pad * 2          # bf16 ctx block, double-buffered
    w = (E_pad + H_pad) * 4 * H_pad * 2    # bf16 weights (single-buffered)
    xw = TT * TB * 4 * H_pad * 4           # f32 input-projection scratch
    state = 2 * 2 * TB * H_pad * 4         # h/c f32 output blocks
    misc = 2 * 4 * H_pad * 4 + 2 * TB * 4
    return emb + ctx + w + xw + state + misc


# ----------------------------- Pallas kernel --------------------------------

def _encoder_lstm_kernel(emb_ref, len_ref, wih_ref, whh_ref, b_ref,
                         ctx_ref, h_ref, c_ref, xw_ref):
    """One grid step = TT timesteps for one batch block.

    emb_ref : (TT, TB, E_pad) bf16   time-major embedding slab
    len_ref : (TB, 1)        int32   sequence lengths (grid-invariant)
    wih_ref : (E_pad, 4*H_pad) bf16  gate-padded W_ih^T
    whh_ref : (H_pad, 4*H_pad) bf16  gate-padded W_hh^T
    b_ref   : (1, 4*H_pad)   f32     fused bias (b_ih + b_hh), gate-padded
    ctx_ref : (TT, TB, H_pad) bf16   per-step hidden outputs
    h_ref/c_ref : (TB, H_pad) f32    resident state accumulators (across time axis)
    xw_ref  : (TT, TB, 4*H_pad) f32  scratch: hoisted input projection + bias
    """
    tblk = pl.program_id(1)
    TT, TB, E_pad = emb_ref.shape
    Hp = h_ref.shape[-1]

    @pl.when(tblk == 0)
    def _():
        h_ref[...] = jnp.zeros_like(h_ref)
        c_ref[...] = jnp.zeros_like(c_ref)

    # ---- hoisted input projection: one big GEMM per block, bias folded in ----
    x_flat = emb_ref[...].reshape(TT * TB, E_pad)                       # bf16
    xw = jnp.dot(x_flat, wih_ref[...], preferred_element_type=jnp.float32)
    xw_ref[...] = (xw + b_ref[...]).reshape(TT, TB, 4 * Hp)

    whh = whh_ref[...]                                                  # (Hp, 4Hp) bf16
    lens = len_ref[...]                                                 # (TB, 1) int32
    t0 = tblk * TT

    def step(tt, carry):
        h, c = carry
        gates = xw_ref[tt] + jnp.dot(h.astype(jnp.bfloat16), whh,
                                     preferred_element_type=jnp.float32)
        # PyTorch LSTM gate order: input, forget, cell(g), output — each slice
        # is 128-lane aligned because gates were padded per-gate to Hp.
        i_g = jax.nn.sigmoid(gates[:, 0 * Hp:1 * Hp])
        f_g = jax.nn.sigmoid(gates[:, 1 * Hp:2 * Hp])
        g_g = jnp.tanh(gates[:, 2 * Hp:3 * Hp])
        o_g = jax.nn.sigmoid(gates[:, 3 * Hp:4 * Hp])

        c_new = f_g * c + i_g * g_g
        h_new = o_g * jnp.tanh(c_new)

        # one mask broadcast per step, reused by all three selects
        valid = jnp.broadcast_to((t0 + tt) < lens, h_new.shape)
        h = jnp.where(valid, h_new, h)
        c = jnp.where(valid, c_new, c)
        ctx_ref[tt] = jnp.where(valid, h_new, 0.0).astype(ctx_ref.dtype)
        return h, c

    h_fin, c_fin = jax.lax.fori_loop(0, TT, step, (h_ref[...], c_ref[...]),
                                     unroll=8)
    h_ref[...] = h_fin
    c_ref[...] = c_fin


def _run_lstm_pallas(emb_t, lens, w_ih_t, w_hh_t, bias, *, TT, TB, vmem_limit_bytes):
    T_pad, B_pad, E_pad = emb_t.shape
    H_pad = w_hh_t.shape[0]
    grid = (B_pad // TB, T_pad // TT)

    out_shape = (
        jax.ShapeDtypeStruct((T_pad, B_pad, H_pad), jnp.bfloat16),   # ctx (bf16 writeback)
        jax.ShapeDtypeStruct((B_pad, H_pad), jnp.float32),           # h_final
        jax.ShapeDtypeStruct((B_pad, H_pad), jnp.float32),           # c_final
    )

    def build(single_buffer_invariants):
        inv = (dict(pipeline_mode=pl.Buffered(1))
               if single_buffer_invariants else {})
        grid_spec = pltpu.PrefetchScalarGridSpec(
            num_scalar_prefetch=0,
            grid=grid,
            in_specs=[
                pl.BlockSpec((TT, TB, E_pad), lambda b, t: (t, b, 0)),
                pl.BlockSpec((TB, 1), lambda b, t: (b, 0)),
                pl.BlockSpec((E_pad, 4 * H_pad), lambda b, t: (0, 0), **inv),
                pl.BlockSpec((H_pad, 4 * H_pad), lambda b, t: (0, 0), **inv),
                pl.BlockSpec((1, 4 * H_pad), lambda b, t: (0, 0), **inv),
            ],
            out_specs=[
                pl.BlockSpec((TT, TB, H_pad), lambda b, t: (t, b, 0)),
                pl.BlockSpec((TB, H_pad), lambda b, t: (b, 0)),
                pl.BlockSpec((TB, H_pad), lambda b, t: (b, 0)),
            ],
            scratch_shapes=[pltpu.VMEM((TT, TB, 4 * H_pad), jnp.float32)],
        )
        return pl.pallas_call(
            _encoder_lstm_kernel,
            grid_spec=grid_spec,
            out_shape=out_shape,
            compiler_params=pltpu.CompilerParams(
                dimension_semantics=("parallel", "arbitrary"),
                vmem_limit_bytes=vmem_limit_bytes,
            ),
        )

    try:
        return build(True)(emb_t, lens, w_ih_t, w_hh_t, bias)
    except Exception:
        # TODO(synk): pl.Buffered(1) single-buffering not accepted on this jax
        # build; fall back to default double-buffering of the invariant weights.
        return build(False)(emb_t, lens, w_ih_t, w_hh_t, bias)


# ------------------------------- glue / wrapper ------------------------------

def init_params(key, vocab_size, embedding_size, hidden_size, padding_idx):
    ks = jax.random.split(key, 8)
    H = hidden_size
    E = embedding_size
    bound = 1.0 / jnp.sqrt(H)
    emb = jax.random.normal(ks[0], (vocab_size, E), jnp.float32) * 0.1
    emb = emb.at[padding_idx].set(0.0)           # nn.Embedding padding_idx row = 0
    params = dict(
        embedding=emb,
        w_ih=jax.random.uniform(ks[1], (4 * H, E), jnp.float32, -bound, bound),
        w_hh=jax.random.uniform(ks[2], (4 * H, H), jnp.float32, -bound, bound),
        b_ih=jax.random.uniform(ks[3], (4 * H,), jnp.float32, -bound, bound),
        b_hh=jax.random.uniform(ks[4], (4 * H,), jnp.float32, -bound, bound),
        w_e2d=jax.random.uniform(ks[5], (H, H), jnp.float32, -bound, bound),
        b_e2d=jax.random.uniform(ks[6], (H,), jnp.float32, -bound, bound),
    )
    return params


def _pack_weights(w_ih, w_hh, b_ih, b_hh, H, H_pad, E, E_pad):
    """Gate-padded W_ih^T (E_pad,4H_pad), W_hh^T (H_pad,4H_pad) bf16 and bias f32."""
    def pad_gates_t(w, X, X_pad):
        w4 = w.reshape(4, H, X)
        w4 = jnp.pad(w4, ((0, 0), (0, H_pad - H), (0, X_pad - X)))
        return w4.reshape(4 * H_pad, X_pad).T          # (X_pad, 4*H_pad)

    w_ih_t = pad_gates_t(w_ih, E, E_pad).astype(jnp.bfloat16)
    w_hh_t = pad_gates_t(w_hh, H, H_pad).astype(jnp.bfloat16)

    b4 = (b_ih + b_hh).reshape(4, H)
    b4 = jnp.pad(b4, ((0, 0), (0, H_pad - H)))
    bias = b4.reshape(1, 4 * H_pad).astype(jnp.float32)
    return w_ih_t, w_hh_t, bias


def encoder_lstm_forward(params, inputs, lengths, *, tt_block=32, tb_cap=256):
    """JAX/Pallas equivalent of EncoderLSTM.forward (eval mode, 1 layer, unidir)."""
    B = inputs.shape[0]
    H = params["w_hh"].shape[1]
    E = params["w_ih"].shape[1]

    # sort by length, descending, like lengths.sort(0, True)
    fwd_idx = jnp.argsort(-lengths)
    inputs_s = inputs[fwd_idx]
    lengths_s = lengths[fwd_idx].astype(jnp.int32)

    # pad_packed_sequence (single-device branch) pads only up to max length.
    # TODO(synk): concretizes a device value -> eager-only; a jitted version
    # needs a static max-length argument.
    t_out = int(jnp.max(lengths_s))

    B_pad = _round_up(max(B, 8), 8)
    E_pad = _round_up(E, 128)
    H_pad = _round_up(H, 128)

    # time block: power-of-two multiple of 8, capped by tt_block and the padded T
    TT = 8
    t_cap = max(8, _round_up(t_out, 8))
    while TT * 2 <= tt_block and TT * 2 <= t_cap:
        TT *= 2
    TB = _pick_tb(B_pad, cap=tb_cap)

    # v7x-safe VMEM budget (64 MiB physical): shrink time block, then batch block.
    budget = 44 * 1024 * 1024
    while TT > 8 and _vmem_bytes(TT, TB, E_pad, H_pad) > budget:
        TT //= 2
    divs = sorted({d for d in range(8, B_pad + 1, 8) if B_pad % d == 0})
    while _vmem_bytes(TT, TB, E_pad, H_pad) > budget:
        smaller = [d for d in divs if d < TB]
        if not smaller:
            break
        TB = max(smaller)
    T_pad = _round_up(t_out, TT)
    est = _vmem_bytes(TT, TB, E_pad, H_pad)
    vmem_limit = int(min(96 * 2 ** 20, max(32 * 2 ** 20, est * 3 // 2)))

    # embedding gather in bf16 (halves wrapper HBM traffic); dropout is identity.
    # TODO(synk): training-mode dropout not implemented (eval semantics only).
    emb_table = params["embedding"].astype(jnp.bfloat16)
    embeds = emb_table[inputs_s[:, :t_out]]                              # (B, T, E) bf16

    # time-major, padded slab for the kernel
    emb_t = jnp.transpose(embeds, (1, 0, 2))                             # (T, B, E)
    emb_t = jnp.pad(emb_t, ((0, T_pad - t_out), (0, B_pad - B), (0, E_pad - E)))

    lens = jnp.pad(lengths_s, (0, B_pad - B)).reshape(B_pad, 1)          # padded rows: len 0

    w_ih_t, w_hh_t, bias = _pack_weights(
        params["w_ih"], params["w_hh"], params["b_ih"], params["b_hh"],
        H, H_pad, E, E_pad)

    ctx_t, h_fin, c_fin = _run_lstm_pallas(
        emb_t, lens, w_ih_t, w_hh_t, bias,
        TT=TT, TB=TB, vmem_limit_bytes=vmem_limit)

    # transpose / un-sort in bf16 (half the HBM traffic), cast to f32 at the end
    ctx = jnp.transpose(ctx_t, (1, 0, 2))[:B, :t_out, :H]                # (B, T, H) bf16
    bwd_idx = jnp.argsort(fwd_idx)
    ctx = ctx[bwd_idx].astype(jnp.float32)

    # encoder2decoder applied in the wrapper (tiny one-shot matmul; keeps the
    # recurrence kernel's VMEM free of extra weights).
    h_fin = h_fin[:B, :H]
    c_fin = c_fin[:B, :H]
    h_s = jnp.dot(h_fin, params["w_e2d"].T) + params["b_e2d"]
    c_s = jnp.dot(c_fin, params["w_e2d"].T) + params["b_e2d"]
    # NOTE: like the reference module, the returned state stays length-sorted.
    return ctx, (h_s[None, :, :], c_s[None, :, :])


# ------------------------------ pure-JAX reference ---------------------------

def _reference_forward(params, inputs, lengths):
    """Faithful f32 mirror of the PyTorch module (loop over time)."""
    H = params["w_hh"].shape[1]
    fwd_idx = jnp.argsort(-lengths)
    inputs_s = inputs[fwd_idx]
    lengths_s = lengths[fwd_idx]
    t_out = int(jnp.max(lengths_s))
    embeds = params["embedding"][inputs_s][:, :t_out, :]
    B = embeds.shape[0]

    h = jnp.zeros((B, H), jnp.float32)
    c = jnp.zeros((B, H), jnp.float32)
    ctx_rows = []
    for t in range(t_out):
        x = embeds[:, t, :]
        gates = (jnp.dot(x, params["w_ih"].T, preferred_element_type=jnp.float32)
                 + jnp.dot(h, params["w_hh"].T, preferred_element_type=jnp.float32)
                 + params["b_ih"] + params["b_hh"])
        i_g = jax.nn.sigmoid(gates[:, 0 * H:1 * H])
        f_g = jax.nn.sigmoid(gates[:, 1 * H:2 * H])
        g_g = jnp.tanh(gates[:, 2 * H:3 * H])
        o_g = jax.nn.sigmoid(gates[:, 3 * H:4 * H])
        c_new = f_g * c + i_g * g_g
        h_new = o_g * jnp.tanh(c_new)
        valid = (t < lengths_s)[:, None]
        h = jnp.where(valid, h_new, h)
        c = jnp.where(valid, c_new, c)
        ctx_rows.append(jnp.where(valid, h_new, 0.0))
    ctx = jnp.stack(ctx_rows, axis=1)
    h_out = jnp.dot(h, params["w_e2d"].T) + params["b_e2d"]
    c_out = jnp.dot(c, params["w_e2d"].T) + params["b_e2d"]
    bwd_idx = jnp.argsort(fwd_idx)
    return ctx[bwd_idx], (h_out[None], c_out[None])


# ----------------------------------- main ------------------------------------

if __name__ == "__main__":
    VOCAB, E, H, PAD = 20, 32, 32, 0
    B, T = 4, 8

    key = jax.random.PRNGKey(0)
    k_param, k_tok, _ = jax.random.split(key, 3)
    params = init_params(k_param, VOCAB, E, H, PAD)

    inputs = jax.random.randint(k_tok, (B, T), 1, VOCAB, dtype=jnp.int32)
    lengths = jnp.array([8, 3, 5, 6], dtype=jnp.int32)
    # zero out padded token positions (like real padded batches)
    pad_mask = jnp.arange(T)[None, :] < lengths[:, None]
    inputs = jnp.where(pad_mask, inputs, PAD)

    ctx, (h_s, c_s) = encoder_lstm_forward(params, inputs, lengths)
    jax.block_until_ready((ctx, h_s, c_s))

    ctx_r, (h_r, c_r) = _reference_forward(params, inputs, lengths)
    assert ctx.shape == (B, int(lengths.max()), H)
    assert h_s.shape == (1, B, H) and c_s.shape == (1, B, H)
    # bf16 matmul operands + bf16 ctx writeback (f32 accumulation / state) ->
    # small deviation from the pure-f32 reference is expected.
    assert jnp.allclose(ctx, ctx_r, atol=3e-2, rtol=3e-2)
    assert jnp.allclose(h_s, h_r, atol=3e-2, rtol=3e-2)
    assert jnp.allclose(c_s, c_r, atol=3e-2, rtol=3e-2)

    print("KERNEL_OK")
</pallas_src>

<mosaic_0001>
module attributes {stable_mosaic.version = 11 : i64} {
  func.func @_encoder_lstm_kernel(%arg0: i32, %arg1: i32, %arg2: memref<8x8x128xbf16, #tpu.memory_space<vmem>>, %arg3: memref<8x1xi32, #tpu.memory_space<vmem>>, %arg4: memref<128x512xbf16, #tpu.memory_space<vmem>>, %arg5: memref<128x512xbf16, #tpu.memory_space<vmem>>, %arg6: memref<1x512xf32, #tpu.memory_space<vmem>>, %arg7: memref<8x8x128xbf16, #tpu.memory_space<vmem>>, %arg8: memref<8x128xf32, #tpu.memory_space<vmem>>, %arg9: memref<8x128xf32, #tpu.memory_space<vmem>>, %arg10: memref<8x8x512xf32, #tpu.memory_space<vmem>>) attributes {dimension_semantics = [#tpu.dimension_semantics<parallel>, #tpu.dimension_semantics<arbitrary>], iteration_bounds = array<i64: 1, 1>, scalar_prefetch = 0 : i64, scratch_operands = 1 : i64, tpu.core_type = #tpu.core_type<tc>, window_params = [{transform_indices = @transform_0, window_bounds = array<i64: 8, 8, 128>}, {transform_indices = @transform_1, window_bounds = array<i64: 8, 1>}, {pipeline_mode = #tpu.pipeline_mode<synchronous>, transform_indices = @transform_2, window_bounds = array<i64: 128, 512>}, {pipeline_mode = #tpu.pipeline_mode<synchronous>, transform_indices = @transform_3, window_bounds = array<i64: 128, 512>}, {pipeline_mode = #tpu.pipeline_mode<synchronous>, transform_indices = @transform_4, window_bounds = array<i64: 1, 512>}, {transform_indices = @transform_5, window_bounds = array<i64: 8, 8, 128>}, {transform_indices = @transform_6, window_bounds = array<i64: 8, 128>}, {transform_indices = @transform_7, window_bounds = array<i64: 8, 128>}]} {
    %c0_i32 = arith.constant 0 : i32
    %0 = arith.cmpi eq, %arg1, %c0_i32 : i32
    %1 = arith.extui %0 : i1 to i32
    %c0_i32_0 = arith.constant 0 : i32
    %2 = arith.cmpi ne, %1, %c0_i32_0 : i32
    scf.if %2 {
      %cst_96 = arith.constant 0.000000e+00 : f32
      %379 = vector.broadcast %cst_96 : f32 to vector<8x128xf32>
      %c0_97 = arith.constant 0 : index
      %c0_98 = arith.constant 0 : index
      %380 = vector.load %arg8[%c0_97, %c0_98] : memref<8x128xf32, #tpu.memory_space<vmem>>, vector<8x128xf32>
      tpu.vector_store %arg8[%c0_97, %c0_98], %379 {strides = array<i32>} : memref<8x128xf32, #tpu.memory_space<vmem>>, vector<8x128xf32>,
      %cst_99 = arith.constant 0.000000e+00 : f32
      %381 = vector.broadcast %cst_99 : f32 to vector<8x128xf32>
      %c0_100 = arith.constant 0 : index
      %c0_101 = arith.constant 0 : index
      %382 = vector.load %arg9[%c0_100, %c0_101] : memref<8x128xf32, #tpu.memory_space<vmem>>, vector<8x128xf32>
      tpu.vector_store %arg9[%c0_100, %c0_101], %381 {strides = array<i32>} : memref<8x128xf32, #tpu.memory_space<vmem>>, vector<8x128xf32>,
    } else {
    }
    %c0 = arith.constant 0 : index
    %c0_1 = arith.constant 0 : index
    %c0_2 = arith.constant 0 : index
    %3 = vector.load %arg2[%c0, %c0_1, %c0_2] : memref<8x8x128xbf16, #tpu.memory_space<vmem>>, vector<8x8x128xbf16>
    %4 = vector.shape_cast %3 : vector<8x8x128xbf16> to vector<64x128xbf16>
    %c0_3 = arith.constant 0 : index
    %c0_4 = arith.constant 0 : index
    %5 = vector.load %arg4[%c0_3, %c0_4] : memref<128x512xbf16, #tpu.memory_space<vmem>>, vector<128x512xbf16>
    %cst = arith.constant dense<0.000000e+00> : vector<64x512xf32>
    %6 = tpu.matmul %4, %5, %cst {dimension_numbers = #tpu.dot_dimension_numbers<[1], [0], [0], [1], [0, 0, 1, 1], [], []>} : vector<64x128xbf16>, vector<128x512xbf16>, vector<64x512xf32> -> vector<64x512xf32>
    %c0_5 = arith.constant 0 : index
    %c0_6 = arith.constant 0 : index
    %7 = vector.load %arg6[%c0_5, %c0_6] : memref<1x512xf32, #tpu.memory_space<vmem>>, vector<1x512xf32>
    %8 = vector.broadcast %7 : vector<1x512xf32> to vector<64x512xf32>
    %9 = arith.addf %6, %8 : vector<64x512xf32>
    %10 = vector.shape_cast %9 : vector<64x512xf32> to vector<8x8x512xf32>
    %c0_7 = arith.constant 0 : index
    %c0_8 = arith.constant 0 : index
    %c0_9 = arith.constant 0 : index
    %11 = vector.load %arg10[%c0_7, %c0_8, %c0_9] : memref<8x8x512xf32, #tpu.memory_space<vmem>>, vector<8x8x512xf32>
    tpu.vector_store %arg10[%c0_7, %c0_8, %c0_9], %10 {strides = array<i32>} : memref<8x8x512xf32, #tpu.memory_space<vmem>>, vector<8x8x512xf32>,
    %c0_10 = arith.constant 0 : index
    %c0_11 = arith.constant 0 : index
    %12 = vector.load %arg5[%c0_10, %c0_11] : memref<128x512xbf16, #tpu.memory_space<vmem>>, vector<128x512xbf16>
    %c0_12 = arith.constant 0 : index
    %c0_13 = arith.constant 0 : index
    %13 = vector.load %arg3[%c0_12, %c0_13] : memref<8x1xi32, #tpu.memory_space<vmem>>, vector<8x1xi32>
    %c8_i32 = arith.constant 8 : i32
    %14 = arith.muli %arg1, %c8_i32 : i32
    %c0_14 = arith.constant 0 : index
    %c0_15 = arith.constant 0 : index
    %15 = vector.load %arg8[%c0_14, %c0_15] : memref<8x128xf32, #tpu.memory_space<vmem>>, vector<8x128xf32>
    %c0_16 = arith.constant 0 : index
    %c0_17 = arith.constant 0 : index
    %16 = vector.load %arg9[%c0_16, %c0_17] : memref<8x128xf32, #tpu.memory_space<vmem>>, vector<8x128xf32>
    %c0_i32_18 = arith.constant 0 : i32
    %17 = arith.index_cast %c0_i32_18 : i32 to index
    %c0_19 = arith.constant 0 : index
    %c0_20 = arith.constant 0 : index
    %18 = vector.load %arg10[%17, %c0_19, %c0_20] : memref<8x8x512xf32, #tpu.memory_space<vmem>>, vector<1x8x512xf32>
    %19 = vector.shape_cast %18 : vector<1x8x512xf32> to vector<8x512xf32>
    %20 = arith.truncf %15 : vector<8x128xf32> to vector<8x128xbf16>
    %cst_21 = arith.constant dense<0.000000e+00> : vector<8x512xf32>
    %21 = tpu.matmul %20, %12, %cst_21 {dimension_numbers = #tpu.dot_dimension_numbers<[1], [0], [0], [1], [0, 0, 1, 1], [], []>} : vector<8x128xbf16>, vector<128x512xbf16>, vector<8x512xf32> -> vector<8x512xf32>
    %22 = arith.addf %19, %21 : vector<8x512xf32>
    %23 = vector.extract_strided_slice %22 {offsets = [0, 0], sizes = [8, 128], strides = [1, 1]} : vector<8x512xf32> to vector<8x128xf32>
    %24 = arith.negf %23 : vector<8x128xf32>
    %25 = math.exp %24 : vector<8x128xf32>
    %cst_22 = arith.constant 1.000000e+00 : f32
    %26 = vector.broadcast %cst_22 : f32 to vector<8x128xf32>
    %27 = arith.addf %26, %25 : vector<8x128xf32>
    %28 = arith.divf %26, %27 : vector<8x128xf32>
    %29 = vector.extract_strided_slice %22 {offsets = [0, 128], sizes = [8, 128], strides = [1, 1]} : vector<8x512xf32> to vector<8x128xf32>
    %30 = arith.negf %29 : vector<8x128xf32>
    %31 = math.exp %30 : vector<8x128xf32>
    %cst_23 = arith.constant 1.000000e+00 : f32
    %32 = vector.broadcast %cst_23 : f32 to vector<8x128xf32>
    %33 = arith.addf %32, %31 : vector<8x128xf32>
    %34 = arith.divf %32, %33 : vector<8x128xf32>
    %35 = vector.extract_strided_slice %22 {offsets = [0, 256], sizes = [8, 128], strides = [1, 1]} : vector<8x512xf32> to vector<8x128xf32>
    %36 = math.tanh %35 : vector<8x128xf32>
    %37 = vector.extract_strided_slice %22 {offsets = [0, 384], sizes = [8, 128], strides = [1, 1]} : vector<8x512xf32> to vector<8x128xf32>
    %38 = arith.negf %37 : vector<8x128xf32>
    %39 = math.exp %38 : vector<8x128xf32>
    %cst_24 = arith.constant 1.000000e+00 : f32
    %40 = vector.broadcast %cst_24 : f32 to vector<8x128xf32>
    %41 = arith.addf %40, %39 : vector<8x128xf32>
    %42 = arith.divf %40, %41 : vector<8x128xf32>
    %43 = arith.mulf %34, %16 : vector<8x128xf32>
    %44 = arith.mulf %28, %36 : vector<8x128xf32>
    %45 = arith.addf %43, %44 : vector<8x128xf32>
    %46 = math.tanh %45 : vector<8x128xf32>
    %47 = arith.mulf %42, %46 : vector<8x128xf32>
    %48 = arith.addi %14, %c0_i32_18 : i32
    %49 = vector.broadcast %48 : i32 to vector<8x1xi32>
    %50 = arith.cmpi slt, %49, %13 : vector<8x1xi32>
    %51 = vector.shape_cast %50 : vector<8x1xi1> to vector<8x1xi1>
    %52 = vector.broadcast %51 : vector<8x1xi1> to vector<8x128xi1>
    %53 = arith.select %52, %47, %15 : vector<8x128xi1>, vector<8x128xf32>
    %54 = arith.select %52, %45, %16 : vector<8x128xi1>, vector<8x128xf32>
    %cst_25 = arith.constant 0.000000e+00 : f32
    %55 = vector.broadcast %cst_25 : f32 to vector<8x128xf32>
    %56 = arith.select %52, %47, %55 : vector<8x128xi1>, vector<8x128xf32>
    %57 = arith.truncf %56 : vector<8x128xf32> to vector<8x128xbf16>
    %58 = arith.index_cast %c0_i32_18 : i32 to index
    %c0_26 = arith.constant 0 : index
    %c0_27 = arith.constant 0 : index
    %59 = vector.load %arg7[%58, %c0_26, %c0_27] : memref<8x8x128xbf16, #tpu.memory_space<vmem>>, vector<1x8x128xbf16>
    %60 = vector.shape_cast %59 : vector<1x8x128xbf16> to vector<8x128xbf16>
    %61 = vector.shape_cast %57 : vector<8x128xbf16> to vector<1x8x128xbf16>
    tpu.vector_store %arg7[%58, %c0_26, %c0_27], %61 {strides = array<i32>} : memref<8x8x128xbf16, #tpu.memory_space<vmem>>, vector<1x8x128xbf16>,
    %c1_i32 = arith.constant 1 : i32
    %62 = arith.index_cast %c1_i32 : i32 to index
    %c0_28 = arith.constant 0 : index
    %c0_29 = arith.constant 0 : index
    %63 = vector.load %arg10[%62, %c0_28, %c0_29] : memref<8x8x512xf32, #tpu.memory_space<vmem>>, vector<1x8x512xf32>
    %64 = vector.shape_cast %63 : vector<1x8x512xf32> to vector<8x512xf32>
    %65 = arith.truncf %53 : vector<8x128xf32> to vector<8x128xbf16>
    %cst_30 = arith.constant dense<0.000000e+00> : vector<8x512xf32>
    %66 = tpu.matmul %65, %12, %cst_30 {dimension_numbers = #tpu.dot_dimension_numbers<[1], [0], [0], [1], [0, 0, 1, 1], [], []>} : vector<8x128xbf16>, vector<128x512xbf16>, vector<8x512xf32> -> vector<8x512xf32>
    %67 = arith.addf %64, %66 : vector<8x512xf32>
    %68 = vector.extract_strided_slice %67 {offsets = [0, 0], sizes = [8, 128], strides = [1, 1]} : vector<8x512xf32> to vector<8x128xf32>
    %69 = arith.negf %68 : vector<8x128xf32>
    %70 = math.exp %69 : vector<8x128xf32>
    %cst_31 = arith.constant 1.000000e+00 : f32
    %71 = vector.broadcast %cst_31 : f32 to vector<8x128xf32>
    %72 = arith.addf %71, %70 : vector<8x128xf32>
    %73 = arith.divf %71, %72 : vector<8x128xf32>
    %74 = vector.extract_strided_slice %67 {offsets = [0, 128], sizes = [8, 128], strides = [1, 1]} : vector<8x512xf32> to vector<8x128xf32>
    %75 = arith.negf %74 : vector<8x128xf32>
    %76 = math.exp %75 : vector<8x128xf32>
    %cst_32 = arith.constant 1.000000e+00 : f32
    %77 = vector.broadcast %cst_32 : f32 to vector<8x128xf32>
    %78 = arith.addf %77, %76 : vector<8x128xf32>
    %79 = arith.divf %77, %78 : vector<8x128xf32>
    %80 = vector.extract_strided_slice %67 {offsets = [0, 256], sizes = [8, 128], strides = [1, 1]} : vector<8x512xf32> to vector<8x128xf32>
    %81 = math.tanh %80 : vector<8x128xf32>
    %82 = vector.extract_strided_slice %67 {offsets = [0, 384], sizes = [8, 128], strides = [1, 1]} : vector<8x512xf32> to vector<8x128xf32>
    %83 = arith.negf %82 : vector<8x128xf32>
    %84 = math.exp %83 : vector<8x128xf32>
    %cst_33 = arith.constant 1.000000e+00 : f32
    %85 = vector.broadcast %cst_33 : f32 to vector<8x128xf32>
    %86 = arith.addf %85, %84 : vector<8x128xf32>
    %87 = arith.divf %85, %86 : vector<8x128xf32>
    %88 = arith.mulf %79, %54 : vector<8x128xf32>
    %89 = arith.mulf %73, %81 : vector<8x128xf32>
    %90 = arith.addf %88, %89 : vector<8x128xf32>
    %91 = math.tanh %90 : vector<8x128xf32>
    %92 = arith.mulf %87, %91 : vector<8x128xf32>
    %93 = arith.addi %14, %c1_i32 : i32
    %94 = vector.broadcast %93 : i32 to vector<8x1xi32>
    %95 = arith.cmpi slt, %94, %13 : vector<8x1xi32>
    %96 = vector.shape_cast %95 : vector<8x1xi1> to vector<8x1xi1>
    %97 = vector.broadcast %96 : vector<8x1xi1> to vector<8x128xi1>
    %98 = arith.select %97, %92, %53 : vector<8x128xi1>, vector<8x128xf32>
    %99 = arith.select %97, %90, %54 : vector<8x128xi1>, vector<8x128xf32>
    %cst_34 = arith.constant 0.000000e+00 : f32
    %100 = vector.broadcast %cst_34 : f32 to vector<8x128xf32>
    %101 = arith.select %97, %92, %100 : vector<8x128xi1>, vector<8x128xf32>
    %102 = arith.truncf %101 : vector<8x128xf32> to vector<8x128xbf16>
    %103 = arith.index_cast %c1_i32 : i32 to index
    %c0_35 = arith.constant 0 : index
    %c0_36 = arith.constant 0 : index
    %104 = vector.load %arg7[%103, %c0_35, %c0_36] : memref<8x8x128xbf16, #tpu.memory_space<vmem>>, vector<1x8x128xbf16>
    %105 = vector.shape_cast %104 : vector<1x8x128xbf16> to vector<8x128xbf16>
    %106 = vector.shape_cast %102 : vector<8x128xbf16> to vector<1x8x128xbf16>
    tpu.vector_store %arg7[%103, %c0_35, %c0_36], %106 {strides = array<i32>} : memref<8x8x128xbf16, #tpu.memory_space<vmem>>, vector<1x8x128xbf16>,
    %c2_i32 = arith.constant 2 : i32
    %107 = arith.index_cast %c2_i32 : i32 to index
    %c0_37 = arith.constant 0 : index
    %c0_38 = arith.constant 0 : index
    %108 = vector.load %arg10[%107, %c0_37, %c0_38] : memref<8x8x512xf32, #tpu.memory_space<vmem>>, vector<1x8x512xf32>
    %109 = vector.shape_cast %108 : vector<1x8x512xf32> to vector<8x512xf32>
    %110 = arith.truncf %98 : vector<8x128xf32> to vector<8x128xbf16>
    %cst_39 = arith.constant dense<0.000000e+00> : vector<8x512xf32>
    %111 = tpu.matmul %110, %12, %cst_39 {dimension_numbers = #tpu.dot_dimension_numbers<[1], [0], [0], [1], [0, 0, 1, 1], [], []>} : vector<8x128xbf16>, vector<128x512xbf16>, vector<8x512xf32> -> vector<8x512xf32>
    %112 = arith.addf %109, %111 : vector<8x512xf32>
    %113 = vector.extract_strided_slice %112 {offsets = [0, 0], sizes = [8, 128], strides = [1, 1]} : vector<8x512xf32> to vector<8x128xf32>
    %114 = arith.negf %113 : vector<8x128xf32>
    %115 = math.exp %114 : vector<8x128xf32>
    %cst_40 = arith.constant 1.000000e+00 : f32
    %116 = vector.broadcast %cst_40 : f32 to vector<8x128xf32>
    %117 = arith.addf %116, %115 : vector<8x128xf32>
    %118 = arith.divf %116, %117 : vector<8x128xf32>
    %119 = vector.extract_strided_slice %112 {offsets = [0, 128], sizes = [8, 128], strides = [1, 1]} : vector<8x512xf32> to vector<8x128xf32>
    %120 = arith.negf %119 : vector<8x128xf32>
    %121 = math.exp %120 : vector<8x128xf32>
    %cst_41 = arith.constant 1.000000e+00 : f32
    %122 = vector.broadcast %cst_41 : f32 to vector<8x128xf32>
    %123 = arith.addf %122, %121 : vector<8x128xf32>
    %124 = arith.divf %122, %123 : vector<8x128xf32>
    %125 = vector.extract_strided_slice %112 {offsets = [0, 256], sizes = [8, 128], strides = [1, 1]} : vector<8x512xf32> to vector<8x128xf32>
    %126 = math.tanh %125 : vector<8x128xf32>
    %127 = vector.extract_strided_slice %112 {offsets = [0, 384], sizes = [8, 128], strides = [1, 1]} : vector<8x512xf32> to vector<8x128xf32>
    %128 = arith.negf %127 : vector<8x128xf32>
    %129 = math.exp %128 : vector<8x128xf32>
    %cst_42 = arith.constant 1.000000e+00 : f32
    %130 = vector.broadcast %cst_42 : f32 to vector<8x128xf32>
    %131 = arith.addf %130, %129 : vector<8x128xf32>
    %132 = arith.divf %130, %131 : vector<8x128xf32>
    %133 = arith.mulf %124, %99 : vector<8x128xf32>
    %134 = arith.mulf %118, %126 : vector<8x128xf32>
    %135 = arith.addf %133, %134 : vector<8x128xf32>
    %136 = math.tanh %135 : vector<8x128xf32>
    %137 = arith.mulf %132, %136 : vector<8x128xf32>
    %138 = arith.addi %14, %c2_i32 : i32
    %139 = vector.broadcast %138 : i32 to vector<8x1xi32>
    %140 = arith.cmpi slt, %139, %13 : vector<8x1xi32>
    %141 = vector.shape_cast %140 : vector<8x1xi1> to vector<8x1xi1>
    %142 = vector.broadcast %141 : vector<8x1xi1> to vector<8x128xi1>
    %143 = arith.select %142, %137, %98 : vector<8x128xi1>, vector<8x128xf32>
    %144 = arith.select %142, %135, %99 : vector<8x128xi1>, vector<8x128xf32>
    %cst_43 = arith.constant 0.000000e+00 : f32
    %145 = vector.broadcast %cst_43 : f32 to vector<8x128xf32>
    %146 = arith.select %142, %137, %145 : vector<8x128xi1>, vector<8x128xf32>
    %147 = arith.truncf %146 : vector<8x128xf32> to vector<8x128xbf16>
    %148 = arith.index_cast %c2_i32 : i32 to index
    %c0_44 = arith.constant 0 : index
    %c0_45 = arith.constant 0 : index
    %149 = vector.load %arg7[%148, %c0_44, %c0_45] : memref<8x8x128xbf16, #tpu.memory_space<vmem>>, vector<1x8x128xbf16>
    %150 = vector.shape_cast %149 : vector<1x8x128xbf16> to vector<8x128xbf16>
    %151 = vector.shape_cast %147 : vector<8x128xbf16> to vector<1x8x128xbf16>
    tpu.vector_store %arg7[%148, %c0_44, %c0_45], %151 {strides = array<i32>} : memref<8x8x128xbf16, #tpu.memory_space<vmem>>, vector<1x8x128xbf16>,
    %c3_i32 = arith.constant 3 : i32
    %152 = arith.index_cast %c3_i32 : i32 to index
    %c0_46 = arith.constant 0 : index
    %c0_47 = arith.constant 0 : index
    %153 = vector.load %arg10[%152, %c0_46, %c0_47] : memref<8x8x512xf32, #tpu.memory_space<vmem>>, vector<1x8x512xf32>
    %154 = vector.shape_cast %153 : vector<1x8x512xf32> to vector<8x512xf32>
    %155 = arith.truncf %143 : vector<8x128xf32> to vector<8x128xbf16>
    %cst_48 = arith.constant dense<0.000000e+00> : vector<8x512xf32>
    %156 = tpu.matmul %155, %12, %cst_48 {dimension_numbers = #tpu.dot_dimension_numbers<[1], [0], [0], [1], [0, 0, 1, 1], [], []>} : vector<8x128xbf16>, vector<128x512xbf16>, vector<8x512xf32> -> vector<8x512xf32>
    %157 = arith.addf %154, %156 : vector<8x512xf32>
    %158 = vector.extract_strided_slice %157 {offsets = [0, 0], sizes = [8, 128], strides = [1, 1]} : vector<8x512xf32> to vector<8x128xf32>
    %159 = arith.negf %158 : vector<8x128xf32>
    %160 = math.exp %159 : vector<8x128xf32>
    %cst_49 = arith.constant 1.000000e+00 : f32
    %161 = vector.broadcast %cst_49 : f32 to vector<8x128xf32>
    %162 = arith.addf %161, %160 : vector<8x128xf32>
    %163 = arith.divf %161, %162 : vector<8x128xf32>
    %164 = vector.extract_strided_slice %157 {offsets = [0, 128], sizes = [8, 128], strides = [1, 1]} : vector<8x512xf32> to vector<8x128xf32>
    %165 = arith.negf %164 : vector<8x128xf32>
    %166 = math.exp %165 : vector<8x128xf32>
    %cst_50 = arith.constant 1.000000e+00 : f32
    %167 = vector.broadcast %cst_50 : f32 to vector<8x128xf32>
    %168 = arith.addf %167, %166 : vector<8x128xf32>
    %169 = arith.divf %167, %168 : vector<8x128xf32>
    %170 = vector.extract_strided_slice %157 {offsets = [0, 256], sizes = [8, 128], strides = [1, 1]} : vector<8x512xf32> to vector<8x128xf32>
    %171 = math.tanh %170 : vector<8x128xf32>
    %172 = vector.extract_strided_slice %157 {offsets = [0, 384], sizes = [8, 128], strides = [1, 1]} : vector<8x512xf32> to vector<8x128xf32>
    %173 = arith.negf %172 : vector<8x128xf32>
    %174 = math.exp %173 : vector<8x128xf32>
    %cst_51 = arith.constant 1.000000e+00 : f32
    %175 = vector.broadcast %cst_51 : f32 to vector<8x128xf32>
    %176 = arith.addf %175, %174 : vector<8x128xf32>
    %177 = arith.divf %175, %176 : vector<8x128xf32>
    %178 = arith.mulf %169, %144 : vector<8x128xf32>
    %179 = arith.mulf %163, %171 : vector<8x128xf32>
    %180 = arith.addf %178, %179 : vector<8x128xf32>
    %181 = math.tanh %180 : vector<8x128xf32>
    %182 = arith.mulf %177, %181 : vector<8x128xf32>
    %183 = arith.addi %14, %c3_i32 : i32
    %184 = vector.broadcast %183 : i32 to vector<8x1xi32>
    %185 = arith.cmpi slt, %184, %13 : vector<8x1xi32>
    %186 = vector.shape_cast %185 : vector<8x1xi1> to vector<8x1xi1>
    %187 = vector.broadcast %186 : vector<8x1xi1> to vector<8x128xi1>
    %188 = arith.select %187, %182, %143 : vector<8x128xi1>, vector<8x128xf32>
    %189 = arith.select %187, %180, %144 : vector<8x128xi1>, vector<8x128xf32>
    %cst_52 = arith.constant 0.000000e+00 : f32
    %190 = vector.broadcast %cst_52 : f32 to vector<8x128xf32>
    %191 = arith.select %187, %182, %190 : vector<8x128xi1>, vector<8x128xf32>
    %192 = arith.truncf %191 : vector<8x128xf32> to vector<8x128xbf16>
    %193 = arith.index_cast %c3_i32 : i32 to index
    %c0_53 = arith.constant 0 : index
    %c0_54 = arith.constant 0 : index
    %194 = vector.load %arg7[%193, %c0_53, %c0_54] : memref<8x8x128xbf16, #tpu.memory_space<vmem>>, vector<1x8x128xbf16>
    %195 = vector.shape_cast %194 : vector<1x8x128xbf16> to vector<8x128xbf16>
    %196 = vector.shape_cast %192 : vector<8x128xbf16> to vector<1x8x128xbf16>
    tpu.vector_store %arg7[%193, %c0_53, %c0_54], %196 {strides = array<i32>} : memref<8x8x128xbf16, #tpu.memory_space<vmem>>, vector<1x8x128xbf16>,
    %c4_i32 = arith.constant 4 : i32
    %197 = arith.index_cast %c4_i32 : i32 to index
    %c0_55 = arith.constant 0 : index
    %c0_56 = arith.constant 0 : index
    %198 = vector.load %arg10[%197, %c0_55, %c0_56] : memref<8x8x512xf32, #tpu.memory_space<vmem>>, vector<1x8x512xf32>
    %199 = vector.shape_cast %198 : vector<1x8x512xf32> to vector<8x512xf32>
    %200 = arith.truncf %188 : vector<8x128xf32> to vector<8x128xbf16>
    %cst_57 = arith.constant dense<0.000000e+00> : vector<8x512xf32>
    %201 = tpu.matmul %200, %12, %cst_57 {dimension_numbers = #tpu.dot_dimension_numbers<[1], [0], [0], [1], [0, 0, 1, 1], [], []>} : vector<8x128xbf16>, vector<128x512xbf16>, vector<8x512xf32> -> vector<8x512xf32>
    %202 = arith.addf %199, %201 : vector<8x512xf32>
    %203 = vector.extract_strided_slice %202 {offsets = [0, 0], sizes = [8, 128], strides = [1, 1]} : vector<8x512xf32> to vector<8x128xf32>
    %204 = arith.negf %203 : vector<8x128xf32>
    %205 = math.exp %204 : vector<8x128xf32>
    %cst_58 = arith.constant 1.000000e+00 : f32
    %206 = vector.broadcast %cst_58 : f32 to vector<8x128xf32>
    %207 = arith.addf %206, %205 : vector<8x128xf32>
    %208 = arith.divf %206, %207 : vector<8x128xf32>
    %209 = vector.extract_strided_slice %202 {offsets = [0, 128], sizes = [8, 128], strides = [1, 1]} : vector<8x512xf32> to vector<8x128xf32>
    %210 = arith.negf %209 : vector<8x128xf32>
    %211 = math.exp %210 : vector<8x128xf32>
    %cst_59 = arith.constant 1.000000e+00 : f32
    %212 = vector.broadcast %cst_59 : f32 to vector<8x128xf32>
    %213 = arith.addf %212, %211 : vector<8x128xf32>
    %214 = arith.divf %212, %213 : vector<8x128xf32>
    %215 = vector.extract_strided_slice %202 {offsets = [0, 256], sizes = [8, 128], strides = [1, 1]} : vector<8x512xf32> to vector<8x128xf32>
    %216 = math.tanh %215 : vector<8x128xf32>
    %217 = vector.extract_strided_slice %202 {offsets = [0, 384], sizes = [8, 128], strides = [1, 1]} : vector<8x512xf32> to vector<8x128xf32>
    %218 = arith.negf %217 : vector<8x128xf32>
    %219 = math.exp %218 : vector<8x128xf32>
    %cst_60 = arith.constant 1.000000e+00 : f32
    %220 = vector.broadcast %cst_60 : f32 to vector<8x128xf32>
    %221 = arith.addf %220, %219 : vector<8x128xf32>
    %222 = arith.divf %220, %221 : vector<8x128xf32>
    %223 = arith.mulf %214, %189 : vector<8x128xf32>
    %224 = arith.mulf %208, %216 : vector<8x128xf32>
    %225 = arith.addf %223, %224 : vector<8x128xf32>
    %226 = math.tanh %225 : vector<8x128xf32>
    %227 = arith.mulf %222, %226 : vector<8x128xf32>
    %228 = arith.addi %14, %c4_i32 : i32
    %229 = vector.broadcast %228 : i32 to vector<8x1xi32>
    %230 = arith.cmpi slt, %229, %13 : vector<8x1xi32>
    %231 = vector.shape_cast %230 : vector<8x1xi1> to vector<8x1xi1>
    %232 = vector.broadcast %231 : vector<8x1xi1> to vector<8x128xi1>
    %233 = arith.select %232, %227, %188 : vector<8x128xi1>, vector<8x128xf32>
    %234 = arith.select %232, %225, %189 : vector<8x128xi1>, vector<8x128xf32>
    %cst_61 = arith.constant 0.000000e+00 : f32
    %235 = vector.broadcast %cst_61 : f32 to vector<8x128xf32>
    %236 = arith.select %232, %227, %235 : vector<8x128xi1>, vector<8x128xf32>
    %237 = arith.truncf %236 : vector<8x128xf32> to vector<8x128xbf16>
    %238 = arith.index_cast %c4_i32 : i32 to index
    %c0_62 = arith.constant 0 : index
    %c0_63 = arith.constant 0 : index
    %239 = vector.load %arg7[%238, %c0_62, %c0_63] : memref<8x8x128xbf16, #tpu.memory_space<vmem>>, vector<1x8x128xbf16>
    %240 = vector.shape_cast %239 : vector<1x8x128xbf16> to vector<8x128xbf16>
    %241 = vector.shape_cast %237 : vector<8x128xbf16> to vector<1x8x128xbf16>
    tpu.vector_store %arg7[%238, %c0_62, %c0_63], %241 {strides = array<i32>} : memref<8x8x128xbf16, #tpu.memory_space<vmem>>, vector<1x8x128xbf16>,
    %c5_i32 = arith.constant 5 : i32
    %242 = arith.index_cast %c5_i32 : i32 to index
    %c0_64 = arith.constant 0 : index
    %c0_65 = arith.constant 0 : index
    %243 = vector.load %arg10[%242, %c0_64, %c0_65] : memref<8x8x512xf32, #tpu.memory_space<vmem>>, vector<1x8x512xf32>
    %244 = vector.shape_cast %243 : vector<1x8x512xf32> to vector<8x512xf32>
    %245 = arith.truncf %233 : vector<8x128xf32> to vector<8x128xbf16>
    %cst_66 = arith.constant dense<0.000000e+00> : vector<8x512xf32>
    %246 = tpu.matmul %245, %12, %cst_66 {dimension_numbers = #tpu.dot_dimension_numbers<[1], [0], [0], [1], [0, 0, 1, 1], [], []>} : vector<8x128xbf16>, vector<128x512xbf16>, vector<8x512xf32> -> vector<8x512xf32>
    %247 = arith.addf %244, %246 : vector<8x512xf32>
    %248 = vector.extract_strided_slice %247 {offsets = [0, 0], sizes = [8, 128], strides = [1, 1]} : vector<8x512xf32> to vector<8x128xf32>
    %249 = arith.negf %248 : vector<8x128xf32>
    %250 = math.exp %249 : vector<8x128xf32>
    %cst_67 = arith.constant 1.000000e+00 : f32
    %251 = vector.broadcast %cst_67 : f32 to vector<8x128xf32>
    %252 = arith.addf %251, %250 : vector<8x128xf32>
    %253 = arith.divf %251, %252 : vector<8x128xf32>
    %254 = vector.extract_strided_slice %247 {offsets = [0, 128], sizes = [8, 128], strides = [1, 1]} : vector<8x512xf32> to vector<8x128xf32>
    %255 = arith.negf %254 : vector<8x128xf32>
    %256 = math.exp %255 : vector<8x128xf32>
    %cst_68 = arith.constant 1.000000e+00 : f32
    %257 = vector.broadcast %cst_68 : f32 to vector<8x128xf32>
    %258 = arith.addf %257, %256 : vector<8x128xf32>
    %259 = arith.divf %257, %258 : vector<8x128xf32>
    %260 = vector.extract_strided_slice %247 {offsets = [0, 256], sizes = [8, 128], strides = [1, 1]} : vector<8x512xf32> to vector<8x128xf32>
    %261 = math.tanh %260 : vector<8x128xf32>
    %262 = vector.extract_strided_slice %247 {offsets = [0, 384], sizes = [8, 128], strides = [1, 1]} : vector<8x512xf32> to vector<8x128xf32>
    %263 = arith.negf %262 : vector<8x128xf32>
    %264 = math.exp %263 : vector<8x128xf32>
    %cst_69 = arith.constant 1.000000e+00 : f32
    %265 = vector.broadcast %cst_69 : f32 to vector<8x128xf32>
    %266 = arith.addf %265, %264 : vector<8x128xf32>
    %267 = arith.divf %265, %266 : vector<8x128xf32>
    %268 = arith.mulf %259, %234 : vector<8x128xf32>
    %269 = arith.mulf %253, %261 : vector<8x128xf32>
    %270 = arith.addf %268, %269 : vector<8x128xf32>
    %271 = math.tanh %270 : vector<8x128xf32>
    %272 = arith.mulf %267, %271 : vector<8x128xf32>
    %273 = arith.addi %14, %c5_i32 : i32
    %274 = vector.broadcast %273 : i32 to vector<8x1xi32>
    %275 = arith.cmpi slt, %274, %13 : vector<8x1xi32>
    %276 = vector.shape_cast %275 : vector<8x1xi1> to vector<8x1xi1>
    %277 = vector.broadcast %276 : vector<8x1xi1> to vector<8x128xi1>
    %278 = arith.select %277, %272, %233 : vector<8x128xi1>, vector<8x128xf32>
    %279 = arith.select %277, %270, %234 : vector<8x128xi1>, vector<8x128xf32>
    %cst_70 = arith.constant 0.000000e+00 : f32
    %280 = vector.broadcast %cst_70 : f32 to vector<8x128xf32>
    %281 = arith.select %277, %272, %280 : vector<8x128xi1>, vector<8x128xf32>
    %282 = arith.truncf %281 : vector<8x128xf32> to vector<8x128xbf16>
    %283 = arith.index_cast %c5_i32 : i32 to index
    %c0_71 = arith.constant 0 : index
    %c0_72 = arith.constant 0 : index
    %284 = vector.load %arg7[%283, %c0_71, %c0_72] : memref<8x8x128xbf16, #tpu.memory_space<vmem>>, vector<1x8x128xbf16>
    %285 = vector.shape_cast %284 : vector<1x8x128xbf16> to vector<8x128xbf16>
    %286 = vector.shape_cast %282 : vector<8x128xbf16> to vector<1x8x128xbf16>
    tpu.vector_store %arg7[%283, %c0_71, %c0_72], %286 {strides = array<i32>} : memref<8x8x128xbf16, #tpu.memory_space<vmem>>, vector<1x8x128xbf16>,
    %c6_i32 = arith.constant 6 : i32
    %287 = arith.index_cast %c6_i32 : i32 to index
    %c0_73 = arith.constant 0 : index
    %c0_74 = arith.constant 0 : index
    %288 = vector.load %arg10[%287, %c0_73, %c0_74] : memref<8x8x512xf32, #tpu.memory_space<vmem>>, vector<1x8x512xf32>
    %289 = vector.shape_cast %288 : vector<1x8x512xf32> to vector<8x512xf32>
    %290 = arith.truncf %278 : vector<8x128xf32> to vector<8x128xbf16>
    %cst_75 = arith.constant dense<0.000000e+00> : vector<8x512xf32>
    %291 = tpu.matmul %290, %12, %cst_75 {dimension_numbers = #tpu.dot_dimension_numbers<[1], [0], [0], [1], [0, 0, 1, 1], [], []>} : vector<8x128xbf16>, vector<128x512xbf16>, vector<8x512xf32> -> vector<8x512xf32>
    %292 = arith.addf %289, %291 : vector<8x512xf32>
    %293 = vector.extract_strided_slice %292 {offsets = [0, 0], sizes = [8, 128], strides = [1, 1]} : vector<8x512xf32> to vector<8x128xf32>
    %294 = arith.negf %293 : vector<8x128xf32>
    %295 = math.exp %294 : vector<8x128xf32>
    %cst_76 = arith.constant 1.000000e+00 : f32
    %296 = vector.broadcast %cst_76 : f32 to vector<8x128xf32>
    %297 = arith.addf %296, %295 : vector<8x128xf32>
    %298 = arith.divf %296, %297 : vector<8x128xf32>
    %299 = vector.extract_strided_slice %292 {offsets = [0, 128], sizes = [8, 128], strides = [1, 1]} : vector<8x512xf32> to vector<8x128xf32>
    %300 = arith.negf %299 : vector<8x128xf32>
    %301 = math.exp %300 : vector<8x128xf32>
    %cst_77 = arith.constant 1.000000e+00 : f32
    %302 = vector.broadcast %cst_77 : f32 to vector<8x128xf32>
    %303 = arith.addf %302, %301 : vector<8x128xf32>
    %304 = arith.divf %302, %303 : vector<8x128xf32>
    %305 = vector.extract_strided_slice %292 {offsets = [0, 256], sizes = [8, 128], strides = [1, 1]} : vector<8x512xf32> to vector<8x128xf32>
    %306 = math.tanh %305 : vector<8x128xf32>
    %307 = vector.extract_strided_slice %292 {offsets = [0, 384], sizes = [8, 128], strides = [1, 1]} : vector<8x512xf32> to vector<8x128xf32>
    %308 = arith.negf %307 : vector<8x128xf32>
    %309 = math.exp %308 : vector<8x128xf32>
    %cst_78 = arith.constant 1.000000e+00 : f32
    %310 = vector.broadcast %cst_78 : f32 to vector<8x128xf32>
    %311 = arith.addf %310, %309 : vector<8x128xf32>
    %312 = arith.divf %310, %311 : vector<8x128xf32>
    %313 = arith.mulf %304, %279 : vector<8x128xf32>
    %314 = arith.mulf %298, %306 : vector<8x128xf32>
    %315 = arith.addf %313, %314 : vector<8x128xf32>
    %316 = math.tanh %315 : vector<8x128xf32>
    %317 = arith.mulf %312, %316 : vector<8x128xf32>
    %318 = arith.addi %14, %c6_i32 : i32
    %319 = vector.broadcast %318 : i32 to vector<8x1xi32>
    %320 = arith.cmpi slt, %319, %13 : vector<8x1xi32>
    %321 = vector.shape_cast %320 : vector<8x1xi1> to vector<8x1xi1>
    %322 = vector.broadcast %321 : vector<8x1xi1> to vector<8x128xi1>
    %323 = arith.select %322, %317, %278 : vector<8x128xi1>, vector<8x128xf32>
    %324 = arith.select %322, %315, %279 : vector<8x128xi1>, vector<8x128xf32>
    %cst_79 = arith.constant 0.000000e+00 : f32
    %325 = vector.broadcast %cst_79 : f32 to vector<8x128xf32>
    %326 = arith.select %322, %317, %325 : vector<8x128xi1>, vector<8x128xf32>
    %327 = arith.truncf %326 : vector<8x128xf32> to vector<8x128xbf16>
    %328 = arith.index_cast %c6_i32 : i32 to index
    %c0_80 = arith.constant 0 : index
    %c0_81 = arith.constant 0 : index
    %329 = vector.load %arg7[%328, %c0_80, %c0_81] : memref<8x8x128xbf16, #tpu.memory_space<vmem>>, vector<1x8x128xbf16>
    %330 = vector.shape_cast %329 : vector<1x8x128xbf16> to vector<8x128xbf16>
    %331 = vector.shape_cast %327 : vector<8x128xbf16> to vector<1x8x128xbf16>
    tpu.vector_store %arg7[%328, %c0_80, %c0_81], %331 {strides = array<i32>} : memref<8x8x128xbf16, #tpu.memory_space<vmem>>, vector<1x8x128xbf16>,
    %c7_i32 = arith.constant 7 : i32
    %332 = arith.index_cast %c7_i32 : i32 to index
    %c0_82 = arith.constant 0 : index
    %c0_83 = arith.constant 0 : index
    %333 = vector.load %arg10[%332, %c0_82, %c0_83] : memref<8x8x512xf32, #tpu.memory_space<vmem>>, vector<1x8x512xf32>
    %334 = vector.shape_cast %333 : vector<1x8x512xf32> to vector<8x512xf32>
    %335 = arith.truncf %323 : vector<8x128xf32> to vector<8x128xbf16>
    %cst_84 = arith.constant dense<0.000000e+00> : vector<8x512xf32>
    %336 = tpu.matmul %335, %12, %cst_84 {dimension_numbers = #tpu.dot_dimension_numbers<[1], [0], [0], [1], [0, 0, 1, 1], [], []>} : vector<8x128xbf16>, vector<128x512xbf16>, vector<8x512xf32> -> vector<8x512xf32>
    %337 = arith.addf %334, %336 : vector<8x512xf32>
    %338 = vector.extract_strided_slice %337 {offsets = [0, 0], sizes = [8, 128], strides = [1, 1]} : vector<8x512xf32> to vector<8x128xf32>
    %339 = arith.negf %338 : vector<8x128xf32>
    %340 = math.exp %339 : vector<8x128xf32>
    %cst_85 = arith.constant 1.000000e+00 : f32
    %341 = vector.broadcast %cst_85 : f32 to vector<8x128xf32>
    %342 = arith.addf %341, %340 : vector<8x128xf32>
    %343 = arith.divf %341, %342 : vector<8x128xf32>
    %344 = vector.extract_strided_slice %337 {offsets = [0, 128], sizes = [8, 128], strides = [1, 1]} : vector<8x512xf32> to vector<8x128xf32>
    %345 = arith.negf %344 : vector<8x128xf32>
    %346 = math.exp %345 : vector<8x128xf32>
    %cst_86 = arith.constant 1.000000e+00 : f32
    %347 = vector.broadcast %cst_86 : f32 to vector<8x128xf32>
    %348 = arith.addf %347, %346 : vector<8x128xf32>
    %349 = arith.divf %347, %348 : vector<8x128xf32>
    %350 = vector.extract_strided_slice %337 {offsets = [0, 256], sizes = [8, 128], strides = [1, 1]} : vector<8x512xf32> to vector<8x128xf32>
    %351 = math.tanh %350 : vector<8x128xf32>
    %352 = vector.extract_strided_slice %337 {offsets = [0, 384], sizes = [8, 128], strides = [1, 1]} : vector<8x512xf32> to vector<8x128xf32>
    %353 = arith.negf %352 : vector<8x128xf32>
    %354 = math.exp %353 : vector<8x128xf32>
    %cst_87 = arith.constant 1.000000e+00 : f32
    %355 = vector.broadcast %cst_87 : f32 to vector<8x128xf32>
    %356 = arith.addf %355, %354 : vector<8x128xf32>
    %357 = arith.divf %355, %356 : vector<8x128xf32>
    %358 = arith.mulf %349, %324 : vector<8x128xf32>
    %359 = arith.mulf %343, %351 : vector<8x128xf32>
    %360 = arith.addf %358, %359 : vector<8x128xf32>
    %361 = math.tanh %360 : vector<8x128xf32>
    %362 = arith.mulf %357, %361 : vector<8x128xf32>
    %363 = arith.addi %14, %c7_i32 : i32
    %364 = vector.broadcast %363 : i32 to vector<8x1xi32>
    %365 = arith.cmpi slt, %364, %13 : vector<8x1xi32>
    %366 = vector.shape_cast %365 : vector<8x1xi1> to vector<8x1xi1>
    %367 = vector.broadcast %366 : vector<8x1xi1> to vector<8x128xi1>
    %368 = arith.select %367, %362, %323 : vector<8x128xi1>, vector<8x128xf32>
    %369 = arith.select %367, %360, %324 : vector<8x128xi1>, vector<8x128xf32>
    %cst_88 = arith.constant 0.000000e+00 : f32
    %370 = vector.broadcast %cst_88 : f32 to vector<8x128xf32>
    %371 = arith.select %367, %362, %370 : vector<8x128xi1>, vector<8x128xf32>
    %372 = arith.truncf %371 : vector<8x128xf32> to vector<8x128xbf16>
    %373 = arith.index_cast %c7_i32 : i32 to index
    %c0_89 = arith.constant 0 : index
    %c0_90 = arith.constant 0 : index
    %374 = vector.load %arg7[%373, %c0_89, %c0_90] : memref<8x8x128xbf16, #tpu.memory_space<vmem>>, vector<1x8x128xbf16>
    %375 = vector.shape_cast %374 : vector<1x8x128xbf16> to vector<8x128xbf16>
    %376 = vector.shape_cast %372 : vector<8x128xbf16> to vector<1x8x128xbf16>
    tpu.vector_store %arg7[%373, %c0_89, %c0_90], %376 {strides = array<i32>} : memref<8x8x128xbf16, #tpu.memory_space<vmem>>, vector<1x8x128xbf16>,
    %c8_i32_91 = arith.constant 8 : i32
    %c0_92 = arith.constant 0 : index
    %c0_93 = arith.constant 0 : index
    %377 = vector.load %arg8[%c0_92, %c0_93] : memref<8x128xf32, #tpu.memory_space<vmem>>, vector<8x128xf32>
    tpu.vector_store %arg8[%c0_92, %c0_93], %368 {strides = array<i32>} : memref<8x128xf32, #tpu.memory_space<vmem>>, vector<8x128xf32>,
    %c0_94 = arith.constant 0 : index
    %c0_95 = arith.constant 0 : index
    %378 = vector.load %arg9[%c0_94, %c0_95] : memref<8x128xf32, #tpu.memory_space<vmem>>, vector<8x128xf32>
    tpu.vector_store %arg9[%c0_94, %c0_95], %369 {strides = array<i32>} : memref<8x128xf32, #tpu.memory_space<vmem>>, vector<8x128xf32>,
    return
  }
  func.func @transform_0(%arg0: i32, %arg1: i32) -> (i32, i32, i32) {
    %c0_i32 = arith.constant 0 : i32
    %c0_i32_0 = arith.constant 0 : i32
    return %arg1, %arg0, %c0_i32 : i32, i32, i32
  }
  func.func @transform_1(%arg0: i32, %arg1: i32) -> (i32, i32) {
    %c0_i32 = arith.constant 0 : i32
    %c0_i32_0 = arith.constant 0 : i32
    return %arg0, %c0_i32 : i32, i32
  }
  func.func @transform_2(%arg0: i32, %arg1: i32) -> (i32, i32) {
    %c0_i32 = arith.constant 0 : i32
    %c0_i32_0 = arith.constant 0 : i32
    %c0_i32_1 = arith.constant 0 : i32
    return %c0_i32, %c0_i32_0 : i32, i32
  }
  func.func @transform_3(%arg0: i32, %arg1: i32) -> (i32, i32) {
    %c0_i32 = arith.constant 0 : i32
    %c0_i32_0 = arith.constant 0 : i32
    %c0_i32_1 = arith.constant 0 : i32
    return %c0_i32, %c0_i32_0 : i32, i32
  }
  func.func @transform_4(%arg0: i32, %arg1: i32) -> (i32, i32) {
    %c0_i32 = arith.constant 0 : i32
    %c0_i32_0 = arith.constant 0 : i32
    %c0_i32_1 = arith.constant 0 : i32
    return %c0_i32, %c0_i32_0 : i32, i32
  }
  func.func @transform_5(%arg0: i32, %arg1: i32) -> (i32, i32, i32) {
    %c0_i32 = arith.constant 0 : i32
    %c0_i32_0 = arith.constant 0 : i32
    return %arg1, %arg0, %c0_i32 : i32, i32, i32
  }
  func.func @transform_6(%arg0: i32, %arg1: i32) -> (i32, i32) {
    %c0_i32 = arith.constant 0 : i32
    %c0_i32_0 = arith.constant 0 : i32
    return %arg0, %c0_i32 : i32, i32
  }
  func.func @transform_7(%arg0: i32, %arg1: i32) -> (i32, i32) {
    %c0_i32 = arith.constant 0 : i32
    %c0_i32_0 = arith.constant 0 : i32
    return %arg0, %c0_i32 : i32, i32
  }
}

module attributes {stable_mosaic.version = 11 : i64} {
  func.func @_encoder_lstm_kernel(%arg0: i32, %arg1: i32, %arg2: memref<8x8x128xbf16, #tpu.memory_space<vmem>>, %arg3: memref<8x1xi32, #tpu.memory_space<vmem>>, %arg4: memref<128x512xbf16, #tpu.memory_space<vmem>>, %arg5: memref<128x512xbf16, #tpu.memory_space<vmem>>, %arg6: memref<1x512xf32, #tpu.memory_space<vmem>>, %arg7: memref<8x8x128xbf16, #tpu.memory_space<vmem>>, %arg8: memref<8x128xf32, #tpu.memory_space<vmem>>, %arg9: memref<8x128xf32, #tpu.memory_space<vmem>>, %arg10: memref<8x8x512xf32, #tpu.memory_space<vmem>>) attributes {dimension_semantics = [#tpu.dimension_semantics<parallel>, #tpu.dimension_semantics<arbitrary>], iteration_bounds = array<i64: 1, 1>, scalar_prefetch = 0 : i64, scratch_operands = 1 : i64, tpu.core_type = #tpu.core_type<tc>, window_params = [{transform_indices = @transform_0, window_bounds = array<i64: 8, 8, 128>}, {transform_indices = @transform_1, window_bounds = array<i64: 8, 1>}, {pipeline_mode = #tpu.pipeline_mode<synchronous>, transform_indices = @transform_2, window_bounds = array<i64: 128, 512>}, {pipeline_mode = #tpu.pipeline_mode<synchronous>, transform_indices = @transform_3, window_bounds = array<i64: 128, 512>}, {pipeline_mode = #tpu.pipeline_mode<synchronous>, transform_indices = @transform_4, window_bounds = array<i64: 1, 512>}, {transform_indices = @transform_5, window_bounds = array<i64: 8, 8, 128>}, {transform_indices = @transform_6, window_bounds = array<i64: 8, 128>}, {transform_indices = @transform_7, window_bounds = array<i64: 8, 128>}]} {
    %c0_i32 = arith.constant 0 : i32
    %0 = arith.cmpi eq, %arg1, %c0_i32 : i32
    %1 = arith.extui %0 : i1 to i32
    %c0_i32_0 = arith.constant 0 : i32
    %2 = arith.cmpi ne, %1, %c0_i32_0 : i32
    scf.if %2 {
      %cst_96 = arith.constant 0.000000e+00 : f32
      %379 = vector.broadcast %cst_96 : f32 to vector<8x128xf32>
      %c0_97 = arith.constant 0 : index
      %c0_98 = arith.constant 0 : index
      %380 = vector.load %arg8[%c0_97, %c0_98] : memref<8x128xf32, #tpu.memory_space<vmem>>, vector<8x128xf32>
      tpu.vector_store %arg8[%c0_97, %c0_98], %379 {strides = array<i32>} : memref<8x128xf32, #tpu.memory_space<vmem>>, vector<8x128xf32>,
      %cst_99 = arith.constant 0.000000e+00 : f32
      %381 = vector.broadcast %cst_99 : f32 to vector<8x128xf32>
      %c0_100 = arith.constant 0 : index
      %c0_101 = arith.constant 0 : index
      %382 = vector.load %arg9[%c0_100, %c0_101] : memref<8x128xf32, #tpu.memory_space<vmem>>, vector<8x128xf32>
      tpu.vector_store %arg9[%c0_100, %c0_101], %381 {strides = array<i32>} : memref<8x128xf32, #tpu.memory_space<vmem>>, vector<8x128xf32>,
    } else {
    }
    %c0 = arith.constant 0 : index
    %c0_1 = arith.constant 0 : index
    %c0_2 = arith.constant 0 : index
    %3 = vector.load %arg2[%c0, %c0_1, %c0_2] : memref<8x8x128xbf16, #tpu.memory_space<vmem>>, vector<8x8x128xbf16>
    %4 = vector.shape_cast %3 : vector<8x8x128xbf16> to vector<64x128xbf16>
    %c0_3 = arith.constant 0 : index
    %c0_4 = arith.constant 0 : index
    %5 = vector.load %arg4[%c0_3, %c0_4] : memref<128x512xbf16, #tpu.memory_space<vmem>>, vector<128x512xbf16>
    %cst = arith.constant dense<0.000000e+00> : vector<64x512xf32>
    %6 = tpu.matmul %4, %5, %cst {dimension_numbers = #tpu.dot_dimension_numbers<[1], [0], [0], [1], [0, 0, 1, 1], [], []>} : vector<64x128xbf16>, vector<128x512xbf16>, vector<64x512xf32> -> vector<64x512xf32>
    %c0_5 = arith.constant 0 : index
    %c0_6 = arith.constant 0 : index
    %7 = vector.load %arg6[%c0_5, %c0_6] : memref<1x512xf32, #tpu.memory_space<vmem>>, vector<1x512xf32>
    %8 = vector.broadcast %7 : vector<1x512xf32> to vector<64x512xf32>
    %9 = arith.addf %6, %8 : vector<64x512xf32>
    %10 = vector.shape_cast %9 : vector<64x512xf32> to vector<8x8x512xf32>
    %c0_7 = arith.constant 0 : index
    %c0_8 = arith.constant 0 : index
    %c0_9 = arith.constant 0 : index
    %11 = vector.load %arg10[%c0_7, %c0_8, %c0_9] : memref<8x8x512xf32, #tpu.memory_space<vmem>>, vector<8x8x512xf32>
    tpu.vector_store %arg10[%c0_7, %c0_8, %c0_9], %10 {strides = array<i32>} : memref<8x8x512xf32, #tpu.memory_space<vmem>>, vector<8x8x512xf32>,
    %c0_10 = arith.constant 0 : index
    %c0_11 = arith.constant 0 : index
    %12 = vector.load %arg5[%c0_10, %c0_11] : memref<128x512xbf16, #tpu.memory_space<vmem>>, vector<128x512xbf16>
    %c0_12 = arith.constant 0 : index
    %c0_13 = arith.constant 0 : index
    %13 = vector.load %arg3[%c0_12, %c0_13] : memref<8x1xi32, #tpu.memory_space<vmem>>, vector<8x1xi32>
    %c8_i32 = arith.constant 8 : i32
    %14 = arith.muli %arg1, %c8_i32 : i32
    %c0_14 = arith.constant 0 : index
    %c0_15 = arith.constant 0 : index
    %15 = vector.load %arg8[%c0_14, %c0_15] : memref<8x128xf32, #tpu.memory_space<vmem>>, vector<8x128xf32>
    %c0_16 = arith.constant 0 : index
    %c0_17 = arith.constant 0 : index
    %16 = vector.load %arg9[%c0_16, %c0_17] : memref<8x128xf32, #tpu.memory_space<vmem>>, vector<8x128xf32>
    %c0_i32_18 = arith.constant 0 : i32
    %17 = arith.index_cast %c0_i32_18 : i32 to index
    %c0_19 = arith.constant 0 : index
    %c0_20 = arith.constant 0 : index
    %18 = vector.load %arg10[%17, %c0_19, %c0_20] : memref<8x8x512xf32, #tpu.memory_space<vmem>>, vector<1x8x512xf32>
    %19 = vector.shape_cast %18 : vector<1x8x512xf32> to vector<8x512xf32>
    %20 = arith.truncf %15 : vector<8x128xf32> to vector<8x128xbf16>
    %cst_21 = arith.constant dense<0.000000e+00> : vector<8x512xf32>
    %21 = tpu.matmul %20, %12, %cst_21 {dimension_numbers = #tpu.dot_dimension_numbers<[1], [0], [0], [1], [0, 0, 1, 1], [], []>} : vector<8x128xbf16>, vector<128x512xbf16>, vector<8x512xf32> -> vector<8x512xf32>
    %22 = arith.addf %19, %21 : vector<8x512xf32>
    %23 = vector.extract_strided_slice %22 {offsets = [0, 0], sizes = [8, 128], strides = [1, 1]} : vector<8x512xf32> to vector<8x128xf32>
    %24 = arith.negf %23 : vector<8x128xf32>
    %25 = math.exp %24 : vector<8x128xf32>
    %cst_22 = arith.constant 1.000000e+00 : f32
    %26 = vector.broadcast %cst_22 : f32 to vector<8x128xf32>
    %27 = arith.addf %26, %25 : vector<8x128xf32>
    %28 = arith.divf %26, %27 : vector<8x128xf32>
    %29 = vector.extract_strided_slice %22 {offsets = [0, 128], sizes = [8, 128], strides = [1, 1]} : vector<8x512xf32> to vector<8x128xf32>
    %30 = arith.negf %29 : vector<8x128xf32>
    %31 = math.exp %30 : vector<8x128xf32>
    %cst_23 = arith.constant 1.000000e+00 : f32
    %32 = vector.broadcast %cst_23 : f32 to vector<8x128xf32>
    %33 = arith.addf %32, %31 : vector<8x128xf32>
    %34 = arith.divf %32, %33 : vector<8x128xf32>
    %35 = vector.extract_strided_slice %22 {offsets = [0, 256], sizes = [8, 128], strides = [1, 1]} : vector<8x512xf32> to vector<8x128xf32>
    %36 = math.tanh %35 : vector<8x128xf32>
    %37 = vector.extract_strided_slice %22 {offsets = [0, 384], sizes = [8, 128], strides = [1, 1]} : vector<8x512xf32> to vector<8x128xf32>
    %38 = arith.negf %37 : vector<8x128xf32>
    %39 = math.exp %38 : vector<8x128xf32>
    %cst_24 = arith.constant 1.000000e+00 : f32
    %40 = vector.broadcast %cst_24 : f32 to vector<8x128xf32>
    %41 = arith.addf %40, %39 : vector<8x128xf32>
    %42 = arith.divf %40, %41 : vector<8x128xf32>
    %43 = arith.mulf %34, %16 : vector<8x128xf32>
    %44 = arith.mulf %28, %36 : vector<8x128xf32>
    %45 = arith.addf %43, %44 : vector<8x128xf32>
    %46 = math.tanh %45 : vector<8x128xf32>
    %47 = arith.mulf %42, %46 : vector<8x128xf32>
    %48 = arith.addi %14, %c0_i32_18 : i32
    %49 = vector.broadcast %48 : i32 to vector<8x1xi32>
    %50 = arith.cmpi slt, %49, %13 : vector<8x1xi32>
    %51 = vector.shape_cast %50 : vector<8x1xi1> to vector<8x1xi1>
    %52 = vector.broadcast %51 : vector<8x1xi1> to vector<8x128xi1>
    %53 = arith.select %52, %47, %15 : vector<8x128xi1>, vector<8x128xf32>
    %54 = arith.select %52, %45, %16 : vector<8x128xi1>, vector<8x128xf32>
    %cst_25 = arith.constant 0.000000e+00 : f32
    %55 = vector.broadcast %cst_25 : f32 to vector<8x128xf32>
    %56 = arith.select %52, %47, %55 : vector<8x128xi1>, vector<8x128xf32>
    %57 = arith.truncf %56 : vector<8x128xf32> to vector<8x128xbf16>
    %58 = arith.index_cast %c0_i32_18 : i32 to index
    %c0_26 = arith.constant 0 : index
    %c0_27 = arith.constant 0 : index
    %59 = vector.load %arg7[%58, %c0_26, %c0_27] : memref<8x8x128xbf16, #tpu.memory_space<vmem>>, vector<1x8x128xbf16>
    %60 = vector.shape_cast %59 : vector<1x8x128xbf16> to vector<8x128xbf16>
    %61 = vector.shape_cast %57 : vector<8x128xbf16> to vector<1x8x128xbf16>
    tpu.vector_store %arg7[%58, %c0_26, %c0_27], %61 {strides = array<i32>} : memref<8x8x128xbf16, #tpu.memory_space<vmem>>, vector<1x8x128xbf16>,
    %c1_i32 = arith.constant 1 : i32
    %62 = arith.index_cast %c1_i32 : i32 to index
    %c0_28 = arith.constant 0 : index
    %c0_29 = arith.constant 0 : index
    %63 = vector.load %arg10[%62, %c0_28, %c0_29] : memref<8x8x512xf32, #tpu.memory_space<vmem>>, vector<1x8x512xf32>
    %64 = vector.shape_cast %63 : vector<1x8x512xf32> to vector<8x512xf32>
    %65 = arith.truncf %53 : vector<8x128xf32> to vector<8x128xbf16>
    %cst_30 = arith.constant dense<0.000000e+00> : vector<8x512xf32>
    %66 = tpu.matmul %65, %12, %cst_30 {dimension_numbers = #tpu.dot_dimension_numbers<[1], [0], [0], [1], [0, 0, 1, 1], [], []>} : vector<8x128xbf16>, vector<128x512xbf16>, vector<8x512xf32> -> vector<8x512xf32>
    %67 = arith.addf %64, %66 : vector<8x512xf32>
    %68 = vector.extract_strided_slice %67 {offsets = [0, 0], sizes = [8, 128], strides = [1, 1]} : vector<8x512xf32> to vector<8x128xf32>
    %69 = arith.negf %68 : vector<8x128xf32>
    %70 = math.exp %69 : vector<8x128xf32>
    %cst_31 = arith.constant 1.000000e+00 : f32
    %71 = vector.broadcast %cst_31 : f32 to vector<8x128xf32>
    %72 = arith.addf %71, %70 : vector<8x128xf32>
    %73 = arith.divf %71, %72 : vector<8x128xf32>
    %74 = vector.extract_strided_slice %67 {offsets = [0, 128], sizes = [8, 128], strides = [1, 1]} : vector<8x512xf32> to vector<8x128xf32>
    %75 = arith.negf %74 : vector<8x128xf32>
    %76 = math.exp %75 : vector<8x128xf32>
    %cst_32 = arith.constant 1.000000e+00 : f32
    %77 = vector.broadcast %cst_32 : f32 to vector<8x128xf32>
    %78 = arith.addf %77, %76 : vector<8x128xf32>
    %79 = arith.divf %77, %78 : vector<8x128xf32>
    %80 = vector.extract_strided_slice %67 {offsets = [0, 256], sizes = [8, 128], strides = [1, 1]} : vector<8x512xf32> to vector<8x128xf32>
    %81 = math.tanh %80 : vector<8x128xf32>
    %82 = vector.extract_strided_slice %67 {offsets = [0, 384], sizes = [8, 128], strides = [1, 1]} : vector<8x512xf32> to vector<8x128xf32>
    %83 = arith.negf %82 : vector<8x128xf32>
    %84 = math.exp %83 : vector<8x128xf32>
    %cst_33 = arith.constant 1.000000e+00 : f32
    %85 = vector.broadcast %cst_33 : f32 to vector<8x128xf32>
    %86 = arith.addf %85, %84 : vector<8x128xf32>
    %87 = arith.divf %85, %86 : vector<8x128xf32>
    %88 = arith.mulf %79, %54 : vector<8x128xf32>
    %89 = arith.mulf %73, %81 : vector<8x128xf32>
    %90 = arith.addf %88, %89 : vector<8x128xf32>
    %91 = math.tanh %90 : vector<8x128xf32>
    %92 = arith.mulf %87, %91 : vector<8x128xf32>
    %93 = arith.addi %14, %c1_i32 : i32
    %94 = vector.broadcast %93 : i32 to vector<8x1xi32>
    %95 = arith.cmpi slt, %94, %13 : vector<8x1xi32>
    %96 = vector.shape_cast %95 : vector<8x1xi1> to vector<8x1xi1>
    %97 = vector.broadcast %96 : vector<8x1xi1> to vector<8x128xi1>
    %98 = arith.select %97, %92, %53 : vector<8x128xi1>, vector<8x128xf32>
    %99 = arith.select %97, %90, %54 : vector<8x128xi1>, vector<8x128xf32>
    %cst_34 = arith.constant 0.000000e+00 : f32
    %100 = vector.broadcast %cst_34 : f32 to vector<8x128xf32>
    %101 = arith.select %97, %92, %100 : vector<8x128xi1>, vector<8x128xf32>
    %102 = arith.truncf %101 : vector<8x128xf32> to vector<8x128xbf16>
    %103 = arith.index_cast %c1_i32 : i32 to index
    %c0_35 = arith.constant 0 : index
    %c0_36 = arith.constant 0 : index
    %104 = vector.load %arg7[%103, %c0_35, %c0_36] : memref<8x8x128xbf16, #tpu.memory_space<vmem>>, vector<1x8x128xbf16>
    %105 = vector.shape_cast %104 : vector<1x8x128xbf16> to vector<8x128xbf16>
    %106 = vector.shape_cast %102 : vector<8x128xbf16> to vector<1x8x128xbf16>
    tpu.vector_store %arg7[%103, %c0_35, %c0_36], %106 {strides = array<i32>} : memref<8x8x128xbf16, #tpu.memory_space<vmem>>, vector<1x8x128xbf16>,
    %c2_i32 = arith.constant 2 : i32
    %107 = arith.index_cast %c2_i32 : i32 to index
    %c0_37 = arith.constant 0 : index
    %c0_38 = arith.constant 0 : index
    %108 = vector.load %arg10[%107, %c0_37, %c0_38] : memref<8x8x512xf32, #tpu.memory_space<vmem>>, vector<1x8x512xf32>
    %109 = vector.shape_cast %108 : vector<1x8x512xf32> to vector<8x512xf32>
    %110 = arith.truncf %98 : vector<8x128xf32> to vector<8x128xbf16>
    %cst_39 = arith.constant dense<0.000000e+00> : vector<8x512xf32>
    %111 = tpu.matmul %110, %12, %cst_39 {dimension_numbers = #tpu.dot_dimension_numbers<[1], [0], [0], [1], [0, 0, 1, 1], [], []>} : vector<8x128xbf16>, vector<128x512xbf16>, vector<8x512xf32> -> vector<8x512xf32>
    %112 = arith.addf %109, %111 : vector<8x512xf32>
    %113 = vector.extract_strided_slice %112 {offsets = [0, 0], sizes = [8, 128], strides = [1, 1]} : vector<8x512xf32> to vector<8x128xf32>
    %114 = arith.negf %113 : vector<8x128xf32>
    %115 = math.exp %114 : vector<8x128xf32>
    %cst_40 = arith.constant 1.000000e+00 : f32
    %116 = vector.broadcast %cst_40 : f32 to vector<8x128xf32>
    %117 = arith.addf %116, %115 : vector<8x128xf32>
    %118 = arith.divf %116, %117 : vector<8x128xf32>
    %119 = vector.extract_strided_slice %112 {offsets = [0, 128], sizes = [8, 128], strides = [1, 1]} : vector<8x512xf32> to vector<8x128xf32>
    %120 = arith.negf %119 : vector<8x128xf32>
    %121 = math.exp %120 : vector<8x128xf32>
    %cst_41 = arith.constant 1.000000e+00 : f32
    %122 = vector.broadcast %cst_41 : f32 to vector<8x128xf32>
    %123 = arith.addf %122, %121 : vector<8x128xf32>
    %124 = arith.divf %122, %123 : vector<8x128xf32>
    %125 = vector.extract_strided_slice %112 {offsets = [0, 256], sizes = [8, 128], strides = [1, 1]} : vector<8x512xf32> to vector<8x128xf32>
    %126 = math.tanh %125 : vector<8x128xf32>
    %127 = vector.extract_strided_slice %112 {offsets = [0, 384], sizes = [8, 128], strides = [1, 1]} : vector<8x512xf32> to vector<8x128xf32>
    %128 = arith.negf %127 : vector<8x128xf32>
    %129 = math.exp %128 : vector<8x128xf32>
    %cst_42 = arith.constant 1.000000e+00 : f32
    %130 = vector.broadcast %cst_42 : f32 to vector<8x128xf32>
    %131 = arith.addf %130, %129 : vector<8x128xf32>
    %132 = arith.divf %130, %131 : vector<8x128xf32>
    %133 = arith.mulf %124, %99 : vector<8x128xf32>
    %134 = arith.mulf %118, %126 : vector<8x128xf32>
    %135 = arith.addf %133, %134 : vector<8x128xf32>
    %136 = math.tanh %135 : vector<8x128xf32>
    %137 = arith.mulf %132, %136 : vector<8x128xf32>
    %138 = arith.addi %14, %c2_i32 : i32
    %139 = vector.broadcast %138 : i32 to vector<8x1xi32>
    %140 = arith.cmpi slt, %139, %13 : vector<8x1xi32>
    %141 = vector.shape_cast %140 : vector<8x1xi1> to vector<8x1xi1>
    %142 = vector.broadcast %141 : vector<8x1xi1> to vector<8x128xi1>
    %143 = arith.select %142, %137, %98 : vector<8x128xi1>, vector<8x128xf32>
    %144 = arith.select %142, %135, %99 : vector<8x128xi1>, vector<8x128xf32>
    %cst_43 = arith.constant 0.000000e+00 : f32
    %145 = vector.broadcast %cst_43 : f32 to vector<8x128xf32>
    %146 = arith.select %142, %137, %145 : vector<8x128xi1>, vector<8x128xf32>
    %147 = arith.truncf %146 : vector<8x128xf32> to vector<8x128xbf16>
    %148 = arith.index_cast %c2_i32 : i32 to index
    %c0_44 = arith.constant 0 : index
    %c0_45 = arith.constant 0 : index
    %149 = vector.load %arg7[%148, %c0_44, %c0_45] : memref<8x8x128xbf16, #tpu.memory_space<vmem>>, vector<1x8x128xbf16>
    %150 = vector.shape_cast %149 : vector<1x8x128xbf16> to vector<8x128xbf16>
    %151 = vector.shape_cast %147 : vector<8x128xbf16> to vector<1x8x128xbf16>
    tpu.vector_store %arg7[%148, %c0_44, %c0_45], %151 {strides = array<i32>} : memref<8x8x128xbf16, #tpu.memory_space<vmem>>, vector<1x8x128xbf16>,
    %c3_i32 = arith.constant 3 : i32
    %152 = arith.index_cast %c3_i32 : i32 to index
    %c0_46 = arith.constant 0 : index
    %c0_47 = arith.constant 0 : index
    %153 = vector.load %arg10[%152, %c0_46, %c0_47] : memref<8x8x512xf32, #tpu.memory_space<vmem>>, vector<1x8x512xf32>
    %154 = vector.shape_cast %153 : vector<1x8x512xf32> to vector<8x512xf32>
    %155 = arith.truncf %143 : vector<8x128xf32> to vector<8x128xbf16>
    %cst_48 = arith.constant dense<0.000000e+00> : vector<8x512xf32>
    %156 = tpu.matmul %155, %12, %cst_48 {dimension_numbers = #tpu.dot_dimension_numbers<[1], [0], [0], [1], [0, 0, 1, 1], [], []>} : vector<8x128xbf16>, vector<128x512xbf16>, vector<8x512xf32> -> vector<8x512xf32>
    %157 = arith.addf %154, %156 : vector<8x512xf32>
    %158 = vector.extract_strided_slice %157 {offsets = [0, 0], sizes = [8, 128], strides = [1, 1]} : vector<8x512xf32> to vector<8x128xf32>
    %159 = arith.negf %158 : vector<8x128xf32>
    %160 = math.exp %159 : vector<8x128xf32>
    %cst_49 = arith.constant 1.000000e+00 : f32
    %161 = vector.broadcast %cst_49 : f32 to vector<8x128xf32>
    %162 = arith.addf %161, %160 : vector<8x128xf32>
    %163 = arith.divf %161, %162 : vector<8x128xf32>
    %164 = vector.extract_strided_slice %157 {offsets = [0, 128], sizes = [8, 128], strides = [1, 1]} : vector<8x512xf32> to vector<8x128xf32>
    %165 = arith.negf %164 : vector<8x128xf32>
    %166 = math.exp %165 : vector<8x128xf32>
    %cst_50 = arith.constant 1.000000e+00 : f32
    %167 = vector.broadcast %cst_50 : f32 to vector<8x128xf32>
    %168 = arith.addf %167, %166 : vector<8x128xf32>
    %169 = arith.divf %167, %168 : vector<8x128xf32>
    %170 = vector.extract_strided_slice %157 {offsets = [0, 256], sizes = [8, 128], strides = [1, 1]} : vector<8x512xf32> to vector<8x128xf32>
    %171 = math.tanh %170 : vector<8x128xf32>
    %172 = vector.extract_strided_slice %157 {offsets = [0, 384], sizes = [8, 128], strides = [1, 1]} : vector<8x512xf32> to vector<8x128xf32>
    %173 = arith.negf %172 : vector<8x128xf32>
    %174 = math.exp %173 : vector<8x128xf32>
    %cst_51 = arith.constant 1.000000e+00 : f32
    %175 = vector.broadcast %cst_51 : f32 to vector<8x128xf32>
    %176 = arith.addf %175, %174 : vector<8x128xf32>
    %177 = arith.divf %175, %176 : vector<8x128xf32>
    %178 = arith.mulf %169, %144 : vector<8x128xf32>
    %179 = arith.mulf %163, %171 : vector<8x128xf32>
    %180 = arith.addf %178, %179 : vector<8x128xf32>
    %181 = math.tanh %180 : vector<8x128xf32>
    %182 = arith.mulf %177, %181 : vector<8x128xf32>
    %183 = arith.addi %14, %c3_i32 : i32
    %184 = vector.broadcast %183 : i32 to vector<8x1xi32>
    %185 = arith.cmpi slt, %184, %13 : vector<8x1xi32>
    %186 = vector.shape_cast %185 : vector<8x1xi1> to vector<8x1xi1>
    %187 = vector.broadcast %186 : vector<8x1xi1> to vector<8x128xi1>
    %188 = arith.select %187, %182, %143 : vector<8x128xi1>, vector<8x128xf32>
    %189 = arith.select %187, %180, %144 : vector<8x128xi1>, vector<8x128xf32>
    %cst_52 = arith.constant 0.000000e+00 : f32
    %190 = vector.broadcast %cst_52 : f32 to vector<8x128xf32>
    %191 = arith.select %187, %182, %190 : vector<8x128xi1>, vector<8x128xf32>
    %192 = arith.truncf %191 : vector<8x128xf32> to vector<8x128xbf16>
    %193 = arith.index_cast %c3_i32 : i32 to index
    %c0_53 = arith.constant 0 : index
    %c0_54 = arith.constant 0 : index
    %194 = vector.load %arg7[%193, %c0_53, %c0_54] : memref<8x8x128xbf16, #tpu.memory_space<vmem>>, vector<1x8x128xbf16>
    %195 = vector.shape_cast %194 : vector<1x8x128xbf16> to vector<8x128xbf16>
    %196 = vector.shape_cast %192 : vector<8x128xbf16> to vector<1x8x128xbf16>
    tpu.vector_store %arg7[%193, %c0_53, %c0_54], %196 {strides = array<i32>} : memref<8x8x128xbf16, #tpu.memory_space<vmem>>, vector<1x8x128xbf16>,
    %c4_i32 = arith.constant 4 : i32
    %197 = arith.index_cast %c4_i32 : i32 to index
    %c0_55 = arith.constant 0 : index
    %c0_56 = arith.constant 0 : index
    %198 = vector.load %arg10[%197, %c0_55, %c0_56] : memref<8x8x512xf32, #tpu.memory_space<vmem>>, vector<1x8x512xf32>
    %199 = vector.shape_cast %198 : vector<1x8x512xf32> to vector<8x512xf32>
    %200 = arith.truncf %188 : vector<8x128xf32> to vector<8x128xbf16>
    %cst_57 = arith.constant dense<0.000000e+00> : vector<8x512xf32>
    %201 = tpu.matmul %200, %12, %cst_57 {dimension_numbers = #tpu.dot_dimension_numbers<[1], [0], [0], [1], [0, 0, 1, 1], [], []>} : vector<8x128xbf16>, vector<128x512xbf16>, vector<8x512xf32> -> vector<8x512xf32>
    %202 = arith.addf %199, %201 : vector<8x512xf32>
    %203 = vector.extract_strided_slice %202 {offsets = [0, 0], sizes = [8, 128], strides = [1, 1]} : vector<8x512xf32> to vector<8x128xf32>
    %204 = arith.negf %203 : vector<8x128xf32>
    %205 = math.exp %204 : vector<8x128xf32>
    %cst_58 = arith.constant 1.000000e+00 : f32
    %206 = vector.broadcast %cst_58 : f32 to vector<8x128xf32>
    %207 = arith.addf %206, %205 : vector<8x128xf32>
    %208 = arith.divf %206, %207 : vector<8x128xf32>
    %209 = vector.extract_strided_slice %202 {offsets = [0, 128], sizes = [8, 128], strides = [1, 1]} : vector<8x512xf32> to vector<8x128xf32>
    %210 = arith.negf %209 : vector<8x128xf32>
    %211 = math.exp %210 : vector<8x128xf32>
    %cst_59 = arith.constant 1.000000e+00 : f32
    %212 = vector.broadcast %cst_59 : f32 to vector<8x128xf32>
    %213 = arith.addf %212, %211 : vector<8x128xf32>
    %214 = arith.divf %212, %213 : vector<8x128xf32>
    %215 = vector.extract_strided_slice %202 {offsets = [0, 256], sizes = [8, 128], strides = [1, 1]} : vector<8x512xf32> to vector<8x128xf32>
    %216 = math.tanh %215 : vector<8x128xf32>
    %217 = vector.extract_strided_slice %202 {offsets = [0, 384], sizes = [8, 128], strides = [1, 1]} : vector<8x512xf32> to vector<8x128xf32>
    %218 = arith.negf %217 : vector<8x128xf32>
    %219 = math.exp %218 : vector<8x128xf32>
    %cst_60 = arith.constant 1.000000e+00 : f32
    %220 = vector.broadcast %cst_60 : f32 to vector<8x128xf32>
    %221 = arith.addf %220, %219 : vector<8x128xf32>
    %222 = arith.divf %220, %221 : vector<8x128xf32>
    %223 = arith.mulf %214, %189 : vector<8x128xf32>
    %224 = arith.mulf %208, %216 : vector<8x128xf32>
    %225 = arith.addf %223, %224 : vector<8x128xf32>
    %226 = math.tanh %225 : vector<8x128xf32>
    %227 = arith.mulf %222, %226 : vector<8x128xf32>
    %228 = arith.addi %14, %c4_i32 : i32
    %229 = vector.broadcast %228 : i32 to vector<8x1xi32>
    %230 = arith.cmpi slt, %229, %13 : vector<8x1xi32>
    %231 = vector.shape_cast %230 : vector<8x1xi1> to vector<8x1xi1>
    %232 = vector.broadcast %231 : vector<8x1xi1> to vector<8x128xi1>
    %233 = arith.select %232, %227, %188 : vector<8x128xi1>, vector<8x128xf32>
    %234 = arith.select %232, %225, %189 : vector<8x128xi1>, vector<8x128xf32>
    %cst_61 = arith.constant 0.000000e+00 : f32
    %235 = vector.broadcast %cst_61 : f32 to vector<8x128xf32>
    %236 = arith.select %232, %227, %235 : vector<8x128xi1>, vector<8x128xf32>
    %237 = arith.truncf %236 : vector<8x128xf32> to vector<8x128xbf16>
    %238 = arith.index_cast %c4_i32 : i32 to index
    %c0_62 = arith.constant 0 : index
    %c0_63 = arith.constant 0 : index
    %239 = vector.load %arg7[%238, %c0_62, %c0_63] : memref<8x8x128xbf16, #tpu.memory_space<vmem>>, vector<1x8x128xbf16>
    %240 = vector.shape_cast %239 : vector<1x8x128xbf16> to vector<8x128xbf16>
    %241 = vector.shape_cast %237 : vector<8x128xbf16> to vector<1x8x128xbf16>
    tpu.vector_store %arg7[%238, %c0_62, %c0_63], %241 {strides = array<i32>} : memref<8x8x128xbf16, #tpu.memory_space<vmem>>, vector<1x8x128xbf16>,
    %c5_i32 = arith.constant 5 : i32
    %242 = arith.index_cast %c5_i32 : i32 to index
    %c0_64 = arith.constant 0 : index
    %c0_65 = arith.constant 0 : index
    %243 = vector.load %arg10[%242, %c0_64, %c0_65] : memref<8x8x512xf32, #tpu.memory_space<vmem>>, vector<1x8x512xf32>
    %244 = vector.shape_cast %243 : vector<1x8x512xf32> to vector<8x512xf32>
    %245 = arith.truncf %233 : vector<8x128xf32> to vector<8x128xbf16>
    %cst_66 = arith.constant dense<0.000000e+00> : vector<8x512xf32>
    %246 = tpu.matmul %245, %12, %cst_66 {dimension_numbers = #tpu.dot_dimension_numbers<[1], [0], [0], [1], [0, 0, 1, 1], [], []>} : vector<8x128xbf16>, vector<128x512xbf16>, vector<8x512xf32> -> vector<8x512xf32>
    %247 = arith.addf %244, %246 : vector<8x512xf32>
    %248 = vector.extract_strided_slice %247 {offsets = [0, 0], sizes = [8, 128], strides = [1, 1]} : vector<8x512xf32> to vector<8x128xf32>
    %249 = arith.negf %248 : vector<8x128xf32>
    %250 = math.exp %249 : vector<8x128xf32>
    %cst_67 = arith.constant 1.000000e+00 : f32
    %251 = vector.broadcast %cst_67 : f32 to vector<8x128xf32>
    %252 = arith.addf %251, %250 : vector<8x128xf32>
    %253 = arith.divf %251, %252 : vector<8x128xf32>
    %254 = vector.extract_strided_slice %247 {offsets = [0, 128], sizes = [8, 128], strides = [1, 1]} : vector<8x512xf32> to vector<8x128xf32>
    %255 = arith.negf %254 : vector<8x128xf32>
    %256 = math.exp %255 : vector<8x128xf32>
    %cst_68 = arith.constant 1.000000e+00 : f32
    %257 = vector.broadcast %cst_68 : f32 to vector<8x128xf32>
    %258 = arith.addf %257, %256 : vector<8x128xf32>
    %259 = arith.divf %257, %258 : vector<8x128xf32>
    %260 = vector.extract_strided_slice %247 {offsets = [0, 256], sizes = [8, 128], strides = [1, 1]} : vector<8x512xf32> to vector<8x128xf32>
    %261 = math.tanh %260 : vector<8x128xf32>
    %262 = vector.extract_strided_slice %247 {offsets = [0, 384], sizes = [8, 128], strides = [1, 1]} : vector<8x512xf32> to vector<8x128xf32>
    %263 = arith.negf %262 : vector<8x128xf32>
    %264 = math.exp %263 : vector<8x128xf32>
    %cst_69 = arith.constant 1.000000e+00 : f32
    %265 = vector.broadcast %cst_69 : f32 to vector<8x128xf32>
    %266 = arith.addf %265, %264 : vector<8x128xf32>
    %267 = arith.divf %265, %266 : vector<8x128xf32>
    %268 = arith.mulf %259, %234 : vector<8x128xf32>
    %269 = arith.mulf %253, %261 : vector<8x128xf32>
    %270 = arith.addf %268, %269 : vector<8x128xf32>
    %271 = math.tanh %270 : vector<8x128xf32>
    %272 = arith.mulf %267, %271 : vector<8x128xf32>
    %273 = arith.addi %14, %c5_i32 : i32
    %274 = vector.broadcast %273 : i32 to vector<8x1xi32>
    %275 = arith.cmpi slt, %274, %13 : vector<8x1xi32>
    %276 = vector.shape_cast %275 : vector<8x1xi1> to vector<8x1xi1>
    %277 = vector.broadcast %276 : vector<8x1xi1> to vector<8x128xi1>
    %278 = arith.select %277, %272, %233 : vector<8x128xi1>, vector<8x128xf32>
    %279 = arith.select %277, %270, %234 : vector<8x128xi1>, vector<8x128xf32>
    %cst_70 = arith.constant 0.000000e+00 : f32
    %280 = vector.broadcast %cst_70 : f32 to vector<8x128xf32>
    %281 = arith.select %277, %272, %280 : vector<8x128xi1>, vector<8x128xf32>
    %282 = arith.truncf %281 : vector<8x128xf32> to vector<8x128xbf16>
    %283 = arith.index_cast %c5_i32 : i32 to index
    %c0_71 = arith.constant 0 : index
    %c0_72 = arith.constant 0 : index
    %284 = vector.load %arg7[%283, %c0_71, %c0_72] : memref<8x8x128xbf16, #tpu.memory_space<vmem>>, vector<1x8x128xbf16>
    %285 = vector.shape_cast %284 : vector<1x8x128xbf16> to vector<8x128xbf16>
    %286 = vector.shape_cast %282 : vector<8x128xbf16> to vector<1x8x128xbf16>
    tpu.vector_store %arg7[%283, %c0_71, %c0_72], %286 {strides = array<i32>} : memref<8x8x128xbf16, #tpu.memory_space<vmem>>, vector<1x8x128xbf16>,
    %c6_i32 = arith.constant 6 : i32
    %287 = arith.index_cast %c6_i32 : i32 to index
    %c0_73 = arith.constant 0 : index
    %c0_74 = arith.constant 0 : index
    %288 = vector.load %arg10[%287, %c0_73, %c0_74] : memref<8x8x512xf32, #tpu.memory_space<vmem>>, vector<1x8x512xf32>
    %289 = vector.shape_cast %288 : vector<1x8x512xf32> to vector<8x512xf32>
    %290 = arith.truncf %278 : vector<8x128xf32> to vector<8x128xbf16>
    %cst_75 = arith.constant dense<0.000000e+00> : vector<8x512xf32>
    %291 = tpu.matmul %290, %12, %cst_75 {dimension_numbers = #tpu.dot_dimension_numbers<[1], [0], [0], [1], [0, 0, 1, 1], [], []>} : vector<8x128xbf16>, vector<128x512xbf16>, vector<8x512xf32> -> vector<8x512xf32>
    %292 = arith.addf %289, %291 : vector<8x512xf32>
    %293 = vector.extract_strided_slice %292 {offsets = [0, 0], sizes = [8, 128], strides = [1, 1]} : vector<8x512xf32> to vector<8x128xf32>
    %294 = arith.negf %293 : vector<8x128xf32>
    %295 = math.exp %294 : vector<8x128xf32>
    %cst_76 = arith.constant 1.000000e+00 : f32
    %296 = vector.broadcast %cst_76 : f32 to vector<8x128xf32>
    %297 = arith.addf %296, %295 : vector<8x128xf32>
    %298 = arith.divf %296, %297 : vector<8x128xf32>
    %299 = vector.extract_strided_slice %292 {offsets = [0, 128], sizes = [8, 128], strides = [1, 1]} : vector<8x512xf32> to vector<8x128xf32>
    %300 = arith.negf %299 : vector<8x128xf32>
    %301 = math.exp %300 : vector<8x128xf32>
    %cst_77 = arith.constant 1.000000e+00 : f32
    %302 = vector.broadcast %cst_77 : f32 to vector<8x128xf32>
    %303 = arith.addf %302, %301 : vector<8x128xf32>
    %304 = arith.divf %302, %303 : vector<8x128xf32>
    %305 = vector.extract_strided_slice %292 {offsets = [0, 256], sizes = [8, 128], strides = [1, 1]} : vector<8x512xf32> to vector<8x128xf32>
    %306 = math.tanh %305 : vector<8x128xf32>
    %307 = vector.extract_strided_slice %292 {offsets = [0, 384], sizes = [8, 128], strides = [1, 1]} : vector<8x512xf32> to vector<8x128xf32>
    %308 = arith.negf %307 : vector<8x128xf32>
    %309 = math.exp %308 : vector<8x128xf32>
    %cst_78 = arith.constant 1.000000e+00 : f32
    %310 = vector.broadcast %cst_78 : f32 to vector<8x128xf32>
    %311 = arith.addf %310, %309 : vector<8x128xf32>
    %312 = arith.divf %310, %311 : vector<8x128xf32>
    %313 = arith.mulf %304, %279 : vector<8x128xf32>
    %314 = arith.mulf %298, %306 : vector<8x128xf32>
    %315 = arith.addf %313, %314 : vector<8x128xf32>
    %316 = math.tanh %315 : vector<8x128xf32>
    %317 = arith.mulf %312, %316 : vector<8x128xf32>
    %318 = arith.addi %14, %c6_i32 : i32
    %319 = vector.broadcast %318 : i32 to vector<8x1xi32>
    %320 = arith.cmpi slt, %319, %13 : vector<8x1xi32>
    %321 = vector.shape_cast %320 : vector<8x1xi1> to vector<8x1xi1>
    %322 = vector.broadcast %321 : vector<8x1xi1> to vector<8x128xi1>
    %323 = arith.select %322, %317, %278 : vector<8x128xi1>, vector<8x128xf32>
    %324 = arith.select %322, %315, %279 : vector<8x128xi1>, vector<8x128xf32>
    %cst_79 = arith.constant 0.000000e+00 : f32
    %325 = vector.broadcast %cst_79 : f32 to vector<8x128xf32>
    %326 = arith.select %322, %317, %325 : vector<8x128xi1>, vector<8x128xf32>
    %327 = arith.truncf %326 : vector<8x128xf32> to vector<8x128xbf16>
    %328 = arith.index_cast %c6_i32 : i32 to index
    %c0_80 = arith.constant 0 : index
    %c0_81 = arith.constant 0 : index
    %329 = vector.load %arg7[%328, %c0_80, %c0_81] : memref<8x8x128xbf16, #tpu.memory_space<vmem>>, vector<1x8x128xbf16>
    %330 = vector.shape_cast %329 : vector<1x8x128xbf16> to vector<8x128xbf16>
    %331 = vector.shape_cast %327 : vector<8x128xbf16> to vector<1x8x128xbf16>
    tpu.vector_store %arg7[%328, %c0_80, %c0_81], %331 {strides = array<i32>} : memref<8x8x128xbf16, #tpu.memory_space<vmem>>, vector<1x8x128xbf16>,
    %c7_i32 = arith.constant 7 : i32
    %332 = arith.index_cast %c7_i32 : i32 to index
    %c0_82 = arith.constant 0 : index
    %c0_83 = arith.constant 0 : index
    %333 = vector.load %arg10[%332, %c0_82, %c0_83] : memref<8x8x512xf32, #tpu.memory_space<vmem>>, vector<1x8x512xf32>
    %334 = vector.shape_cast %333 : vector<1x8x512xf32> to vector<8x512xf32>
    %335 = arith.truncf %323 : vector<8x128xf32> to vector<8x128xbf16>
    %cst_84 = arith.constant dense<0.000000e+00> : vector<8x512xf32>
    %336 = tpu.matmul %335, %12, %cst_84 {dimension_numbers = #tpu.dot_dimension_numbers<[1], [0], [0], [1], [0, 0, 1, 1], [], []>} : vector<8x128xbf16>, vector<128x512xbf16>, vector<8x512xf32> -> vector<8x512xf32>
    %337 = arith.addf %334, %336 : vector<8x512xf32>
    %338 = vector.extract_strided_slice %337 {offsets = [0, 0], sizes = [8, 128], strides = [1, 1]} : vector<8x512xf32> to vector<8x128xf32>
    %339 = arith.negf %338 : vector<8x128xf32>
    %340 = math.exp %339 : vector<8x128xf32>
    %cst_85 = arith.constant 1.000000e+00 : f32
    %341 = vector.broadcast %cst_85 : f32 to vector<8x128xf32>
    %342 = arith.addf %341, %340 : vector<8x128xf32>
    %343 = arith.divf %341, %342 : vector<8x128xf32>
    %344 = vector.extract_strided_slice %337 {offsets = [0, 128], sizes = [8, 128], strides = [1, 1]} : vector<8x512xf32> to vector<8x128xf32>
    %345 = arith.negf %344 : vector<8x128xf32>
    %346 = math.exp %345 : vector<8x128xf32>
    %cst_86 = arith.constant 1.000000e+00 : f32
    %347 = vector.broadcast %cst_86 : f32 to vector<8x128xf32>
    %348 = arith.addf %347, %346 : vector<8x128xf32>
    %349 = arith.divf %347, %348 : vector<8x128xf32>
    %350 = vector.extract_strided_slice %337 {offsets = [0, 256], sizes = [8, 128], strides = [1, 1]} : vector<8x512xf32> to vector<8x128xf32>
    %351 = math.tanh %350 : vector<8x128xf32>
    %352 = vector.extract_strided_slice %337 {offsets = [0, 384], sizes = [8, 128], strides = [1, 1]} : vector<8x512xf32> to vector<8x128xf32>
    %353 = arith.negf %352 : vector<8x128xf32>
    %354 = math.exp %353 : vector<8x128xf32>
    %cst_87 = arith.constant 1.000000e+00 : f32
    %355 = vector.broadcast %cst_87 : f32 to vector<8x128xf32>
    %356 = arith.addf %355, %354 : vector<8x128xf32>
    %357 = arith.divf %355, %356 : vector<8x128xf32>
    %358 = arith.mulf %349, %324 : vector<8x128xf32>
    %359 = arith.mulf %343, %351 : vector<8x128xf32>
    %360 = arith.addf %358, %359 : vector<8x128xf32>
    %361 = math.tanh %360 : vector<8x128xf32>
    %362 = arith.mulf %357, %361 : vector<8x128xf32>
    %363 = arith.addi %14, %c7_i32 : i32
    %364 = vector.broadcast %363 : i32 to vector<8x1xi32>
    %365 = arith.cmpi slt, %364, %13 : vector<8x1xi32>
    %366 = vector.shape_cast %365 : vector<8x1xi1> to vector<8x1xi1>
    %367 = vector.broadcast %366 : vector<8x1xi1> to vector<8x128xi1>
    %368 = arith.select %367, %362, %323 : vector<8x128xi1>, vector<8x128xf32>
    %369 = arith.select %367, %360, %324 : vector<8x128xi1>, vector<8x128xf32>
    %cst_88 = arith.constant 0.000000e+00 : f32
    %370 = vector.broadcast %cst_88 : f32 to vector<8x128xf32>
    %371 = arith.select %367, %362, %370 : vector<8x128xi1>, vector<8x128xf32>
    %372 = arith.truncf %371 : vector<8x128xf32> to vector<8x128xbf16>
    %373 = arith.index_cast %c7_i32 : i32 to index
    %c0_89 = arith.constant 0 : index
    %c0_90 = arith.constant 0 : index
    %374 = vector.load %arg7[%373, %c0_89, %c0_90] : memref<8x8x128xbf16, #tpu.memory_space<vmem>>, vector<1x8x128xbf16>
    %375 = vector.shape_cast %374 : vector<1x8x128xbf16> to vector<8x128xbf16>
    %376 = vector.shape_cast %372 : vector<8x128xbf16> to vector<1x8x128xbf16>
    tpu.vector_store %arg7[%373, %c0_89, %c0_90], %376 {strides = array<i32>} : memref<8x8x128xbf16, #tpu.memory_space<vmem>>, vector<1x8x128xbf16>,
    %c8_i32_91 = arith.constant 8 : i32
    %c0_92 = arith.constant 0 : index
    %c0_93 = arith.constant 0 : index
    %377 = vector.load %arg8[%c0_92, %c0_93] : memref<8x128xf32, #tpu.memory_space<vmem>>, vector<8x128xf32>
    tpu.vector_store %arg8[%c0_92, %c0_93], %368 {strides = array<i32>} : memref<8x128xf32, #tpu.memory_space<vmem>>, vector<8x128xf32>,
    %c0_94 = arith.constant 0 : index
    %c0_95 = arith.constant 0 : index
    %378 = vector.load %arg9[%c0_94, %c0_95] : memref<8x128xf32, #tpu.memory_space<vmem>>, vector<8x128xf32>
    tpu.vector_store %arg9[%c0_94, %c0_95], %369 {strides = array<i32>} : memref<8x128xf32, #tpu.memory_space<vmem>>, vector<8x128xf32>,
    return
  }
  func.func @transform_0(%arg0: i32, %arg1: i32) -> (i32, i32, i32) {
    %c0_i32 = arith.constant 0 : i32
    %c0_i32_0 = arith.constant 0 : i32
    return %arg1, %arg0, %c0_i32 : i32, i32, i32
  }
  func.func @transform_1(%arg0: i32, %arg1: i32) -> (i32, i32) {
    %c0_i32 = arith.constant 0 : i32
    %c0_i32_0 = arith.constant 0 : i32
    return %arg0, %c0_i32 : i32, i32
  }
  func.func @transform_2(%arg0: i32, %arg1: i32) -> (i32, i32) {
    %c0_i32 = arith.constant 0 : i32
    %c0_i32_0 = arith.constant 0 : i32
    %c0_i32_1 = arith.constant 0 : i32
    return %c0_i32, %c0_i32_0 : i32, i32
  }
  func.func @transform_3(%arg0: i32, %arg1: i32) -> (i32, i32) {
    %c0_i32 = arith.constant 0 : i32
    %c0_i32_0 = arith.constant 0 : i32
    %c0_i32_1 = arith.constant 0 : i32
    return %c0_i32, %c0_i32_0 : i32, i32
  }
  func.func @transform_4(%arg0: i32, %arg1: i32) -> (i32, i32) {
    %c0_i32 = arith.constant 0 : i32
    %c0_i32_0 = arith.constant 0 : i32
    %c0_i32_1 = arith.constant 0 : i32
    return %c0_i32, %c0_i32_0 : i32, i32
  }
  func.func @transform_5(%arg0: i32, %arg1: i32) -> (i32, i32, i32) {
    %c0_i32 = arith.constant 0 : i32
    %c0_i32_0 = arith.constant 0 : i32
    return %arg1, %arg0, %c0_i32 : i32, i32, i32
  }
  func.func @transform_6(%arg0: i32, %arg1: i32) -> (i32, i32) {
    %c0_i32 = arith.constant 0 : i32
    %c0_i32_0 = arith.constant 0 : i32
    return %arg0, %c0_i32 : i32, i32
  }
  func.func @transform_7(%arg0: i32, %arg1: i32) -> (i32, i32) {
    %c0_i32 = arith.constant 0 : i32
    %c0_i32_0 = arith.constant 0 : i32
    return %arg0, %c0_i32 : i32, i32
  }
}

</mosaic_0001>

<llo_original>
// kernel: tpu_custom_call.1
$region0: #{tpu_custom_call.1}
  #allocation0 [shape = 'u32[]', space=smem, size = 0x4, offset = 0x4, fixed_abs, tag = 'smem constant byte address 0x4 - core index']
  #allocation1 [shape = 'u32[144,128]{1,0:T(1,128)}', space=vmem, size = 0x12000, scoped, tag = 'internal scratch']
  #allocation2 [shape = 'f32[8,8,512]{2,1,0:T(8,128)}', space=vmem, size = 0x20000, scoped, tag = 'scratch operand']
  %s0 = inlined_call_operand.hbm [shape: bf16[8,8,128], index: 0, kind: input, shape index: {}]
  %s1 = inlined_call_operand.vmem [shape: s32[8,1], index: 1, kind: input, shape index: {}]
  %s2 = inlined_call_operand.hbm [shape: bf16[128,512], index: 2, kind: input, shape index: {}]
  %s3 = inlined_call_operand.hbm [shape: bf16[128,512], index: 3, kind: input, shape index: {}]
  %s4 = inlined_call_operand.vmem [shape: f32[1,512], index: 4, kind: input, shape index: {}]
  %s5 = inlined_call_operand.hbm [shape: bf16[8,8,128], index: 5, kind: output, shape index: {0}]
  %s6 = inlined_call_operand.hbm [shape: f32[8,128], index: 6, kind: output, shape index: {1}]
  %s7 = inlined_call_operand.hbm [shape: f32[8,128], index: 7, kind: output, shape index: {2}]
  %8 = xla_tuple %s5, %s6, %s7
  %s9 = sld [smem:[#allocation0]]
  $region62: #{tpu_custom_call.1} parent=0
    _
  %s11 = ssub.s32 1, %s9
  %s12 = scalar_select 0, %s11, %s9
  $region1: #{tpu_custom_call.1} parent=0
    #allocation3 [shape = 'u8[16384]{0}', space=vmem, size = 0x4000, scoped, tag = 'input window, operand 0, single buffered']
    #allocation4 [shape = 's32[1]{0}', space=sflag, size = 0x4, scoped, tag = 'scoped memory for tpu_custom_call.1']
    #allocation5 [shape = 's32[1]{0}', space=sflag, size = 0x4, scoped, tag = 'scoped memory for tpu_custom_call.1']
    #allocation6 [shape = 'u8[131072]{0}', space=vmem, size = 0x20000, scoped, tag = 'input window, operand 2, single buffered']
    #allocation7 [shape = 's32[1]{0}', space=sflag, size = 0x4, scoped, tag = 'scoped memory for tpu_custom_call.1']
    #allocation8 [shape = 'u8[131072]{0}', space=vmem, size = 0x20000, scoped, tag = 'input window, operand 3, single buffered']
    #allocation9 [shape = 'u8[16384]{0}', space=vmem, size = 0x4000, scoped, tag = 'output window, operand 0, single buffered']
    #allocation10 [shape = 'u8[4096]{0}', space=vmem, size = 0x1000, scoped, tag = 'output window, operand 1, single buffered']
    #allocation11 [shape = 's32[1]{0}', space=sflag, size = 0x4, scoped, tag = 'scoped memory for tpu_custom_call.1']
    #allocation12 [shape = 'u8[4096]{0}', space=vmem, size = 0x1000, scoped, tag = 'output window, operand 2, single buffered']
    %13 = vsyncpa [#allocation4], 0
    %14 = vsyncpa [#allocation7], 0
    %15 = vsyncpa [#allocation5], 0
    %16 = vsyncpa [#allocation11], 0
    // Predicated region
    $region2: #{tpu_custom_call.1} parent=1 // pred_check
      _
    $region3: #{tpu_custom_call.1} parent=1 // pred_check_branch
      %18 = sbr.rel (0) target = $region5
    $region4: #{tpu_custom_call.1} parent=1 // pred_region
      %s20 = ssub.s32 512, 512
      %21 = vsyncadd [#allocation4], %s20
      %s22 = sshll.u32 [#allocation3], 4
      %s23 = int_to_ptr.vmem [resolvable:$true] %s22
      %28 = dma.hbm_to_vmem [thread:$0]  %s0, 512, %s23, [#allocation4], 64, 64, 4
    $region5: #{tpu_custom_call.1} parent=1 // pred_fallthru
      _
    // Predicated region
    $region6: #{tpu_custom_call.1} parent=1 // pred_check
      _
    $region7: #{tpu_custom_call.1} parent=1 // pred_check_branch
      %30 = sbr.rel (0) target = $region9
    $region8: #{tpu_custom_call.1} parent=1 // pred_region
      _
    $region9: #{tpu_custom_call.1} parent=1 // pred_fallthru
      _
    // Predicated region
    $region10: #{tpu_custom_call.1} parent=1 // pred_check
      _
    $region11: #{tpu_custom_call.1} parent=1 // pred_check_branch
      %32 = sbr.rel (0) target = $region13
    $region12: #{tpu_custom_call.1} parent=1 // pred_region
      %s34 = ssub.s32 4096, 4096
      %35 = vsyncadd [#allocation7], %s34
      %s36 = sshll.u32 [#allocation6], 4
      %s37 = int_to_ptr.vmem [resolvable:$true] %s36
      %42 = dma.hbm_to_vmem [thread:$0]  %s2, 4096, %s37, [#allocation7], 256, 256, 16
    $region13: #{tpu_custom_call.1} parent=1 // pred_fallthru
      _
    // Predicated region
    $region14: #{tpu_custom_call.1} parent=1 // pred_check
      _
    $region15: #{tpu_custom_call.1} parent=1 // pred_check_branch
      %44 = sbr.rel (0) target = $region17
    $region16: #{tpu_custom_call.1} parent=1 // pred_region
      %s46 = ssub.s32 4096, 4096
      %47 = vsyncadd [#allocation7], %s46
      %s48 = sshll.u32 [#allocation8], 4
      %s49 = int_to_ptr.vmem [resolvable:$true] %s48
      %54 = dma.hbm_to_vmem [thread:$0]  %s3, 4096, %s49, [#allocation7], 256, 256, 16
    $region17: #{tpu_custom_call.1} parent=1 // pred_fallthru
      _
    // Predicated region
    $region18: #{tpu_custom_call.1} parent=1 // pred_check
      _
    $region19: #{tpu_custom_call.1} parent=1 // pred_check_branch
      %56 = sbr.rel (0) target = $region21
    $region20: #{tpu_custom_call.1} parent=1 // pred_region
      _
    $region21: #{tpu_custom_call.1} parent=1 // pred_fallthru
      _
    // Predicated region
    $region22: #{tpu_custom_call.1} parent=1 // pred_check
      _
    $region23: #{tpu_custom_call.1} parent=1 // pred_check_branch
      %58 = sbr.rel (0) target = $region25
    $region24: #{tpu_custom_call.1} parent=1 // pred_region
      %59 = dma.done [#allocation4], 512
    $region25: #{tpu_custom_call.1} parent=1 // pred_fallthru
      _
    // Predicated region
    $region26: #{tpu_custom_call.1} parent=1 // pred_check
      _
    $region27: #{tpu_custom_call.1} parent=1 // pred_check_branch
      %61 = sbr.rel (0) target = $region29
    $region28: #{tpu_custom_call.1} parent=1 // pred_region
      %62 = dma.done [#allocation7], 4096
    $region29: #{tpu_custom_call.1} parent=1 // pred_fallthru
      _
    // Predicated region
    $region30: #{tpu_custom_call.1} parent=1 // pred_check
      _
    $region31: #{tpu_custom_call.1} parent=1 // pred_check_branch
      %64 = sbr.rel (0) target = $region33
    $region32: #{tpu_custom_call.1} parent=1 // pred_region
      %65 = dma.done [#allocation7], 4096
    $region33: #{tpu_custom_call.1} parent=1 // pred_fallthru
      _
    %p67 = scmp.eq.s32.totalorder 0, 0
    // Predicated region
    $region34: #{tpu_custom_call.1} parent=1 // pred_check
      %p68 = pneg %p67
    $region35: #{tpu_custom_call.1} parent=1 // pred_check_branch
      %70 = sbr.rel (%p68) target = $region37
    $region36: #{tpu_custom_call.1} parent=1 // pred_region
      %71 = vst [vmem:[#allocation10] sm:$0xff] 0.0
      %72 = vst [vmem:[#allocation12] sm:$0xff] 0.0
    $region37: #{tpu_custom_call.1} parent=1 // pred_fallthru
      _
    %v73 = vld [vmem:[#allocation3] sm:$0xf]
    %v74 = vld [vmem:[#allocation3 + $0x4] sm:$0xf]
    %v75 = vld [vmem:[#allocation3 + $0x8] sm:$0xf]
    %v76 = vld [vmem:[#allocation3 + $0xc] sm:$0xf]
    %v77 = vld [vmem:[#allocation3 + $0x10] sm:$0xf]
    %v78 = vld [vmem:[#allocation3 + $0x14] sm:$0xf]
    %v79 = vld [vmem:[#allocation3 + $0x18] sm:$0xf]
    %v80 = vld [vmem:[#allocation3 + $0x1c] sm:$0xf]
    %v81 = vld [vmem:[#allocation6] sm:$0xff]
    %v82 = vld [vmem:[#allocation6 + $0x8] sm:$0xff]
    %v83 = vld [vmem:[#allocation6 + $0x10] sm:$0xff]
    %v84 = vld [vmem:[#allocation6 + $0x18] sm:$0xff]
    %v85 = vld [vmem:[#allocation6 + $0x20] sm:$0xff]
    %v86 = vld [vmem:[#allocation6 + $0x28] sm:$0xff]
    %v87 = vld [vmem:[#allocation6 + $0x30] sm:$0xff]
    %v88 = vld [vmem:[#allocation6 + $0x38] sm:$0xff]
    %v89 = vld [vmem:[#allocation6 + $0x40] sm:$0xff]
    %v90 = vld [vmem:[#allocation6 + $0x48] sm:$0xff]
    %v91 = vld [vmem:[#allocation6 + $0x50] sm:$0xff]
    %v92 = vld [vmem:[#allocation6 + $0x58] sm:$0xff]
    %v93 = vld [vmem:[#allocation6 + $0x60] sm:$0xff]
    %v94 = vld [vmem:[#allocation6 + $0x68] sm:$0xff]
    %v95 = vld [vmem:[#allocation6 + $0x70] sm:$0xff]
    %v96 = vld [vmem:[#allocation6 + $0x78] sm:$0xff]
    %v97 = vld [vmem:[#allocation6 + $0x80] sm:$0xff]
    %v98 = vld [vmem:[#allocation6 + $0x88] sm:$0xff]
    %v99 = vld [vmem:[#allocation6 + $0x90] sm:$0xff]
    %v100 = vld [vmem:[#allocation6 + $0x98] sm:$0xff]
    %v101 = vld [vmem:[#allocation6 + $0xa0] sm:$0xff]
    %v102 = vld [vmem:[#allocation6 + $0xa8] sm:$0xff]
    %v103 = vld [vmem:[#allocation6 + $0xb0] sm:$0xff]
    %v104 = vld [vmem:[#allocation6 + $0xb8] sm:$0xff]
    %v105 = vld [vmem:[#allocation6 + $0xc0] sm:$0xff]
    %v106 = vld [vmem:[#allocation6 + $0xc8] sm:$0xff]
    %v107 = vld [vmem:[#allocation6 + $0xd0] sm:$0xff]
    %v108 = vld [vmem:[#allocation6 + $0xd8] sm:$0xff]
    %v109 = vld [vmem:[#allocation6 + $0xe0] sm:$0xff]
    %v110 = vld [vmem:[#allocation6 + $0xe8] sm:$0xff]
    %v111 = vld [vmem:[#allocation6 + $0xf0] sm:$0xff]
    %v112 = vld [vmem:[#allocation6 + $0xf8] sm:$0xff]
    %v113 = vld [vmem:[%s4] sm:$0xf]
    %v115 = vlaneseq
    %v116 = vshrl.u32 %v115, 7
    %v117 = vsub.s32 0, %v116
    %v118 = vrot.slane %v113, %v117
    %v119 = vlaneseq
    %v120 = vshrl.u32 %v119, 7
    %v121 = vsub.s32 1, %v120
    %v122 = vrot.slane %v113, %v121
    %v123 = vlaneseq
    %v124 = vshrl.u32 %v123, 7
    %v125 = vsub.s32 2, %v124
    %v126 = vrot.slane %v113, %v125
    %v127 = vlaneseq
    %v128 = vshrl.u32 %v127, 7
    %v129 = vsub.s32 3, %v128
    %v130 = vrot.slane %v113, %v129
    %v143 = vunpack.c.l.b16 %v73
    %v144 = vunpack.c.l.b16 %v74
    %v145 = vunpack.c.l.b16 %v75
    %v146 = vunpack.c.l.b16 %v76
    %v147 = vunpack.c.l.b16 %v77
    %v148 = vunpack.c.l.b16 %v78
    %v149 = vunpack.c.l.b16 %v79
    %v150 = vunpack.c.l.b16 %v80
    %v151 = vpack.c.b16 %v144, %v143
    %v152 = vpack.c.b16 %v146, %v145
    %v153 = vpack.c.b16 %v148, %v147
    %v154 = vpack.c.b16 %v150, %v149
    %v191 = vunpack.c.l.b16 %v81
    %v192 = vunpack.c.h.b16 %v81
    %v193 = vunpack.c.l.b16 %v82
    %v194 = vunpack.c.h.b16 %v82
    %v195 = vunpack.c.l.b16 %v83
    %v196 = vunpack.c.h.b16 %v83
    %v197 = vunpack.c.l.b16 %v84
    %v198 = vunpack.c.h.b16 %v84
    %v199 = vunpack.c.l.b16 %v85
    %v200 = vunpack.c.h.b16 %v85
    %v201 = vunpack.c.l.b16 %v86
    %v202 = vunpack.c.h.b16 %v86
    %v203 = vunpack.c.l.b16 %v87
    %v204 = vunpack.c.h.b16 %v87
    %v205 = vunpack.c.l.b16 %v88
    %v206 = vunpack.c.h.b16 %v88
    %v207 = vunpack.c.l.b16 %v89
    %v208 = vunpack.c.h.b16 %v89
    %v209 = vunpack.c.l.b16 %v90
    %v210 = vunpack.c.h.b16 %v90
    %v211 = vunpack.c.l.b16 %v91
    %v212 = vunpack.c.h.b16 %v91
    %v213 = vunpack.c.l.b16 %v92
    %v214 = vunpack.c.h.b16 %v92
    %v215 = vunpack.c.l.b16 %v93
    %v216 = vunpack.c.h.b16 %v93
    %v217 = vunpack.c.l.b16 %v94
    %v218 = vunpack.c.h.b16 %v94
    %v219 = vunpack.c.l.b16 %v95
    %v220 = vunpack.c.h.b16 %v95
    %v221 = vunpack.c.l.b16 %v96
    %v222 = vunpack.c.h.b16 %v96
    %v223 = vunpack.c.l.b16 %v97
    %v224 = vunpack.c.h.b16 %v97
    %v225 = vunpack.c.l.b16 %v98
    %v226 = vunpack.c.h.b16 %v98
    %v227 = vunpack.c.l.b16 %v99
    %v228 = vunpack.c.h.b16 %v99
    %v229 = vunpack.c.l.b16 %v100
    %v230 = vunpack.c.h.b16 %v100
    %v231 = vunpack.c.l.b16 %v101
    %v232 = vunpack.c.h.b16 %v101
    %v233 = vunpack.c.l.b16 %v102
    %v234 = vunpack.c.h.b16 %v102
    %v235 = vunpack.c.l.b16 %v103
    %v236 = vunpack.c.h.b16 %v103
    %v237 = vunpack.c.l.b16 %v104
    %v238 = vunpack.c.h.b16 %v104
    %v239 = vunpack.c.l.b16 %v105
    %v240 = vunpack.c.h.b16 %v105
    %v241 = vunpack.c.l.b16 %v106
    %v242 = vunpack.c.h.b16 %v106
    %v243 = vunpack.c.l.b16 %v107
    %v244 = vunpack.c.h.b16 %v107
    %v245 = vunpack.c.l.b16 %v108
    %v246 = vunpack.c.h.b16 %v108
    %v247 = vunpack.c.l.b16 %v109
    %v248 = vunpack.c.h.b16 %v109
    %v249 = vunpack.c.l.b16 %v110
    %v250 = vunpack.c.h.b16 %v110
    %v251 = vunpack.c.l.b16 %v111
    %v252 = vunpack.c.h.b16 %v111
    %v253 = vunpack.c.l.b16 %v112
    %v254 = vunpack.c.h.b16 %v112
    %v255 = vpack.c.b16 %v195, %v191
    %v256 = vpack.c.b16 %v196, %v192
    %v257 = vpack.c.b16 %v197, %v193
    %v258 = vpack.c.b16 %v198, %v194
    %v259 = vpack.c.b16 %v203, %v199
    %v260 = vpack.c.b16 %v204, %v200
    %v261 = vpack.c.b16 %v205, %v201
    %v262 = vpack.c.b16 %v206, %v202
    %v263 = vpack.c.b16 %v211, %v207
    %v264 = vpack.c.b16 %v212, %v208
    %v265 = vpack.c.b16 %v213, %v209
    %v266 = vpack.c.b16 %v214, %v210
    %v267 = vpack.c.b16 %v219, %v215
    %v268 = vpack.c.b16 %v220, %v216
    %v269 = vpack.c.b16 %v221, %v217
    %v270 = vpack.c.b16 %v222, %v218
    %v271 = vpack.c.b16 %v227, %v223
    %v272 = vpack.c.b16 %v228, %v224
    %v273 = vpack.c.b16 %v229, %v225
    %v274 = vpack.c.b16 %v230, %v226
    %v275 = vpack.c.b16 %v235, %v231
    %v276 = vpack.c.b16 %v236, %v232
    %v277 = vpack.c.b16 %v237, %v233
    %v278 = vpack.c.b16 %v238, %v234
    %v279 = vpack.c.b16 %v243, %v239
    %v280 = vpack.c.b16 %v244, %v240
    %v281 = vpack.c.b16 %v245, %v241
    %v282 = vpack.c.b16 %v246, %v242
    %v283 = vpack.c.b16 %v251, %v247
    %v284 = vpack.c.b16 %v252, %v248
    %v285 = vpack.c.b16 %v253, %v249
    %v286 = vpack.c.b16 %v254, %v250
    %319 = vmatprep.subr.bf16.mxu0 %v256
    %320 = vmatpush1.bf16.msra.mxu0 %v255
    %321 = vmatprep.subr.bf16.mxu0 %v260
    %322 = vmatpush1.bf16.msra.mxu0 %v259
    %323 = vmatprep.subr.bf16.mxu0 %v264
    %324 = vmatpush1.bf16.msra.mxu0 %v263
    %325 = vmatprep.subr.bf16.mxu0 %v268
    %326 = vmatpush1.bf16.msra.mxu0 %v267
    %327 = vmatprep.subr.bf16.mxu0 %v272
    %328 = vmatpush1.bf16.msra.mxu0 %v271
    %329 = vmatprep.subr.bf16.mxu0 %v276
    %330 = vmatpush1.bf16.msra.mxu0 %v275
    %331 = vmatprep.subr.bf16.mxu0 %v280
    %332 = vmatpush1.bf16.msra.mxu0 %v279
    %333 = vmatprep.subr.bf16.mxu0 %v284
    %334 = vmatpush1.bf16.msra.mxu0 %v283
    %335 = vmatprep.subr.bf16.mxu0 0
    %336 = vmatpush1.bf16.msra.mxu0 0
    %337 = vmatprep.subr.bf16.mxu0 0
    %338 = vmatpush1.bf16.msra.mxu0 0
    %339 = vmatprep.subr.bf16.mxu0 0
    %340 = vmatpush1.bf16.msra.mxu0 0
    %341 = vmatprep.subr.bf16.mxu0 0
    %342 = vmatpush1.bf16.msra.mxu0 0
    %343 = vmatprep.subr.bf16.mxu0 0
    %344 = vmatpush1.bf16.msra.mxu0 0
    %345 = vmatprep.subr.bf16.mxu0 0
    %346 = vmatpush1.bf16.msra.mxu0 0
    %347 = vmatprep.subr.bf16.mxu0 0
    %348 = vmatpush1.bf16.msra.mxu0 0
    %349 = vmatprep.subr.bf16.mxu0 0
    %350 = vmatpush1.bf16.msra.mxu0 0
    %351 = vmatprep.mubr.bf16.mxu0 0
    %352 = vmatmul.mubr.bf16.gmra.mrb[0].mxu0 %v151
    %v353 = vpop.f32.mrb[0].mxu0
    %v354 = vadd.f32 %v118, %v353
    %v355 = vpop.f32.mrb[0].mxu0
    %v356 = vadd.f32 %v122, %v355
    %v357 = vpop.f32.mrb[0].mxu0
    %v358 = vadd.f32 %v118, %v357
    %v359 = vpop.f32.mrb[0].mxu0
    %v360 = vadd.f32 %v122, %v359
    %361 = vmatprep.mubr.bf16.mxu0 0
    %362 = vmatmul.mubr.bf16.gmra.mrb[0].mxu0 %v152
    %v363 = vpop.f32.mrb[0].mxu0
    %v364 = vadd.f32 %v118, %v363
    %v365 = vpop.f32.mrb[0].mxu0
    %v366 = vadd.f32 %v122, %v365
    %v367 = vpop.f32.mrb[0].mxu0
    %v368 = vadd.f32 %v118, %v367
    %v369 = vpop.f32.mrb[0].mxu0
    %v370 = vadd.f32 %v122, %v369
    %371 = vmatprep.mubr.bf16.mxu0 0
    %372 = vmatmul.mubr.bf16.gmra.mrb[0].mxu0 %v153
    %v373 = vpop.f32.mrb[0].mxu0
    %v374 = vadd.f32 %v118, %v373
    %v375 = vpop.f32.mrb[0].mxu0
    %v376 = vadd.f32 %v122, %v375
    %v377 = vpop.f32.mrb[0].mxu0
    %v378 = vadd.f32 %v118, %v377
    %v379 = vpop.f32.mrb[0].mxu0
    %v380 = vadd.f32 %v122, %v379
    %381 = vmatprep.mubr.bf16.mxu0 0
    %382 = vmatmul.mubr.bf16.gmra.mrb[0].mxu0 %v154
    %v383 = vpop.f32.mrb[0].mxu0
    %v384 = vadd.f32 %v118, %v383
    %v385 = vpop.f32.mrb[0].mxu0
    %v386 = vadd.f32 %v122, %v385
    %v387 = vpop.f32.mrb[0].mxu0
    %v388 = vadd.f32 %v118, %v387
    %v389 = vpop.f32.mrb[0].mxu0
    %v390 = vadd.f32 %v122, %v389
    %391 = vdwg.mxu0
    %392 = vmatprep.subr.bf16.mxu0 %v258
    %393 = vmatpush1.bf16.msra.mxu0 %v257
    %394 = vmatprep.subr.bf16.mxu0 %v262
    %395 = vmatpush1.bf16.msra.mxu0 %v261
    %396 = vmatprep.subr.bf16.mxu0 %v266
    %397 = vmatpush1.bf16.msra.mxu0 %v265
    %398 = vmatprep.subr.bf16.mxu0 %v270
    %399 = vmatpush1.bf16.msra.mxu0 %v269
    %400 = vmatprep.subr.bf16.mxu0 %v274
    %401 = vmatpush1.bf16.msra.mxu0 %v273
    %402 = vmatprep.subr.bf16.mxu0 %v278
    %403 = vmatpush1.bf16.msra.mxu0 %v277
    %404 = vmatprep.subr.bf16.mxu0 %v282
    %405 = vmatpush1.bf16.msra.mxu0 %v281
    %406 = vmatprep.subr.bf16.mxu0 %v286
    %407 = vmatpush1.bf16.msra.mxu0 %v285
    %408 = vmatprep.subr.bf16.mxu0 0
    %409 = vmatpush1.bf16.msra.mxu0 0
    %410 = vmatprep.subr.bf16.mxu0 0
    %411 = vmatpush1.bf16.msra.mxu0 0
    %412 = vmatprep.subr.bf16.mxu0 0
    %413 = vmatpush1.bf16.msra.mxu0 0
    %414 = vmatprep.subr.bf16.mxu0 0
    %415 = vmatpush1.bf16.msra.mxu0 0
    %416 = vmatprep.subr.bf16.mxu0 0
    %417 = vmatpush1.bf16.msra.mxu0 0
    %418 = vmatprep.subr.bf16.mxu0 0
    %419 = vmatpush1.bf16.msra.mxu0 0
    %420 = vmatprep.subr.bf16.mxu0 0
    %421 = vmatpush1.bf16.msra.mxu0 0
    %422 = vmatprep.subr.bf16.mxu0 0
    %423 = vmatpush1.bf16.msra.mxu0 0
    %424 = vmatprep.mubr.bf16.mxu0 0
    %425 = vmatmul.mubr.bf16.gmra.mrb[0].mxu0 %v151
    %v426 = vpop.f32.mrb[0].mxu0
    %v427 = vadd.f32 %v126, %v426
    %v428 = vpop.f32.mrb[0].mxu0
    %v429 = vadd.f32 %v130, %v428
    %v430 = vpop.f32.mrb[0].mxu0
    %v431 = vadd.f32 %v126, %v430
    %v432 = vpop.f32.mrb[0].mxu0
    %v433 = vadd.f32 %v130, %v432
    %434 = vmatprep.mubr.bf16.mxu0 0
    %435 = vmatmul.mubr.bf16.gmra.mrb[0].mxu0 %v152
    %v436 = vpop.f32.mrb[0].mxu0
    %v437 = vadd.f32 %v126, %v436
    %v438 = vpop.f32.mrb[0].mxu0
    %v439 = vadd.f32 %v130, %v438
    %v440 = vpop.f32.mrb[0].mxu0
    %v441 = vadd.f32 %v126, %v440
    %v442 = vpop.f32.mrb[0].mxu0
    %v443 = vadd.f32 %v130, %v442
    %444 = vmatprep.mubr.bf16.mxu0 0
    %445 = vmatmul.mubr.bf16.gmra.mrb[0].mxu0 %v153
    %v446 = vpop.f32.mrb[0].mxu0
    %v447 = vadd.f32 %v126, %v446
    %v448 = vpop.f32.mrb[0].mxu0
    %v449 = vadd.f32 %v130, %v448
    %v450 = vpop.f32.mrb[0].mxu0
    %v451 = vadd.f32 %v126, %v450
    %v452 = vpop.f32.mrb[0].mxu0
    %v453 = vadd.f32 %v130, %v452
    %454 = vmatprep.mubr.bf16.mxu0 0
    %455 = vmatmul.mubr.bf16.gmra.mrb[0].mxu0 %v154
    %v456 = vpop.f32.mrb[0].mxu0
    %v457 = vadd.f32 %v126, %v456
    %v458 = vpop.f32.mrb[0].mxu0
    %v459 = vadd.f32 %v130, %v458
    %v460 = vpop.f32.mrb[0].mxu0
    %v461 = vadd.f32 %v126, %v460
    %v462 = vpop.f32.mrb[0].mxu0
    %v463 = vadd.f32 %v130, %v462
    %464 = vdwg.mxu0
    %465 = vst [vmem:[#allocation2] sm:$0xff] %v354
    %466 = vst [vmem:[#allocation2 + $0x8] sm:$0xff] %v356
    %467 = vst [vmem:[#allocation2 + $0x10] sm:$0xff] %v427
    %468 = vst [vmem:[#allocation2 + $0x18] sm:$0xff] %v429
    %469 = vst [vmem:[#allocation2 + $0x20] sm:$0xff] %v358
    %470 = vst [vmem:[#allocation2 + $0x28] sm:$0xff] %v360
    %471 = vst [vmem:[#allocation2 + $0x30] sm:$0xff] %v431
    %472 = vst [vmem:[#allocation2 + $0x38] sm:$0xff] %v433
    %473 = vst [vmem:[#allocation2 + $0x40] sm:$0xff] %v364
    %474 = vst [vmem:[#allocation2 + $0x48] sm:$0xff] %v366
    %475 = vst [vmem:[#allocation2 + $0x50] sm:$0xff] %v437
    %476 = vst [vmem:[#allocation2 + $0x58] sm:$0xff] %v439
    %477 = vst [vmem:[#allocation2 + $0x60] sm:$0xff] %v368
    %478 = vst [vmem:[#allocation2 + $0x68] sm:$0xff] %v370
    %479 = vst [vmem:[#allocation2 + $0x70] sm:$0xff] %v441
    %480 = vst [vmem:[#allocation2 + $0x78] sm:$0xff] %v443
    %481 = vst [vmem:[#allocation2 + $0x80] sm:$0xff] %v374
    %482 = vst [vmem:[#allocation2 + $0x88] sm:$0xff] %v376
    %483 = vst [vmem:[#allocation2 + $0x90] sm:$0xff] %v447
    %484 = vst [vmem:[#allocation2 + $0x98] sm:$0xff] %v449
    %485 = vst [vmem:[#allocation2 + $0xa0] sm:$0xff] %v378
    %486 = vst [vmem:[#allocation2 + $0xa8] sm:$0xff] %v380
    %487 = vst [vmem:[#allocation2 + $0xb0] sm:$0xff] %v451
    %488 = vst [vmem:[#allocation2 + $0xb8] sm:$0xff] %v453
    %489 = vst [vmem:[#allocation2 + $0xc0] sm:$0xff] %v384
    %490 = vst [vmem:[#allocation2 + $0xc8] sm:$0xff] %v386
    %491 = vst [vmem:[#allocation2 + $0xd0] sm:$0xff] %v457
    %492 = vst [vmem:[#allocation2 + $0xd8] sm:$0xff] %v459
    %493 = vst [vmem:[#allocation2 + $0xe0] sm:$0xff] %v388
    %494 = vst [vmem:[#allocation2 + $0xe8] sm:$0xff] %v390
    %495 = vst [vmem:[#allocation2 + $0xf0] sm:$0xff] %v461
    %496 = vst [vmem:[#allocation2 + $0xf8] sm:$0xff] %v463
    %v497 = vld [vmem:[#allocation8] sm:$0xff]
    %v498 = vld [vmem:[#allocation8 + $0x8] sm:$0xff]
    %v499 = vld [vmem:[#allocation8 + $0x10] sm:$0xff]
    %v500 = vld [vmem:[#allocation8 + $0x18] sm:$0xff]
    %v501 = vld [vmem:[#allocation8 + $0x20] sm:$0xff]
    %v502 = vld [vmem:[#allocation8 + $0x28] sm:$0xff]
    %v503 = vld [vmem:[#allocation8 + $0x30] sm:$0xff]
    %v504 = vld [vmem:[#allocation8 + $0x38] sm:$0xff]
    %v505 = vld [vmem:[#allocation8 + $0x40] sm:$0xff]
    %v506 = vld [vmem:[#allocation8 + $0x48] sm:$0xff]
    %v507 = vld [vmem:[#allocation8 + $0x50] sm:$0xff]
    %v508 = vld [vmem:[#allocation8 + $0x58] sm:$0xff]
    %v509 = vld [vmem:[#allocation8 + $0x60] sm:$0xff]
    %v510 = vld [vmem:[#allocation8 + $0x68] sm:$0xff]
    %v511 = vld [vmem:[#allocation8 + $0x70] sm:$0xff]
    %v512 = vld [vmem:[#allocation8 + $0x78] sm:$0xff]
    %v513 = vld [vmem:[#allocation8 + $0x80] sm:$0xff]
    %v514 = vld [vmem:[#allocation8 + $0x88] sm:$0xff]
    %v515 = vld [vmem:[#allocation8 + $0x90] sm:$0xff]
    %v516 = vld [vmem:[#allocation8 + $0x98] sm:$0xff]
    %v517 = vld [vmem:[#allocation8 + $0xa0] sm:$0xff]
    %v518 = vld [vmem:[#allocation8 + $0xa8] sm:$0xff]
    %v519 = vld [vmem:[#allocation8 + $0xb0] sm:$0xff]
    %v520 = vld [vmem:[#allocation8 + $0xb8] sm:$0xff]
    %v521 = vld [vmem:[#allocation8 + $0xc0] sm:$0xff]
    %v522 = vld [vmem:[#allocation8 + $0xc8] sm:$0xff]
    %v523 = vld [vmem:[#allocation8 + $0xd0] sm:$0xff]
    %v524 = vld [vmem:[#allocation8 + $0xd8] sm:$0xff]
    %v525 = vld [vmem:[#allocation8 + $0xe0] sm:$0xff]
    %v526 = vld [vmem:[#allocation8 + $0xe8] sm:$0xff]
    %v527 = vld [vmem:[#allocation8 + $0xf0] sm:$0xff]
    %v528 = vld [vmem:[#allocation8 + $0xf8] sm:$0xff]
    %v529 = vld [vmem:[%s1] sm:$0xff]
    %s530 = smul.u32 0, 8
    %v531 = vld [vmem:[#allocation10] sm:$0xff]
    %v532 = vld [vmem:[#allocation12] sm:$0xff]
    %v533 = vld [vmem:[#allocation2] sm:$0xff]
    %v534 = vld [vmem:[#allocation2 + $0x8] sm:$0xff]
    %v535 = vld [vmem:[#allocation2 + $0x10] sm:$0xff]
    %v536 = vld [vmem:[#allocation2 + $0x18] sm:$0xff]
    %v537 = vpack.c.bf16 %v531, %v531
    %v570 = vunpack.c.l.b16 %v497
    %v571 = vunpack.c.h.b16 %v497
    %v572 = vunpack.c.l.b16 %v498
    %v573 = vunpack.c.h.b16 %v498
    %v574 = vunpack.c.l.b16 %v499
    %v575 = vunpack.c.h.b16 %v499
    %v576 = vunpack.c.l.b16 %v500
    %v577 = vunpack.c.h.b16 %v500
    %v578 = vunpack.c.l.b16 %v501
    %v579 = vunpack.c.h.b16 %v501
    %v580 = vunpack.c.l.b16 %v502
    %v581 = vunpack.c.h.b16 %v502
    %v582 = vunpack.c.l.b16 %v503
    %v583 = vunpack.c.h.b16 %v503
    %v584 = vunpack.c.l.b16 %v504
    %v585 = vunpack.c.h.b16 %v504
    %v586 = vunpack.c.l.b16 %v505
    %v587 = vunpack.c.h.b16 %v505
    %v588 = vunpack.c.l.b16 %v506
    %v589 = vunpack.c.h.b16 %v506
    %v590 = vunpack.c.l.b16 %v507
    %v591 = vunpack.c.h.b16 %v507
    %v592 = vunpack.c.l.b16 %v508
    %v593 = vunpack.c.h.b16 %v508
    %v594 = vunpack.c.l.b16 %v509
    %v595 = vunpack.c.h.b16 %v509
    %v596 = vunpack.c.l.b16 %v510
    %v597 = vunpack.c.h.b16 %v510
    %v598 = vunpack.c.l.b16 %v511
    %v599 = vunpack.c.h.b16 %v511
    %v600 = vunpack.c.l.b16 %v512
    %v601 = vunpack.c.h.b16 %v512
    %v602 = vunpack.c.l.b16 %v513
    %v603 = vunpack.c.h.b16 %v513
    %v604 = vunpack.c.l.b16 %v514
    %v605 = vunpack.c.h.b16 %v514
    %v606 = vunpack.c.l.b16 %v515
    %v607 = vunpack.c.h.b16 %v515
    %v608 = vunpack.c.l.b16 %v516
    %v609 = vunpack.c.h.b16 %v516
    %v610 = vunpack.c.l.b16 %v517
    %v611 = vunpack.c.h.b16 %v517
    %v612 = vunpack.c.l.b16 %v518
    %v613 = vunpack.c.h.b16 %v518
    %v614 = vunpack.c.l.b16 %v519
    %v615 = vunpack.c.h.b16 %v519
    %v616 = vunpack.c.l.b16 %v520
    %v617 = vunpack.c.h.b16 %v520
    %v618 = vunpack.c.l.b16 %v521
    %v619 = vunpack.c.h.b16 %v521
    %v620 = vunpack.c.l.b16 %v522
    %v621 = vunpack.c.h.b16 %v522
    %v622 = vunpack.c.l.b16 %v523
    %v623 = vunpack.c.h.b16 %v523
    %v624 = vunpack.c.l.b16 %v524
    %v625 = vunpack.c.h.b16 %v524
    %v626 = vunpack.c.l.b16 %v525
    %v627 = vunpack.c.h.b16 %v525
    %v628 = vunpack.c.l.b16 %v526
    %v629 = vunpack.c.h.b16 %v526
    %v630 = vunpack.c.l.b16 %v527
    %v631 = vunpack.c.h.b16 %v527
    %v632 = vunpack.c.l.b16 %v528
    %v633 = vunpack.c.h.b16 %v528
    %v634 = vpack.c.b16 %v574, %v570
    %v635 = vpack.c.b16 %v575, %v571
    %v636 = vpack.c.b16 %v576, %v572
    %v637 = vpack.c.b16 %v577, %v573
    %v638 = vpack.c.b16 %v582, %v578
    %v639 = vpack.c.b16 %v583, %v579
    %v640 = vpack.c.b16 %v584, %v580
    %v641 = vpack.c.b16 %v585, %v581
    %v642 = vpack.c.b16 %v590, %v586
    %v643 = vpack.c.b16 %v591, %v587
    %v644 = vpack.c.b16 %v592, %v588
    %v645 = vpack.c.b16 %v593, %v589
    %v646 = vpack.c.b16 %v598, %v594
    %v647 = vpack.c.b16 %v599, %v595
    %v648 = vpack.c.b16 %v600, %v596
    %v649 = vpack.c.b16 %v601, %v597
    %v650 = vpack.c.b16 %v606, %v602
    %v651 = vpack.c.b16 %v607, %v603
    %v652 = vpack.c.b16 %v608, %v604
    %v653 = vpack.c.b16 %v609, %v605
    %v654 = vpack.c.b16 %v614, %v610
    %v655 = vpack.c.b16 %v615, %v611
    %v656 = vpack.c.b16 %v616, %v612
    %v657 = vpack.c.b16 %v617, %v613
    %v658 = vpack.c.b16 %v622, %v618
    %v659 = vpack.c.b16 %v623, %v619
    %v660 = vpack.c.b16 %v624, %v620
    %v661 = vpack.c.b16 %v625, %v621
    %v662 = vpack.c.b16 %v630, %v626
    %v663 = vpack.c.b16 %v631, %v627
    %v664 = vpack.c.b16 %v632, %v628
    %v665 = vpack.c.b16 %v633, %v629
    %698 = vmatprep.subr.bf16.mxu0 %v635
    %699 = vmatpush1.bf16.msra.mxu0 %v634
    %700 = vmatprep.subr.bf16.mxu0 %v639
    %701 = vmatpush1.bf16.msra.mxu0 %v638
    %702 = vmatprep.subr.bf16.mxu0 %v643
    %703 = vmatpush1.bf16.msra.mxu0 %v642
    %704 = vmatprep.subr.bf16.mxu0 %v647
    %705 = vmatpush1.bf16.msra.mxu0 %v646
    %706 = vmatprep.subr.bf16.mxu0 %v651
    %707 = vmatpush1.bf16.msra.mxu0 %v650
    %708 = vmatprep.subr.bf16.mxu0 %v655
    %709 = vmatpush1.bf16.msra.mxu0 %v654
    %710 = vmatprep.subr.bf16.mxu0 %v659
    %711 = vmatpush1.bf16.msra.mxu0 %v658
    %712 = vmatprep.subr.bf16.mxu0 %v663
    %713 = vmatpush1.bf16.msra.mxu0 %v662
    %714 = vmatprep.subr.bf16.mxu0 0
    %715 = vmatpush1.bf16.msra.mxu0 0
    %716 = vmatprep.subr.bf16.mxu0 0
    %717 = vmatpush1.bf16.msra.mxu0 0
    %718 = vmatprep.subr.bf16.mxu0 0
    %719 = vmatpush1.bf16.msra.mxu0 0
    %720 = vmatprep.subr.bf16.mxu0 0
    %721 = vmatpush1.bf16.msra.mxu0 0
    %722 = vmatprep.subr.bf16.mxu0 0
    %723 = vmatpush1.bf16.msra.mxu0 0
    %724 = vmatprep.subr.bf16.mxu0 0
    %725 = vmatpush1.bf16.msra.mxu0 0
    %726 = vmatprep.subr.bf16.mxu0 0
    %727 = vmatpush1.bf16.msra.mxu0 0
    %728 = vmatprep.subr.bf16.mxu0 0
    %729 = vmatpush1.bf16.msra.mxu0 0
    %730 = vmatprep.mubr.bf16.mxu0 0
    %731 = vmatmul.mubr.bf16.gmra.mrb[0].mxu0 %v537
    %v732 = vpop.f32.mrb[0].mxu0
    %v733 = vadd.f32 0.0, %v732
    %v734 = vpop.f32.mrb[0].mxu0
    %v735 = vadd.f32 0.0, %v734
    %v736 = vpop.f32.mrb[0].mxu0
    %v737 = vpop.f32.mrb[0].mxu0
    %738 = vdwg.mxu0
    %739 = vmatprep.subr.bf16.mxu0 %v637
    %740 = vmatpush1.bf16.msra.mxu0 %v636
    %741 = vmatprep.subr.bf16.mxu0 %v641
    %742 = vmatpush1.bf16.msra.mxu0 %v640
    %743 = vmatprep.subr.bf16.mxu0 %v645
    %744 = vmatpush1.bf16.msra.mxu0 %v644
    %745 = vmatprep.subr.bf16.mxu0 %v649
    %746 = vmatpush1.bf16.msra.mxu0 %v648
    %747 = vmatprep.subr.bf16.mxu0 %v653
    %748 = vmatpush1.bf16.msra.mxu0 %v652
    %749 = vmatprep.subr.bf16.mxu0 %v657
    %750 = vmatpush1.bf16.msra.mxu0 %v656
    %751 = vmatprep.subr.bf16.mxu0 %v661
    %752 = vmatpush1.bf16.msra.mxu0 %v660
    %753 = vmatprep.subr.bf16.mxu0 %v665
    %754 = vmatpush1.bf16.msra.mxu0 %v664
    %755 = vmatprep.subr.bf16.mxu0 0
    %756 = vmatpush1.bf16.msra.mxu0 0
    %757 = vmatprep.subr.bf16.mxu0 0
    %758 = vmatpush1.bf16.msra.mxu0 0
    %759 = vmatprep.subr.bf16.mxu0 0
    %760 = vmatpush1.bf16.msra.mxu0 0
    %761 = vmatprep.subr.bf16.mxu0 0
    %762 = vmatpush1.bf16.msra.mxu0 0
    %763 = vmatprep.subr.bf16.mxu0 0
    %764 = vmatpush1.bf16.msra.mxu0 0
    %765 = vmatprep.subr.bf16.mxu0 0
    %766 = vmatpush1.bf16.msra.mxu0 0
    %767 = vmatprep.subr.bf16.mxu0 0
    %768 = vmatpush1.bf16.msra.mxu0 0
    %769 = vmatprep.subr.bf16.mxu0 0
    %770 = vmatpush1.bf16.msra.mxu0 0
    %771 = vmatprep.mubr.bf16.mxu0 0
    %772 = vmatmul.mubr.bf16.gmra.mrb[0].mxu0 %v537
    %v773 = vpop.f32.mrb[0].mxu0
    %v774 = vadd.f32 0.0, %v773
    %v775 = vpop.f32.mrb[0].mxu0
    %v776 = vadd.f32 0.0, %v775
    %v777 = vpop.f32.mrb[0].mxu0
    %v778 = vpop.f32.mrb[0].mxu0
    %779 = vdwg.mxu0
    %v780 = vadd.f32 %v533, %v733
    %v781 = vadd.f32 %v534, %v735
    %v782 = vadd.f32 %v535, %v774
    %v783 = vadd.f32 %v536, %v776
    %v784 = vxor.u32 %v780, 2147483648
    %v785 = vmul.f32 %v784, 1.442695
    %v786 = vpow.pop %v785
    %v787 = vadd.f32 %v786, 1.0
    %v788 = vrcp.pop %v787
    %v789 = vmul.f32 1.0, %v788
    %v790 = vxor.u32 %v781, 2147483648
    %v791 = vmul.f32 %v790, 1.442695
    %v792 = vpow.pop %v791
    %v793 = vadd.f32 %v792, 1.0
    %v794 = vrcp.pop %v793
    %v795 = vmul.f32 1.0, %v794
    %v796 = vtanh.pop %v782
    %v797 = vxor.u32 %v783, 2147483648
    %v798 = vmul.f32 %v797, 1.442695
    %v799 = vpow.pop %v798
    %v800 = vadd.f32 %v799, 1.0
    %v801 = vrcp.pop %v800
    %v802 = vmul.f32 1.0, %v801
    %v803 = vmul.f32 %v795, %v532
    %v804 = vmul.f32 %v789, %v796
    %v805 = vadd.f32 %v803, %v804
    %v806 = vtanh.pop %v805
    %v807 = vmul.f32 %v802, %v806
    %v808 = vstv %s530
    %vm809 = vcmp.lt.s32.totalorder %v808, %v529
    %v810 = vsel %vm809, 1, 0
    %811 = vset.pattern.permute.xlu0 0
    %812 = vperm.xlu0 %811, %v810
    %v813 = vpop.permute.xlu0 %812
    %vm814 = vcmp.eq.s32.totalorder %v813, 1
    %v815 = vsel %vm814, %v807, %v531
    %v816 = vsel %vm814, %v805, %v532
    %v817 = vsel %vm814, %v807, 0.0
    %v818 = vpack.c.bf16 %v817, %v817
    %819 = vst [vmem:[#allocation9] sm:$0xf] %v818
    %s820 = scalar_lea.vmem [#allocation2], 32
    %v821 = vld [vmem:[%s820] sm:$0xff]
    %v822 = vld [vmem:[%s820 + $0x8] sm:$0xff]
    %v823 = vld [vmem:[%s820 + $0x10] sm:$0xff]
    %v824 = vld [vmem:[%s820 + $0x18] sm:$0xff]
    %v825 = vpack.c.bf16 %v815, %v815
    %826 = vmatprep.subr.bf16.mxu0 %v635
    %827 = vmatpush1.bf16.msra.mxu0 %v634
    %828 = vmatprep.subr.bf16.mxu0 %v639
    %829 = vmatpush1.bf16.msra.mxu0 %v638
    %830 = vmatprep.subr.bf16.mxu0 %v643
    %831 = vmatpush1.bf16.msra.mxu0 %v642
    %832 = vmatprep.subr.bf16.mxu0 %v647
    %833 = vmatpush1.bf16.msra.mxu0 %v646
    %834 = vmatprep.subr.bf16.mxu0 %v651
    %835 = vmatpush1.bf16.msra.mxu0 %v650
    %836 = vmatprep.subr.bf16.mxu0 %v655
    %837 = vmatpush1.bf16.msra.mxu0 %v654
    %838 = vmatprep.subr.bf16.mxu0 %v659
    %839 = vmatpush1.bf16.msra.mxu0 %v658
    %840 = vmatprep.subr.bf16.mxu0 %v663
    %841 = vmatpush1.bf16.msra.mxu0 %v662
    %842 = vmatprep.subr.bf16.mxu0 0
    %843 = vmatpush1.bf16.msra.mxu0 0
    %844 = vmatprep.subr.bf16.mxu0 0
    %845 = vmatpush1.bf16.msra.mxu0 0
    %846 = vmatprep.subr.bf16.mxu0 0
    %847 = vmatpush1.bf16.msra.mxu0 0
    %848 = vmatprep.subr.bf16.mxu0 0
    %849 = vmatpush1.bf16.msra.mxu0 0
    %850 = vmatprep.subr.bf16.mxu0 0
    %851 = vmatpush1.bf16.msra.mxu0 0
    %852 = vmatprep.subr.bf16.mxu0 0
    %853 = vmatpush1.bf16.msra.mxu0 0
    %854 = vmatprep.subr.bf16.mxu0 0
    %855 = vmatpush1.bf16.msra.mxu0 0
    %856 = vmatprep.subr.bf16.mxu0 0
    %857 = vmatpush1.bf16.msra.mxu0 0
    %858 = vmatprep.mubr.bf16.mxu0 0
    %859 = vmatmul.mubr.bf16.gmra.mrb[0].mxu0 %v825
    %v860 = vpop.f32.mrb[0].mxu0
    %v861 = vadd.f32 0.0, %v860
    %v862 = vpop.f32.mrb[0].mxu0
    %v863 = vadd.f32 0.0, %v862
    %v864 = vpop.f32.mrb[0].mxu0
    %v865 = vpop.f32.mrb[0].mxu0
    %866 = vdwg.mxu0
    %867 = vmatprep.subr.bf16.mxu0 %v637
    %868 = vmatpush1.bf16.msra.mxu0 %v636
    %869 = vmatprep.subr.bf16.mxu0 %v641
    %870 = vmatpush1.bf16.msra.mxu0 %v640
    %871 = vmatprep.subr.bf16.mxu0 %v645
    %872 = vmatpush1.bf16.msra.mxu0 %v644
    %873 = vmatprep.subr.bf16.mxu0 %v649
    %874 = vmatpush1.bf16.msra.mxu0 %v648
    %875 = vmatprep.subr.bf16.mxu0 %v653
    %876 = vmatpush1.bf16.msra.mxu0 %v652
    %877 = vmatprep.subr.bf16.mxu0 %v657
    %878 = vmatpush1.bf16.msra.mxu0 %v656
    %879 = vmatprep.subr.bf16.mxu0 %v661
    %880 = vmatpush1.bf16.msra.mxu0 %v660
    %881 = vmatprep.subr.bf16.mxu0 %v665
    %882 = vmatpush1.bf16.msra.mxu0 %v664
    %883 = vmatprep.subr.bf16.mxu0 0
    %884 = vmatpush1.bf16.msra.mxu0 0
    %885 = vmatprep.subr.bf16.mxu0 0
    %886 = vmatpush1.bf16.msra.mxu0 0
    %887 = vmatprep.subr.bf16.mxu0 0
    %888 = vmatpush1.bf16.msra.mxu0 0
    %889 = vmatprep.subr.bf16.mxu0 0
    %890 = vmatpush1.bf16.msra.mxu0 0
    %891 = vmatprep.subr.bf16.mxu0 0
    %892 = vmatpush1.bf16.msra.mxu0 0
    %893 = vmatprep.subr.bf16.mxu0 0
    %894 = vmatpush1.bf16.msra.mxu0 0
    %895 = vmatprep.subr.bf16.mxu0 0
    %896 = vmatpush1.bf16.msra.mxu0 0
    %897 = vmatprep.subr.bf16.mxu0 0
    %898 = vmatpush1.bf16.msra.mxu0 0
    %899 = vmatprep.mubr.bf16.mxu0 0
    %900 = vmatmul.mubr.bf16.gmra.mrb[0].mxu0 %v825
    %v901 = vpop.f32.mrb[0].mxu0
    %v902 = vadd.f32 0.0, %v901
    %v903 = vpop.f32.mrb[0].mxu0
    %v904 = vadd.f32 0.0, %v903
    %v905 = vpop.f32.mrb[0].mxu0
    %v906 = vpop.f32.mrb[0].mxu0
    %907 = vdwg.mxu0
    %v908 = vadd.f32 %v821, %v861
    %v909 = vadd.f32 %v822, %v863
    %v910 = vadd.f32 %v823, %v902
    %v911 = vadd.f32 %v824, %v904
    %v912 = vxor.u32 %v908, 2147483648
    %v913 = vmul.f32 %v912, 1.442695
    %v914 = vpow.pop %v913
    %v915 = vadd.f32 %v914, 1.0
    %v916 = vrcp.pop %v915
    %v917 = vmul.f32 1.0, %v916
    %v918 = vxor.u32 %v909, 2147483648
    %v919 = vmul.f32 %v918, 1.442695
    %v920 = vpow.pop %v919
    %v921 = vadd.f32 %v920, 1.0
    %v922 = vrcp.pop %v921
    %v923 = vmul.f32 1.0, %v922
    %v924 = vtanh.pop %v910
    %v925 = vxor.u32 %v911, 2147483648
    %v926 = vmul.f32 %v925, 1.442695
    %v927 = vpow.pop %v926
    %v928 = vadd.f32 %v927, 1.0
    %v929 = vrcp.pop %v928
    %v930 = vmul.f32 1.0, %v929
    %v931 = vmul.f32 %v923, %v816
    %v932 = vmul.f32 %v917, %v924
    %v933 = vadd.f32 %v931, %v932
    %v934 = vtanh.pop %v933
    %v935 = vmul.f32 %v930, %v934
    %s936 = sadd.s32 %s530, 1
    %v937 = vstv %s936
    %vm938 = vcmp.lt.s32.totalorder %v937, %v529
    %v939 = vsel %vm938, 1, 0
    %940 = vset.pattern.permute.xlu0 0
    %941 = vperm.xlu0 %940, %v939
    %v942 = vpop.permute.xlu0 %941
    %vm943 = vcmp.eq.s32.totalorder %v942, 1
    %v944 = vsel %vm943, %v935, %v815
    %v945 = vsel %vm943, %v933, %v816
    %v946 = vsel %vm943, %v935, 0.0
    %v947 = vpack.c.bf16 %v946, %v946
    %s948 = scalar_lea.vmem [#allocation9], 4
    %949 = vst [vmem:[%s948] sm:$0xf] %v947
    %s950 = scalar_lea.vmem [#allocation2], 64
    %v951 = vld [vmem:[%s950] sm:$0xff]
    %v952 = vld [vmem:[%s950 + $0x8] sm:$0xff]
    %v953 = vld [vmem:[%s950 + $0x10] sm:$0xff]
    %v954 = vld [vmem:[%s950 + $0x18] sm:$0xff]
    %v955 = vpack.c.bf16 %v944, %v944
    %956 = vmatprep.subr.bf16.mxu0 %v635
    %957 = vmatpush1.bf16.msra.mxu0 %v634
    %958 = vmatprep.subr.bf16.mxu0 %v639
    %959 = vmatpush1.bf16.msra.mxu0 %v638
    %960 = vmatprep.subr.bf16.mxu0 %v643
    %961 = vmatpush1.bf16.msra.mxu0 %v642
    %962 = vmatprep.subr.bf16.mxu0 %v647
    %963 = vmatpush1.bf16.msra.mxu0 %v646
    %964 = vmatprep.subr.bf16.mxu0 %v651
    %965 = vmatpush1.bf16.msra.mxu0 %v650
    %966 = vmatprep.subr.bf16.mxu0 %v655
    %967 = vmatpush1.bf16.msra.mxu0 %v654
    %968 = vmatprep.subr.bf16.mxu0 %v659
    %969 = vmatpush1.bf16.msra.mxu0 %v658
    %970 = vmatprep.subr.bf16.mxu0 %v663
    %971 = vmatpush1.bf16.msra.mxu0 %v662
    %972 = vmatprep.subr.bf16.mxu0 0
    %973 = vmatpush1.bf16.msra.mxu0 0
    %974 = vmatprep.subr.bf16.mxu0 0
    %975 = vmatpush1.bf16.msra.mxu0 0
    %976 = vmatprep.subr.bf16.mxu0 0
    %977 = vmatpush1.bf16.msra.mxu0 0
    %978 = vmatprep.subr.bf16.mxu0 0
    %979 = vmatpush1.bf16.msra.mxu0 0
    %980 = vmatprep.subr.bf16.mxu0 0
    %981 = vmatpush1.bf16.msra.mxu0 0
    %982 = vmatprep.subr.bf16.mxu0 0
    %983 = vmatpush1.bf16.msra.mxu0 0
    %984 = vmatprep.subr.bf16.mxu0 0
    %985 = vmatpush1.bf16.msra.mxu0 0
    %986 = vmatprep.subr.bf16.mxu0 0
    %987 = vmatpush1.bf16.msra.mxu0 0
    %988 = vmatprep.mubr.bf16.mxu0 0
    %989 = vmatmul.mubr.bf16.gmra.mrb[0].mxu0 %v955
    %v990 = vpop.f32.mrb[0].mxu0
    %v991 = vadd.f32 0.0, %v990
    %v992 = vpop.f32.mrb[0].mxu0
    %v993 = vadd.f32 0.0, %v992
    %v994 = vpop.f32.mrb[0].mxu0
    %v995 = vpop.f32.mrb[0].mxu0
    %996 = vdwg.mxu0
    %997 = vmatprep.subr.bf16.mxu0 %v637
    %998 = vmatpush1.bf16.msra.mxu0 %v636
    %999 = vmatprep.subr.bf16.mxu0 %v641
    %1000 = vmatpush1.bf16.msra.mxu0 %v640
    %1001 = vmatprep.subr.bf16.mxu0 %v645
    %1002 = vmatpush1.bf16.msra.mxu0 %v644
    %1003 = vmatprep.subr.bf16.mxu0 %v649
    %1004 = vmatpush1.bf16.msra.mxu0 %v648
    %1005 = vmatprep.subr.bf16.mxu0 %v653
    %1006 = vmatpush1.bf16.msra.mxu0 %v652
    %1007 = vmatprep.subr.bf16.mxu0 %v657
    %1008 = vmatpush1.bf16.msra.mxu0 %v656
    %1009 = vmatprep.subr.bf16.mxu0 %v661
    %1010 = vmatpush1.bf16.msra.mxu0 %v660
    %1011 = vmatprep.subr.bf16.mxu0 %v665
    %1012 = vmatpush1.bf16.msra.mxu0 %v664
    %1013 = vmatprep.subr.bf16.mxu0 0
    %1014 = vmatpush1.bf16.msra.mxu0 0
    %1015 = vmatprep.subr.bf16.mxu0 0
    %1016 = vmatpush1.bf16.msra.mxu0 0
    %1017 = vmatprep.subr.bf16.mxu0 0
    %1018 = vmatpush1.bf16.msra.mxu0 0
    %1019 = vmatprep.subr.bf16.mxu0 0
    %1020 = vmatpush1.bf16.msra.mxu0 0
    %1021 = vmatprep.subr.bf16.mxu0 0
    %1022 = vmatpush1.bf16.msra.mxu0 0
    %1023 = vmatprep.subr.bf16.mxu0 0
    %1024 = vmatpush1.bf16.msra.mxu0 0
    %1025 = vmatprep.subr.bf16.mxu0 0
    %1026 = vmatpush1.bf16.msra.mxu0 0
    %1027 = vmatprep.subr.bf16.mxu0 0
    %1028 = vmatpush1.bf16.msra.mxu0 0
    %1029 = vmatprep.mubr.bf16.mxu0 0
    %1030 = vmatmul.mubr.bf16.gmra.mrb[0].mxu0 %v955
    %v1031 = vpop.f32.mrb[0].mxu0
    %v1032 = vadd.f32 0.0, %v1031
    %v1033 = vpop.f32.mrb[0].mxu0
    %v1034 = vadd.f32 0.0, %v1033
    %v1035 = vpop.f32.mrb[0].mxu0
    %v1036 = vpop.f32.mrb[0].mxu0
    %1037 = vdwg.mxu0
    %v1038 = vadd.f32 %v951, %v991
    %v1039 = vadd.f32 %v952, %v993
    %v1040 = vadd.f32 %v953, %v1032
    %v1041 = vadd.f32 %v954, %v1034
    %v1042 = vxor.u32 %v1038, 2147483648
    %v1043 = vmul.f32 %v1042, 1.442695
    %v1044 = vpow.pop %v1043
    %v1045 = vadd.f32 %v1044, 1.0
    %v1046 = vrcp.pop %v1045
    %v1047 = vmul.f32 1.0, %v1046
    %v1048 = vxor.u32 %v1039, 2147483648
    %v1049 = vmul.f32 %v1048, 1.442695
    %v1050 = vpow.pop %v1049
    %v1051 = vadd.f32 %v1050, 1.0
    %v1052 = vrcp.pop %v1051
    %v1053 = vmul.f32 1.0, %v1052
    %v1054 = vtanh.pop %v1040
    %v1055 = vxor.u32 %v1041, 2147483648
    %v1056 = vmul.f32 %v1055, 1.442695
    %v1057 = vpow.pop %v1056
    %v1058 = vadd.f32 %v1057, 1.0
    %v1059 = vrcp.pop %v1058
    %v1060 = vmul.f32 1.0, %v1059
    %v1061 = vmul.f32 %v1053, %v945
    %v1062 = vmul.f32 %v1047, %v1054
    %v1063 = vadd.f32 %v1061, %v1062
    %v1064 = vtanh.pop %v1063
    %v1065 = vmul.f32 %v1060, %v1064
    %s1066 = sadd.s32 %s530, 2
    %v1067 = vstv %s1066
    %vm1068 = vcmp.lt.s32.totalorder %v1067, %v529
    %v1069 = vsel %vm1068, 1, 0
    %1070 = vset.pattern.permute.xlu0 0
    %1071 = vperm.xlu0 %1070, %v1069
    %v1072 = vpop.permute.xlu0 %1071
    %vm1073 = vcmp.eq.s32.totalorder %v1072, 1
    %v1074 = vsel %vm1073, %v1065, %v944
    %v1075 = vsel %vm1073, %v1063, %v945
    %v1076 = vsel %vm1073, %v1065, 0.0
    %v1077 = vpack.c.bf16 %v1076, %v1076
    %s1078 = scalar_lea.vmem [#allocation9], 8
    %1079 = vst [vmem:[%s1078] sm:$0xf] %v1077
    %s1080 = scalar_lea.vmem [#allocation2], 96
    %v1081 = vld [vmem:[%s1080] sm:$0xff]
    %v1082 = vld [vmem:[%s1080 + $0x8] sm:$0xff]
    %v1083 = vld [vmem:[%s1080 + $0x10] sm:$0xff]
    %v1084 = vld [vmem:[%s1080 + $0x18] sm:$0xff]
    %v1085 = vpack.c.bf16 %v1074, %v1074
    %1086 = vmatprep.subr.bf16.mxu0 %v635
    %1087 = vmatpush1.bf16.msra.mxu0 %v634
    %1088 = vmatprep.subr.bf16.mxu0 %v639
    %1089 = vmatpush1.bf16.msra.mxu0 %v638
    %1090 = vmatprep.subr.bf16.mxu0 %v643
    %1091 = vmatpush1.bf16.msra.mxu0 %v642
    %1092 = vmatprep.subr.bf16.mxu0 %v647
    %1093 = vmatpush1.bf16.msra.mxu0 %v646
    %1094 = vmatprep.subr.bf16.mxu0 %v651
    %1095 = vmatpush1.bf16.msra.mxu0 %v650
    %1096 = vmatprep.subr.bf16.mxu0 %v655
    %1097 = vmatpush1.bf16.msra.mxu0 %v654
    %1098 = vmatprep.subr.bf16.mxu0 %v659
    %1099 = vmatpush1.bf16.msra.mxu0 %v658
    %1100 = vmatprep.subr.bf16.mxu0 %v663
    %1101 = vmatpush1.bf16.msra.mxu0 %v662
    %1102 = vmatprep.subr.bf16.mxu0 0
    %1103 = vmatpush1.bf16.msra.mxu0 0
    %1104 = vmatprep.subr.bf16.mxu0 0
    %1105 = vmatpush1.bf16.msra.mxu0 0
    %1106 = vmatprep.subr.bf16.mxu0 0
    %1107 = vmatpush1.bf16.msra.mxu0 0
    %1108 = vmatprep.subr.bf16.mxu0 0
    %1109 = vmatpush1.bf16.msra.mxu0 0
    %1110 = vmatprep.subr.bf16.mxu0 0
    %1111 = vmatpush1.bf16.msra.mxu0 0
    %1112 = vmatprep.subr.bf16.mxu0 0
    %1113 = vmatpush1.bf16.msra.mxu0 0
    %1114 = vmatprep.subr.bf16.mxu0 0
    %1115 = vmatpush1.bf16.msra.mxu0 0
    %1116 = vmatprep.subr.bf16.mxu0 0
    %1117 = vmatpush1.bf16.msra.mxu0 0
    %1118 = vmatprep.mubr.bf16.mxu0 0
    %1119 = vmatmul.mubr.bf16.gmra.mrb[0].mxu0 %v1085
    %v1120 = vpop.f32.mrb[0].mxu0
    %v1121 = vadd.f32 0.0, %v1120
    %v1122 = vpop.f32.mrb[0].mxu0
    %v1123 = vadd.f32 0.0, %v1122
    %v1124 = vpop.f32.mrb[0].mxu0
    %v1125 = vpop.f32.mrb[0].mxu0
    %1126 = vdwg.mxu0
    %1127 = vmatprep.subr.bf16.mxu0 %v637
    %1128 = vmatpush1.bf16.msra.mxu0 %v636
    %1129 = vmatprep.subr.bf16.mxu0 %v641
    %1130 = vmatpush1.bf16.msra.mxu0 %v640
    %1131 = vmatprep.subr.bf16.mxu0 %v645
    %1132 = vmatpush1.bf16.msra.mxu0 %v644
    %1133 = vmatprep.subr.bf16.mxu0 %v649
    %1134 = vmatpush1.bf16.msra.mxu0 %v648
    %1135 = vmatprep.subr.bf16.mxu0 %v653
    %1136 = vmatpush1.bf16.msra.mxu0 %v652
    %1137 = vmatprep.subr.bf16.mxu0 %v657
    %1138 = vmatpush1.bf16.msra.mxu0 %v656
    %1139 = vmatprep.subr.bf16.mxu0 %v661
    %1140 = vmatpush1.bf16.msra.mxu0 %v660
    %1141 = vmatprep.subr.bf16.mxu0 %v665
    %1142 = vmatpush1.bf16.msra.mxu0 %v664
    %1143 = vmatprep.subr.bf16.mxu0 0
    %1144 = vmatpush1.bf16.msra.mxu0 0
    %1145 = vmatprep.subr.bf16.mxu0 0
    %1146 = vmatpush1.bf16.msra.mxu0 0
    %1147 = vmatprep.subr.bf16.mxu0 0
    %1148 = vmatpush1.bf16.msra.mxu0 0
    %1149 = vmatprep.subr.bf16.mxu0 0
    %1150 = vmatpush1.bf16.msra.mxu0 0
    %1151 = vmatprep.subr.bf16.mxu0 0
    %1152 = vmatpush1.bf16.msra.mxu0 0
    %1153 = vmatprep.subr.bf16.mxu0 0
    %1154 = vmatpush1.bf16.msra.mxu0 0
    %1155 = vmatprep.subr.bf16.mxu0 0
    %1156 = vmatpush1.bf16.msra.mxu0 0
    %1157 = vmatprep.subr.bf16.mxu0 0
    %1158 = vmatpush1.bf16.msra.mxu0 0
    %1159 = vmatprep.mubr.bf16.mxu0 0
    %1160 = vmatmul.mubr.bf16.gmra.mrb[0].mxu0 %v1085
    %v1161 = vpop.f32.mrb[0].mxu0
    %v1162 = vadd.f32 0.0, %v1161
    %v1163 = vpop.f32.mrb[0].mxu0
    %v1164 = vadd.f32 0.0, %v1163
    %v1165 = vpop.f32.mrb[0].mxu0
    %v1166 = vpop.f32.mrb[0].mxu0
    %1167 = vdwg.mxu0
    %v1168 = vadd.f32 %v1081, %v1121
    %v1169 = vadd.f32 %v1082, %v1123
    %v1170 = vadd.f32 %v1083, %v1162
    %v1171 = vadd.f32 %v1084, %v1164
    %v1172 = vxor.u32 %v1168, 2147483648
    %v1173 = vmul.f32 %v1172, 1.442695
    %v1174 = vpow.pop %v1173
    %v1175 = vadd.f32 %v1174, 1.0
    %v1176 = vrcp.pop %v1175
    %v1177 = vmul.f32 1.0, %v1176
    %v1178 = vxor.u32 %v1169, 2147483648
    %v1179 = vmul.f32 %v1178, 1.442695
    %v1180 = vpow.pop %v1179
    %v1181 = vadd.f32 %v1180, 1.0
    %v1182 = vrcp.pop %v1181
    %v1183 = vmul.f32 1.0, %v1182
    %v1184 = vtanh.pop %v1170
    %v1185 = vxor.u32 %v1171, 2147483648
    %v1186 = vmul.f32 %v1185, 1.442695
    %v1187 = vpow.pop %v1186
    %v1188 = vadd.f32 %v1187, 1.0
    %v1189 = vrcp.pop %v1188
    %v1190 = vmul.f32 1.0, %v1189
    %v1191 = vmul.f32 %v1183, %v1075
    %v1192 = vmul.f32 %v1177, %v1184
    %v1193 = vadd.f32 %v1191, %v1192
    %v1194 = vtanh.pop %v1193
    %v1195 = vmul.f32 %v1190, %v1194
    %s1196 = sadd.s32 %s530, 3
    %v1197 = vstv %s1196
    %vm1198 = vcmp.lt.s32.totalorder %v1197, %v529
    %v1199 = vsel %vm1198, 1, 0
    %1200 = vset.pattern.permute.xlu0 0
    %1201 = vperm.xlu0 %1200, %v1199
    %v1202 = vpop.permute.xlu0 %1201
    %vm1203 = vcmp.eq.s32.totalorder %v1202, 1
    %v1204 = vsel %vm1203, %v1195, %v1074
    %v1205 = vsel %vm1203, %v1193, %v1075
    %v1206 = vsel %vm1203, %v1195, 0.0
    %v1207 = vpack.c.bf16 %v1206, %v1206
    %s1208 = scalar_lea.vmem [#allocation9], 12
    %1209 = vst [vmem:[%s1208] sm:$0xf] %v1207
    %s1210 = scalar_lea.vmem [#allocation2], 128
    %v1211 = vld [vmem:[%s1210] sm:$0xff]
    %v1212 = vld [vmem:[%s1210 + $0x8] sm:$0xff]
    %v1213 = vld [vmem:[%s1210 + $0x10] sm:$0xff]
    %v1214 = vld [vmem:[%s1210 + $0x18] sm:$0xff]
    %v1215 = vpack.c.bf16 %v1204, %v1204
    %1216 = vmatprep.subr.bf16.mxu0 %v635
    %1217 = vmatpush1.bf16.msra.mxu0 %v634
    %1218 = vmatprep.subr.bf16.mxu0 %v639
    %1219 = vmatpush1.bf16.msra.mxu0 %v638
    %1220 = vmatprep.subr.bf16.mxu0 %v643
    %1221 = vmatpush1.bf16.msra.mxu0 %v642
    %1222 = vmatprep.subr.bf16.mxu0 %v647
    %1223 = vmatpush1.bf16.msra.mxu0 %v646
    %1224 = vmatprep.subr.bf16.mxu0 %v651
    %1225 = vmatpush1.bf16.msra.mxu0 %v650
    %1226 = vmatprep.subr.bf16.mxu0 %v655
    %1227 = vmatpush1.bf16.msra.mxu0 %v654
    %1228 = vmatprep.subr.bf16.mxu0 %v659
    %1229 = vmatpush1.bf16.msra.mxu0 %v658
    %1230 = vmatprep.subr.bf16.mxu0 %v663
    %1231 = vmatpush1.bf16.msra.mxu0 %v662
    %1232 = vmatprep.subr.bf16.mxu0 0
    %1233 = vmatpush1.bf16.msra.mxu0 0
    %1234 = vmatprep.subr.bf16.mxu0 0
    %1235 = vmatpush1.bf16.msra.mxu0 0
    %1236 = vmatprep.subr.bf16.mxu0 0
    %1237 = vmatpush1.bf16.msra.mxu0 0
    %1238 = vmatprep.subr.bf16.mxu0 0
    %1239 = vmatpush1.bf16.msra.mxu0 0
    %1240 = vmatprep.subr.bf16.mxu0 0
    %1241 = vmatpush1.bf16.msra.mxu0 0
    %1242 = vmatprep.subr.bf16.mxu0 0
    %1243 = vmatpush1.bf16.msra.mxu0 0
    %1244 = vmatprep.subr.bf16.mxu0 0
    %1245 = vmatpush1.bf16.msra.mxu0 0
    %1246 = vmatprep.subr.bf16.mxu0 0
    %1247 = vmatpush1.bf16.msra.mxu0 0
    %1248 = vmatprep.mubr.bf16.mxu0 0
    %1249 = vmatmul.mubr.bf16.gmra.mrb[0].mxu0 %v1215
    %v1250 = vpop.f32.mrb[0].mxu0
    %v1251 = vadd.f32 0.0, %v1250
    %v1252 = vpop.f32.mrb[0].mxu0
    %v1253 = vadd.f32 0.0, %v1252
    %v1254 = vpop.f32.mrb[0].mxu0
    %v1255 = vpop.f32.mrb[0].mxu0
    %1256 = vdwg.mxu0
    %1257 = vmatprep.subr.bf16.mxu0 %v637
    %1258 = vmatpush1.bf16.msra.mxu0 %v636
    %1259 = vmatprep.subr.bf16.mxu0 %v641
    %1260 = vmatpush1.bf16.msra.mxu0 %v640
    %1261 = vmatprep.subr.bf16.mxu0 %v645
    %1262 = vmatpush1.bf16.msra.mxu0 %v644
    %1263 = vmatprep.subr.bf16.mxu0 %v649
    %1264 = vmatpush1.bf16.msra.mxu0 %v648
    %1265 = vmatprep.subr.bf16.mxu0 %v653
    %1266 = vmatpush1.bf16.msra.mxu0 %v652
    %1267 = vmatprep.subr.bf16.mxu0 %v657
    %1268 = vmatpush1.bf16.msra.mxu0 %v656
    %1269 = vmatprep.subr.bf16.mxu0 %v661
    %1270 = vmatpush1.bf16.msra.mxu0 %v660
    %1271 = vmatprep.subr.bf16.mxu0 %v665
    %1272 = vmatpush1.bf16.msra.mxu0 %v664
    %1273 = vmatprep.subr.bf16.mxu0 0
    %1274 = vmatpush1.bf16.msra.mxu0 0
    %1275 = vmatprep.subr.bf16.mxu0 0
    %1276 = vmatpush1.bf16.msra.mxu0 0
    %1277 = vmatprep.subr.bf16.mxu0 0
    %1278 = vmatpush1.bf16.msra.mxu0 0
    %1279 = vmatprep.subr.bf16.mxu0 0
    %1280 = vmatpush1.bf16.msra.mxu0 0
    %1281 = vmatprep.subr.bf16.mxu0 0
    %1282 = vmatpush1.bf16.msra.mxu0 0
    %1283 = vmatprep.subr.bf16.mxu0 0
    %1284 = vmatpush1.bf16.msra.mxu0 0
    %1285 = vmatprep.subr.bf16.mxu0 0
    %1286 = vmatpush1.bf16.msra.mxu0 0
    %1287 = vmatprep.subr.bf16.mxu0 0
    %1288 = vmatpush1.bf16.msra.mxu0 0
    %1289 = vmatprep.mubr.bf16.mxu0 0
    %1290 = vmatmul.mubr.bf16.gmra.mrb[0].mxu0 %v1215
    %v1291 = vpop.f32.mrb[0].mxu0
    %v1292 = vadd.f32 0.0, %v1291
    %v1293 = vpop.f32.mrb[0].mxu0
    %v1294 = vadd.f32 0.0, %v1293
    %v1295 = vpop.f32.mrb[0].mxu0
    %v1296 = vpop.f32.mrb[0].mxu0
    %1297 = vdwg.mxu0
    %v1298 = vadd.f32 %v1211, %v1251
    %v1299 = vadd.f32 %v1212, %v1253
    %v1300 = vadd.f32 %v1213, %v1292
    %v1301 = vadd.f32 %v1214, %v1294
    %v1302 = vxor.u32 %v1298, 2147483648
    %v1303 = vmul.f32 %v1302, 1.442695
    %v1304 = vpow.pop %v1303
    %v1305 = vadd.f32 %v1304, 1.0
    %v1306 = vrcp.pop %v1305
    %v1307 = vmul.f32 1.0, %v1306
    %v1308 = vxor.u32 %v1299, 2147483648
    %v1309 = vmul.f32 %v1308, 1.442695
    %v1310 = vpow.pop %v1309
    %v1311 = vadd.f32 %v1310, 1.0
    %v1312 = vrcp.pop %v1311
    %v1313 = vmul.f32 1.0, %v1312
    %v1314 = vtanh.pop %v1300
    %v1315 = vxor.u32 %v1301, 2147483648
    %v1316 = vmul.f32 %v1315, 1.442695
    %v1317 = vpow.pop %v1316
    %v1318 = vadd.f32 %v1317, 1.0
    %v1319 = vrcp.pop %v1318
    %v1320 = vmul.f32 1.0, %v1319
    %v1321 = vmul.f32 %v1313, %v1205
    %v1322 = vmul.f32 %v1307, %v1314
    %v1323 = vadd.f32 %v1321, %v1322
    %v1324 = vtanh.pop %v1323
    %v1325 = vmul.f32 %v1320, %v1324
    %s1326 = sadd.s32 %s530, 4
    %v1327 = vstv %s1326
    %vm1328 = vcmp.lt.s32.totalorder %v1327, %v529
    %v1329 = vsel %vm1328, 1, 0
    %1330 = vset.pattern.permute.xlu0 0
    %1331 = vperm.xlu0 %1330, %v1329
    %v1332 = vpop.permute.xlu0 %1331
    %vm1333 = vcmp.eq.s32.totalorder %v1332, 1
    %v1334 = vsel %vm1333, %v1325, %v1204
    %v1335 = vsel %vm1333, %v1323, %v1205
    %v1336 = vsel %vm1333, %v1325, 0.0
    %v1337 = vpack.c.bf16 %v1336, %v1336
    %s1338 = scalar_lea.vmem [#allocation9], 16
    %1339 = vst [vmem:[%s1338] sm:$0xf] %v1337
    %s1340 = scalar_lea.vmem [#allocation2], 160
    %v1341 = vld [vmem:[%s1340] sm:$0xff]
    %v1342 = vld [vmem:[%s1340 + $0x8] sm:$0xff]
    %v1343 = vld [vmem:[%s1340 + $0x10] sm:$0xff]
    %v1344 = vld [vmem:[%s1340 + $0x18] sm:$0xff]
    %v1345 = vpack.c.bf16 %v1334, %v1334
    %1346 = vmatprep.subr.bf16.mxu0 %v635
    %1347 = vmatpush1.bf16.msra.mxu0 %v634
    %1348 = vmatprep.subr.bf16.mxu0 %v639
    %1349 = vmatpush1.bf16.msra.mxu0 %v638
    %1350 = vmatprep.subr.bf16.mxu0 %v643
    %1351 = vmatpush1.bf16.msra.mxu0 %v642
    %1352 = vmatprep.subr.bf16.mxu0 %v647
    %1353 = vmatpush1.bf16.msra.mxu0 %v646
    %1354 = vmatprep.subr.bf16.mxu0 %v651
    %1355 = vmatpush1.bf16.msra.mxu0 %v650
    %1356 = vmatprep.subr.bf16.mxu0 %v655
    %1357 = vmatpush1.bf16.msra.mxu0 %v654
    %1358 = vmatprep.subr.bf16.mxu0 %v659
    %1359 = vmatpush1.bf16.msra.mxu0 %v658
    %1360 = vmatprep.subr.bf16.mxu0 %v663
    %1361 = vmatpush1.bf16.msra.mxu0 %v662
    %1362 = vmatprep.subr.bf16.mxu0 0
    %1363 = vmatpush1.bf16.msra.mxu0 0
    %1364 = vmatprep.subr.bf16.mxu0 0
    %1365 = vmatpush1.bf16.msra.mxu0 0
    %1366 = vmatprep.subr.bf16.mxu0 0
    %1367 = vmatpush1.bf16.msra.mxu0 0
    %1368 = vmatprep.subr.bf16.mxu0 0
    %1369 = vmatpush1.bf16.msra.mxu0 0
    %1370 = vmatprep.subr.bf16.mxu0 0
    %1371 = vmatpush1.bf16.msra.mxu0 0
    %1372 = vmatprep.subr.bf16.mxu0 0
    %1373 = vmatpush1.bf16.msra.mxu0 0
    %1374 = vmatprep.subr.bf16.mxu0 0
    %1375 = vmatpush1.bf16.msra.mxu0 0
    %1376 = vmatprep.subr.bf16.mxu0 0
    %1377 = vmatpush1.bf16.msra.mxu0 0
    %1378 = vmatprep.mubr.bf16.mxu0 0
    %1379 = vmatmul.mubr.bf16.gmra.mrb[0].mxu0 %v1345
    %v1380 = vpop.f32.mrb[0].mxu0
    %v1381 = vadd.f32 0.0, %v1380
    %v1382 = vpop.f32.mrb[0].mxu0
    %v1383 = vadd.f32 0.0, %v1382
    %v1384 = vpop.f32.mrb[0].mxu0
    %v1385 = vpop.f32.mrb[0].mxu0
    %1386 = vdwg.mxu0
    %1387 = vmatprep.subr.bf16.mxu0 %v637
    %1388 = vmatpush1.bf16.msra.mxu0 %v636
    %1389 = vmatprep.subr.bf16.mxu0 %v641
    %1390 = vmatpush1.bf16.msra.mxu0 %v640
    %1391 = vmatprep.subr.bf16.mxu0 %v645
    %1392 = vmatpush1.bf16.msra.mxu0 %v644
    %1393 = vmatprep.subr.bf16.mxu0 %v649
    %1394 = vmatpush1.bf16.msra.mxu0 %v648
    %1395 = vmatprep.subr.bf16.mxu0 %v653
    %1396 = vmatpush1.bf16.msra.mxu0 %v652
    %1397 = vmatprep.subr.bf16.mxu0 %v657
    %1398 = vmatpush1.bf16.msra.mxu0 %v656
    %1399 = vmatprep.subr.bf16.mxu0 %v661
    %1400 = vmatpush1.bf16.msra.mxu0 %v660
    %1401 = vmatprep.subr.bf16.mxu0 %v665
    %1402 = vmatpush1.bf16.msra.mxu0 %v664
    %1403 = vmatprep.subr.bf16.mxu0 0
    %1404 = vmatpush1.bf16.msra.mxu0 0
    %1405 = vmatprep.subr.bf16.mxu0 0
    %1406 = vmatpush1.bf16.msra.mxu0 0
    %1407 = vmatprep.subr.bf16.mxu0 0
    %1408 = vmatpush1.bf16.msra.mxu0 0
    %1409 = vmatprep.subr.bf16.mxu0 0
    %1410 = vmatpush1.bf16.msra.mxu0 0
    %1411 = vmatprep.subr.bf16.mxu0 0
    %1412 = vmatpush1.bf16.msra.mxu0 0
    %1413 = vmatprep.subr.bf16.mxu0 0
    %1414 = vmatpush1.bf16.msra.mxu0 0
    %1415 = vmatprep.subr.bf16.mxu0 0
    %1416 = vmatpush1.bf16.msra.mxu0 0
    %1417 = vmatprep.subr.bf16.mxu0 0
    %1418 = vmatpush1.bf16.msra.mxu0 0
    %1419 = vmatprep.mubr.bf16.mxu0 0
    %1420 = vmatmul.mubr.bf16.gmra.mrb[0].mxu0 %v1345
    %v1421 = vpop.f32.mrb[0].mxu0
    %v1422 = vadd.f32 0.0, %v1421
    %v1423 = vpop.f32.mrb[0].mxu0
    %v1424 = vadd.f32 0.0, %v1423
    %v1425 = vpop.f32.mrb[0].mxu0
    %v1426 = vpop.f32.mrb[0].mxu0
    %1427 = vdwg.mxu0
    %v1428 = vadd.f32 %v1341, %v1381
    %v1429 = vadd.f32 %v1342, %v1383
    %v1430 = vadd.f32 %v1343, %v1422
    %v1431 = vadd.f32 %v1344, %v1424
    %v1432 = vxor.u32 %v1428, 2147483648
    %v1433 = vmul.f32 %v1432, 1.442695
    %v1434 = vpow.pop %v1433
    %v1435 = vadd.f32 %v1434, 1.0
    %v1436 = vrcp.pop %v1435
    %v1437 = vmul.f32 1.0, %v1436
    %v1438 = vxor.u32 %v1429, 2147483648
    %v1439 = vmul.f32 %v1438, 1.442695
    %v1440 = vpow.pop %v1439
    %v1441 = vadd.f32 %v1440, 1.0
    %v1442 = vrcp.pop %v1441
    %v1443 = vmul.f32 1.0, %v1442
    %v1444 = vtanh.pop %v1430
    %v1445 = vxor.u32 %v1431, 2147483648
    %v1446 = vmul.f32 %v1445, 1.442695
    %v1447 = vpow.pop %v1446
    %v1448 = vadd.f32 %v1447, 1.0
    %v1449 = vrcp.pop %v1448
    %v1450 = vmul.f32 1.0, %v1449
    %v1451 = vmul.f32 %v1443, %v1335
    %v1452 = vmul.f32 %v1437, %v1444
    %v1453 = vadd.f32 %v1451, %v1452
    %v1454 = vtanh.pop %v1453
    %v1455 = vmul.f32 %v1450, %v1454
    %s1456 = sadd.s32 %s530, 5
    %v1457 = vstv %s1456
    %vm1458 = vcmp.lt.s32.totalorder %v1457, %v529
    %v1459 = vsel %vm1458, 1, 0
    %1460 = vset.pattern.permute.xlu0 0
    %1461 = vperm.xlu0 %1460, %v1459
    %v1462 = vpop.permute.xlu0 %1461
    %vm1463 = vcmp.eq.s32.totalorder %v1462, 1
    %v1464 = vsel %vm1463, %v1455, %v1334
    %v1465 = vsel %vm1463, %v1453, %v1335
    %v1466 = vsel %vm1463, %v1455, 0.0
    %v1467 = vpack.c.bf16 %v1466, %v1466
    %s1468 = scalar_lea.vmem [#allocation9], 20
    %1469 = vst [vmem:[%s1468] sm:$0xf] %v1467
    %s1470 = scalar_lea.vmem [#allocation2], 192
    %v1471 = vld [vmem:[%s1470] sm:$0xff]
    %v1472 = vld [vmem:[%s1470 + $0x8] sm:$0xff]
    %v1473 = vld [vmem:[%s1470 + $0x10] sm:$0xff]
    %v1474 = vld [vmem:[%s1470 + $0x18] sm:$0xff]
    %v1475 = vpack.c.bf16 %v1464, %v1464
    %1476 = vmatprep.subr.bf16.mxu0 %v635
    %1477 = vmatpush1.bf16.msra.mxu0 %v634
    %1478 = vmatprep.subr.bf16.mxu0 %v639
    %1479 = vmatpush1.bf16.msra.mxu0 %v638
    %1480 = vmatprep.subr.bf16.mxu0 %v643
    %1481 = vmatpush1.bf16.msra.mxu0 %v642
    %1482 = vmatprep.subr.bf16.mxu0 %v647
    %1483 = vmatpush1.bf16.msra.mxu0 %v646
    %1484 = vmatprep.subr.bf16.mxu0 %v651
    %1485 = vmatpush1.bf16.msra.mxu0 %v650
    %1486 = vmatprep.subr.bf16.mxu0 %v655
    %1487 = vmatpush1.bf16.msra.mxu0 %v654
    %1488 = vmatprep.subr.bf16.mxu0 %v659
    %1489 = vmatpush1.bf16.msra.mxu0 %v658
    %1490 = vmatprep.subr.bf16.mxu0 %v663
    %1491 = vmatpush1.bf16.msra.mxu0 %v662
    %1492 = vmatprep.subr.bf16.mxu0 0
    %1493 = vmatpush1.bf16.msra.mxu0 0
    %1494 = vmatprep.subr.bf16.mxu0 0
    %1495 = vmatpush1.bf16.msra.mxu0 0
    %1496 = vmatprep.subr.bf16.mxu0 0
    %1497 = vmatpush1.bf16.msra.mxu0 0
    %1498 = vmatprep.subr.bf16.mxu0 0
    %1499 = vmatpush1.bf16.msra.mxu0 0
    %1500 = vmatprep.subr.bf16.mxu0 0
    %1501 = vmatpush1.bf16.msra.mxu0 0
    %1502 = vmatprep.subr.bf16.mxu0 0
    %1503 = vmatpush1.bf16.msra.mxu0 0
    %1504 = vmatprep.subr.bf16.mxu0 0
    %1505 = vmatpush1.bf16.msra.mxu0 0
    %1506 = vmatprep.subr.bf16.mxu0 0
    %1507 = vmatpush1.bf16.msra.mxu0 0
    %1508 = vmatprep.mubr.bf16.mxu0 0
    %1509 = vmatmul.mubr.bf16.gmra.mrb[0].mxu0 %v1475
    %v1510 = vpop.f32.mrb[0].mxu0
    %v1511 = vadd.f32 0.0, %v1510
    %v1512 = vpop.f32.mrb[0].mxu0
    %v1513 = vadd.f32 0.0, %v1512
    %v1514 = vpop.f32.mrb[0].mxu0
    %v1515 = vpop.f32.mrb[0].mxu0
    %1516 = vdwg.mxu0
    %1517 = vmatprep.subr.bf16.mxu0 %v637
    %1518 = vmatpush1.bf16.msra.mxu0 %v636
    %1519 = vmatprep.subr.bf16.mxu0 %v641
    %1520 = vmatpush1.bf16.msra.mxu0 %v640
    %1521 = vmatprep.subr.bf16.mxu0 %v645
    %1522 = vmatpush1.bf16.msra.mxu0 %v644
    %1523 = vmatprep.subr.bf16.mxu0 %v649
    %1524 = vmatpush1.bf16.msra.mxu0 %v648
    %1525 = vmatprep.subr.bf16.mxu0 %v653
    %1526 = vmatpush1.bf16.msra.mxu0 %v652
    %1527 = vmatprep.subr.bf16.mxu0 %v657
    %1528 = vmatpush1.bf16.msra.mxu0 %v656
    %1529 = vmatprep.subr.bf16.mxu0 %v661
    %1530 = vmatpush1.bf16.msra.mxu0 %v660
    %1531 = vmatprep.subr.bf16.mxu0 %v665
    %1532 = vmatpush1.bf16.msra.mxu0 %v664
    %1533 = vmatprep.subr.bf16.mxu0 0
    %1534 = vmatpush1.bf16.msra.mxu0 0
    %1535 = vmatprep.subr.bf16.mxu0 0
    %1536 = vmatpush1.bf16.msra.mxu0 0
    %1537 = vmatprep.subr.bf16.mxu0 0
    %1538 = vmatpush1.bf16.msra.mxu0 0
    %1539 = vmatprep.subr.bf16.mxu0 0
    %1540 = vmatpush1.bf16.msra.mxu0 0
    %1541 = vmatprep.subr.bf16.mxu0 0
    %1542 = vmatpush1.bf16.msra.mxu0 0
    %1543 = vmatprep.subr.bf16.mxu0 0
    %1544 = vmatpush1.bf16.msra.mxu0 0
    %1545 = vmatprep.subr.bf16.mxu0 0
    %1546 = vmatpush1.bf16.msra.mxu0 0
    %1547 = vmatprep.subr.bf16.mxu0 0
    %1548 = vmatpush1.bf16.msra.mxu0 0
    %1549 = vmatprep.mubr.bf16.mxu0 0
    %1550 = vmatmul.mubr.bf16.gmra.mrb[0].mxu0 %v1475
    %v1551 = vpop.f32.mrb[0].mxu0
    %v1552 = vadd.f32 0.0, %v1551
    %v1553 = vpop.f32.mrb[0].mxu0
    %v1554 = vadd.f32 0.0, %v1553
    %v1555 = vpop.f32.mrb[0].mxu0
    %v1556 = vpop.f32.mrb[0].mxu0
    %1557 = vdwg.mxu0
    %v1558 = vadd.f32 %v1471, %v1511
    %v1559 = vadd.f32 %v1472, %v1513
    %v1560 = vadd.f32 %v1473, %v1552
    %v1561 = vadd.f32 %v1474, %v1554
    %v1562 = vxor.u32 %v1558, 2147483648
    %v1563 = vmul.f32 %v1562, 1.442695
    %v1564 = vpow.pop %v1563
    %v1565 = vadd.f32 %v1564, 1.0
    %v1566 = vrcp.pop %v1565
    %v1567 = vmul.f32 1.0, %v1566
    %v1568 = vxor.u32 %v1559, 2147483648
    %v1569 = vmul.f32 %v1568, 1.442695
    %v1570 = vpow.pop %v1569
    %v1571 = vadd.f32 %v1570, 1.0
    %v1572 = vrcp.pop %v1571
    %v1573 = vmul.f32 1.0, %v1572
    %v1574 = vtanh.pop %v1560
    %v1575 = vxor.u32 %v1561, 2147483648
    %v1576 = vmul.f32 %v1575, 1.442695
    %v1577 = vpow.pop %v1576
    %v1578 = vadd.f32 %v1577, 1.0
    %v1579 = vrcp.pop %v1578
    %v1580 = vmul.f32 1.0, %v1579
    %v1581 = vmul.f32 %v1573, %v1465
    %v1582 = vmul.f32 %v1567, %v1574
    %v1583 = vadd.f32 %v1581, %v1582
    %v1584 = vtanh.pop %v1583
    %v1585 = vmul.f32 %v1580, %v1584
    %s1586 = sadd.s32 %s530, 6
    %v1587 = vstv %s1586
    %vm1588 = vcmp.lt.s32.totalorder %v1587, %v529
    %v1589 = vsel %vm1588, 1, 0
    %1590 = vset.pattern.permute.xlu0 0
    %1591 = vperm.xlu0 %1590, %v1589
    %v1592 = vpop.permute.xlu0 %1591
    %vm1593 = vcmp.eq.s32.totalorder %v1592, 1
    %v1594 = vsel %vm1593, %v1585, %v1464
    %v1595 = vsel %vm1593, %v1583, %v1465
    %v1596 = vsel %vm1593, %v1585, 0.0
    %v1597 = vpack.c.bf16 %v1596, %v1596
    %s1598 = scalar_lea.vmem [#allocation9], 24
    %1599 = vst [vmem:[%s1598] sm:$0xf] %v1597
    %s1600 = scalar_lea.vmem [#allocation2], 224
    %v1601 = vld [vmem:[%s1600] sm:$0xff]
    %v1602 = vld [vmem:[%s1600 + $0x8] sm:$0xff]
    %v1603 = vld [vmem:[%s1600 + $0x10] sm:$0xff]
    %v1604 = vld [vmem:[%s1600 + $0x18] sm:$0xff]
    %v1605 = vpack.c.bf16 %v1594, %v1594
    %1606 = vmatprep.subr.bf16.mxu0 %v635
    %1607 = vmatpush1.bf16.msra.mxu0 %v634
    %1608 = vmatprep.subr.bf16.mxu0 %v639
    %1609 = vmatpush1.bf16.msra.mxu0 %v638
    %1610 = vmatprep.subr.bf16.mxu0 %v643
    %1611 = vmatpush1.bf16.msra.mxu0 %v642
    %1612 = vmatprep.subr.bf16.mxu0 %v647
    %1613 = vmatpush1.bf16.msra.mxu0 %v646
    %1614 = vmatprep.subr.bf16.mxu0 %v651
    %1615 = vmatpush1.bf16.msra.mxu0 %v650
    %1616 = vmatprep.subr.bf16.mxu0 %v655
    %1617 = vmatpush1.bf16.msra.mxu0 %v654
    %1618 = vmatprep.subr.bf16.mxu0 %v659
    %1619 = vmatpush1.bf16.msra.mxu0 %v658
    %1620 = vmatprep.subr.bf16.mxu0 %v663
    %1621 = vmatpush1.bf16.msra.mxu0 %v662
    %1622 = vmatprep.subr.bf16.mxu0 0
    %1623 = vmatpush1.bf16.msra.mxu0 0
    %1624 = vmatprep.subr.bf16.mxu0 0
    %1625 = vmatpush1.bf16.msra.mxu0 0
    %1626 = vmatprep.subr.bf16.mxu0 0
    %1627 = vmatpush1.bf16.msra.mxu0 0
    %1628 = vmatprep.subr.bf16.mxu0 0
    %1629 = vmatpush1.bf16.msra.mxu0 0
    %1630 = vmatprep.subr.bf16.mxu0 0
    %1631 = vmatpush1.bf16.msra.mxu0 0
    %1632 = vmatprep.subr.bf16.mxu0 0
    %1633 = vmatpush1.bf16.msra.mxu0 0
    %1634 = vmatprep.subr.bf16.mxu0 0
    %1635 = vmatpush1.bf16.msra.mxu0 0
    %1636 = vmatprep.subr.bf16.mxu0 0
    %1637 = vmatpush1.bf16.msra.mxu0 0
    %1638 = vmatprep.mubr.bf16.mxu0 0
    %1639 = vmatmul.mubr.bf16.gmra.mrb[0].mxu0 %v1605
    %v1640 = vpop.f32.mrb[0].mxu0
    %v1641 = vadd.f32 0.0, %v1640
    %v1642 = vpop.f32.mrb[0].mxu0
    %v1643 = vadd.f32 0.0, %v1642
    %v1644 = vpop.f32.mrb[0].mxu0
    %v1645 = vpop.f32.mrb[0].mxu0
    %1646 = vdwg.mxu0
    %1647 = vmatprep.subr.bf16.mxu0 %v637
    %1648 = vmatpush1.bf16.msra.mxu0 %v636
    %1649 = vmatprep.subr.bf16.mxu0 %v641
    %1650 = vmatpush1.bf16.msra.mxu0 %v640
    %1651 = vmatprep.subr.bf16.mxu0 %v645
    %1652 = vmatpush1.bf16.msra.mxu0 %v644
    %1653 = vmatprep.subr.bf16.mxu0 %v649
    %1654 = vmatpush1.bf16.msra.mxu0 %v648
    %1655 = vmatprep.subr.bf16.mxu0 %v653
    %1656 = vmatpush1.bf16.msra.mxu0 %v652
    %1657 = vmatprep.subr.bf16.mxu0 %v657
    %1658 = vmatpush1.bf16.msra.mxu0 %v656
    %1659 = vmatprep.subr.bf16.mxu0 %v661
    %1660 = vmatpush1.bf16.msra.mxu0 %v660
    %1661 = vmatprep.subr.bf16.mxu0 %v665
    %1662 = vmatpush1.bf16.msra.mxu0 %v664
    %1663 = vmatprep.subr.bf16.mxu0 0
    %1664 = vmatpush1.bf16.msra.mxu0 0
    %1665 = vmatprep.subr.bf16.mxu0 0
    %1666 = vmatpush1.bf16.msra.mxu0 0
    %1667 = vmatprep.subr.bf16.mxu0 0
    %1668 = vmatpush1.bf16.msra.mxu0 0
    %1669 = vmatprep.subr.bf16.mxu0 0
    %1670 = vmatpush1.bf16.msra.mxu0 0
    %1671 = vmatprep.subr.bf16.mxu0 0
    %1672 = vmatpush1.bf16.msra.mxu0 0
    %1673 = vmatprep.subr.bf16.mxu0 0
    %1674 = vmatpush1.bf16.msra.mxu0 0
    %1675 = vmatprep.subr.bf16.mxu0 0
    %1676 = vmatpush1.bf16.msra.mxu0 0
    %1677 = vmatprep.subr.bf16.mxu0 0
    %1678 = vmatpush1.bf16.msra.mxu0 0
    %1679 = vmatprep.mubr.bf16.mxu0 0
    %1680 = vmatmul.mubr.bf16.gmra.mrb[0].mxu0 %v1605
    %v1681 = vpop.f32.mrb[0].mxu0
    %v1682 = vadd.f32 0.0, %v1681
    %v1683 = vpop.f32.mrb[0].mxu0
    %v1684 = vadd.f32 0.0, %v1683
    %v1685 = vpop.f32.mrb[0].mxu0
    %v1686 = vpop.f32.mrb[0].mxu0
    %1687 = vdwg.mxu0
    %v1688 = vadd.f32 %v1601, %v1641
    %v1689 = vadd.f32 %v1602, %v1643
    %v1690 = vadd.f32 %v1603, %v1682
    %v1691 = vadd.f32 %v1604, %v1684
    %v1692 = vxor.u32 %v1688, 2147483648
    %v1693 = vmul.f32 %v1692, 1.442695
    %v1694 = vpow.pop %v1693
    %v1695 = vadd.f32 %v1694, 1.0
    %v1696 = vrcp.pop %v1695
    %v1697 = vmul.f32 1.0, %v1696
    %v1698 = vxor.u32 %v1689, 2147483648
    %v1699 = vmul.f32 %v1698, 1.442695
    %v1700 = vpow.pop %v1699
    %v1701 = vadd.f32 %v1700, 1.0
    %v1702 = vrcp.pop %v1701
    %v1703 = vmul.f32 1.0, %v1702
    %v1704 = vtanh.pop %v1690
    %v1705 = vxor.u32 %v1691, 2147483648
    %v1706 = vmul.f32 %v1705, 1.442695
    %v1707 = vpow.pop %v1706
    %v1708 = vadd.f32 %v1707, 1.0
    %v1709 = vrcp.pop %v1708
    %v1710 = vmul.f32 1.0, %v1709
    %v1711 = vmul.f32 %v1703, %v1595
    %v1712 = vmul.f32 %v1697, %v1704
    %v1713 = vadd.f32 %v1711, %v1712
    %v1714 = vtanh.pop %v1713
    %v1715 = vmul.f32 %v1710, %v1714
    %s1716 = sadd.s32 %s530, 7
    %v1717 = vstv %s1716
    %vm1718 = vcmp.lt.s32.totalorder %v1717, %v529
    %v1719 = vsel %vm1718, 1, 0
    %1720 = vset.pattern.permute.xlu0 0
    %1721 = vperm.xlu0 %1720, %v1719
    %v1722 = vpop.permute.xlu0 %1721
    %vm1723 = vcmp.eq.s32.totalorder %v1722, 1
    %v1724 = vsel %vm1723, %v1715, %v1594
    %v1725 = vsel %vm1723, %v1713, %v1595
    %v1726 = vsel %vm1723, %v1715, 0.0
    %v1727 = vpack.c.bf16 %v1726, %v1726
    %s1728 = scalar_lea.vmem [#allocation9], 28
    %1729 = vst [vmem:[%s1728] sm:$0xf] %v1727
    %1730 = vst [vmem:[#allocation10] sm:$0xff] %v1724
    %1731 = vst [vmem:[#allocation12] sm:$0xff] %v1725
    // Predicated region
    $region38: #{tpu_custom_call.1} parent=1 // pred_check
      _
    $region39: #{tpu_custom_call.1} parent=1 // pred_check_branch
      %1733 = sbr.rel (0) target = $region41
    $region40: #{tpu_custom_call.1} parent=1 // pred_region
      %s1735 = ssub.s32 512, 512
      %1736 = vsyncadd [#allocation5], %s1735
      %s1737 = sshll.u32 [#allocation9], 4
      %s1738 = int_to_ptr.vmem [resolvable:$true] %s1737
      %1743 = dma.vmem_to_hbm [thread:$0]  %s1738, 512, %s5, [#allocation5], 64, 64, 4
    $region41: #{tpu_custom_call.1} parent=1 // pred_fallthru
      _
    // Predicated region
    $region42: #{tpu_custom_call.1} parent=1 // pred_check
      _
    $region43: #{tpu_custom_call.1} parent=1 // pred_check_branch
      %1745 = sbr.rel (0) target = $region45
    $region44: #{tpu_custom_call.1} parent=1 // pred_region
      %s1747 = ssub.s32 128, 128
      %1748 = vsyncadd [#allocation11], %s1747
      %s1750 = sshll.u32 [#allocation10], 4
      %s1751 = int_to_ptr.vmem [resolvable:$true] %s1750
      %1753 = dma.vmem_to_hbm [thread:$0]  %s1751, 128, %s6, [#allocation11]
    $region45: #{tpu_custom_call.1} parent=1 // pred_fallthru
      _
    // Predicated region
    $region46: #{tpu_custom_call.1} parent=1 // pred_check
      _
    $region47: #{tpu_custom_call.1} parent=1 // pred_check_branch
      %1755 = sbr.rel (0) target = $region49
    $region48: #{tpu_custom_call.1} parent=1 // pred_region
      %s1757 = ssub.s32 128, 128
      %1758 = vsyncadd [#allocation11], %s1757
      %s1760 = sshll.u32 [#allocation12], 4
      %s1761 = int_to_ptr.vmem [resolvable:$true] %s1760
      %1763 = dma.vmem_to_hbm [thread:$0]  %s1761, 128, %s7, [#allocation11]
    $region49: #{tpu_custom_call.1} parent=1 // pred_fallthru
      _
    // Predicated region
    $region50: #{tpu_custom_call.1} parent=1 // pred_check
      _
    $region51: #{tpu_custom_call.1} parent=1 // pred_check_branch
      %1765 = sbr.rel (0) target = $region53
    $region52: #{tpu_custom_call.1} parent=1 // pred_region
      %1766 = dma.done [#allocation5], 512
    $region53: #{tpu_custom_call.1} parent=1 // pred_fallthru
      _
    // Predicated region
    $region54: #{tpu_custom_call.1} parent=1 // pred_check
      _
    $region55: #{tpu_custom_call.1} parent=1 // pred_check_branch
      %1768 = sbr.rel (0) target = $region57
    $region56: #{tpu_custom_call.1} parent=1 // pred_region
      %1769 = dma.done [#allocation11], 128
    $region57: #{tpu_custom_call.1} parent=1 // pred_fallthru
      _
    // Predicated region
    $region58: #{tpu_custom_call.1} parent=1 // pred_check
      _
    $region59: #{tpu_custom_call.1} parent=1 // pred_check_branch
      %1771 = sbr.rel (0) target = $region61
    $region60: #{tpu_custom_call.1} parent=1 // pred_region
      %1772 = dma.done [#allocation11], 128
    $region61: #{tpu_custom_call.1} parent=1 // pred_fallthru
      _
    %1773 = vsyncpa [#allocation4], 1
    %1774 = vsyncpa [#allocation7], 1
    %1775 = vsyncpa [#allocation5], 1
    %1776 = vsyncpa [#allocation11], 1

// kernel: tpu_custom_call.1
$region0: #{tpu_custom_call.1}
  #allocation0 [shape = 'u32[]', space=smem, size = 0x4, offset = 0x4, fixed_abs, tag = 'smem constant byte address 0x4 - core index']
  #allocation1 [shape = 'u32[144,128]{1,0:T(1,128)}', space=vmem, size = 0x12000, scoped, tag = 'internal scratch']
  #allocation2 [shape = 'f32[8,8,512]{2,1,0:T(8,128)}', space=vmem, size = 0x20000, scoped, tag = 'scratch operand']
  %s0 = inlined_call_operand.hbm [shape: bf16[8,8,128], index: 0, kind: input, shape index: {}]
  %s1 = inlined_call_operand.vmem [shape: s32[8,1], index: 1, kind: input, shape index: {}]
  %s2 = inlined_call_operand.hbm [shape: bf16[128,512], index: 2, kind: input, shape index: {}]
  %s3 = inlined_call_operand.hbm [shape: bf16[128,512], index: 3, kind: input, shape index: {}]
  %s4 = inlined_call_operand.vmem [shape: f32[1,512], index: 4, kind: input, shape index: {}]
  %s5 = inlined_call_operand.hbm [shape: bf16[8,8,128], index: 5, kind: output, shape index: {0}]
  %s6 = inlined_call_operand.hbm [shape: f32[8,128], index: 6, kind: output, shape index: {1}]
  %s7 = inlined_call_operand.hbm [shape: f32[8,128], index: 7, kind: output, shape index: {2}]
  %8 = xla_tuple %s5, %s6, %s7
  %s9 = sld [smem:[#allocation0]]
  $region62: #{tpu_custom_call.1} parent=0
    _
  %s11 = ssub.s32 1, %s9
  %s12 = scalar_select 0, %s11, %s9
  $region1: #{tpu_custom_call.1} parent=0
    #allocation3 [shape = 'u8[16384]{0}', space=vmem, size = 0x4000, scoped, tag = 'input window, operand 0, single buffered']
    #allocation4 [shape = 's32[1]{0}', space=sflag, size = 0x4, scoped, tag = 'scoped memory for tpu_custom_call.1']
    #allocation5 [shape = 's32[1]{0}', space=sflag, size = 0x4, scoped, tag = 'scoped memory for tpu_custom_call.1']
    #allocation6 [shape = 'u8[131072]{0}', space=vmem, size = 0x20000, scoped, tag = 'input window, operand 2, single buffered']
    #allocation7 [shape = 's32[1]{0}', space=sflag, size = 0x4, scoped, tag = 'scoped memory for tpu_custom_call.1']
    #allocation8 [shape = 'u8[131072]{0}', space=vmem, size = 0x20000, scoped, tag = 'input window, operand 3, single buffered']
    #allocation9 [shape = 'u8[16384]{0}', space=vmem, size = 0x4000, scoped, tag = 'output window, operand 0, single buffered']
    #allocation10 [shape = 'u8[4096]{0}', space=vmem, size = 0x1000, scoped, tag = 'output window, operand 1, single buffered']
    #allocation11 [shape = 's32[1]{0}', space=sflag, size = 0x4, scoped, tag = 'scoped memory for tpu_custom_call.1']
    #allocation12 [shape = 'u8[4096]{0}', space=vmem, size = 0x1000, scoped, tag = 'output window, operand 2, single buffered']
    %13 = vsyncpa [#allocation4], 0
    %14 = vsyncpa [#allocation7], 0
    %15 = vsyncpa [#allocation5], 0
    %16 = vsyncpa [#allocation11], 0
    // Predicated region
    $region2: #{tpu_custom_call.1} parent=1 // pred_check
      _
    $region3: #{tpu_custom_call.1} parent=1 // pred_check_branch
      %18 = sbr.rel (0) target = $region5
    $region4: #{tpu_custom_call.1} parent=1 // pred_region
      %s20 = ssub.s32 512, 512
      %21 = vsyncadd [#allocation4], %s20
      %s22 = sshll.u32 [#allocation3], 4
      %s23 = int_to_ptr.vmem [resolvable:$true] %s22
      %28 = dma.hbm_to_vmem [thread:$0]  %s0, 512, %s23, [#allocation4], 64, 64, 4
    $region5: #{tpu_custom_call.1} parent=1 // pred_fallthru
      _
    // Predicated region
    $region6: #{tpu_custom_call.1} parent=1 // pred_check
      _
    $region7: #{tpu_custom_call.1} parent=1 // pred_check_branch
      %30 = sbr.rel (0) target = $region9
    $region8: #{tpu_custom_call.1} parent=1 // pred_region
      _
    $region9: #{tpu_custom_call.1} parent=1 // pred_fallthru
      _
    // Predicated region
    $region10: #{tpu_custom_call.1} parent=1 // pred_check
      _
    $region11: #{tpu_custom_call.1} parent=1 // pred_check_branch
      %32 = sbr.rel (0) target = $region13
    $region12: #{tpu_custom_call.1} parent=1 // pred_region
      %s34 = ssub.s32 4096, 4096
      %35 = vsyncadd [#allocation7], %s34
      %s36 = sshll.u32 [#allocation6], 4
      %s37 = int_to_ptr.vmem [resolvable:$true] %s36
      %42 = dma.hbm_to_vmem [thread:$0]  %s2, 4096, %s37, [#allocation7], 256, 256, 16
    $region13: #{tpu_custom_call.1} parent=1 // pred_fallthru
      _
    // Predicated region
    $region14: #{tpu_custom_call.1} parent=1 // pred_check
      _
    $region15: #{tpu_custom_call.1} parent=1 // pred_check_branch
      %44 = sbr.rel (0) target = $region17
    $region16: #{tpu_custom_call.1} parent=1 // pred_region
      %s46 = ssub.s32 4096, 4096
      %47 = vsyncadd [#allocation7], %s46
      %s48 = sshll.u32 [#allocation8], 4
      %s49 = int_to_ptr.vmem [resolvable:$true] %s48
      %54 = dma.hbm_to_vmem [thread:$0]  %s3, 4096, %s49, [#allocation7], 256, 256, 16
    $region17: #{tpu_custom_call.1} parent=1 // pred_fallthru
      _
    // Predicated region
    $region18: #{tpu_custom_call.1} parent=1 // pred_check
      _
    $region19: #{tpu_custom_call.1} parent=1 // pred_check_branch
      %56 = sbr.rel (0) target = $region21
    $region20: #{tpu_custom_call.1} parent=1 // pred_region
      _
    $region21: #{tpu_custom_call.1} parent=1 // pred_fallthru
      _
    // Predicated region
    $region22: #{tpu_custom_call.1} parent=1 // pred_check
      _
    $region23: #{tpu_custom_call.1} parent=1 // pred_check_branch
      %58 = sbr.rel (0) target = $region25
    $region24: #{tpu_custom_call.1} parent=1 // pred_region
      %59 = dma.done [#allocation4], 512
    $region25: #{tpu_custom_call.1} parent=1 // pred_fallthru
      _
    // Predicated region
    $region26: #{tpu_custom_call.1} parent=1 // pred_check
      _
    $region27: #{tpu_custom_call.1} parent=1 // pred_check_branch
      %61 = sbr.rel (0) target = $region29
    $region28: #{tpu_custom_call.1} parent=1 // pred_region
      %62 = dma.done [#allocation7], 4096
    $region29: #{tpu_custom_call.1} parent=1 // pred_fallthru
      _
    // Predicated region
    $region30: #{tpu_custom_call.1} parent=1 // pred_check
      _
    $region31: #{tpu_custom_call.1} parent=1 // pred_check_branch
      %64 = sbr.rel (0) target = $region33
    $region32: #{tpu_custom_call.1} parent=1 // pred_region
      %65 = dma.done [#allocation7], 4096
    $region33: #{tpu_custom_call.1} parent=1 // pred_fallthru
      _
    %p67 = scmp.eq.s32.totalorder 0, 0
    // Predicated region
    $region34: #{tpu_custom_call.1} parent=1 // pred_check
      %p68 = pneg %p67
    $region35: #{tpu_custom_call.1} parent=1 // pred_check_branch
      %70 = sbr.rel (%p68) target = $region37
    $region36: #{tpu_custom_call.1} parent=1 // pred_region
      %71 = vst [vmem:[#allocation10] sm:$0xff] 0.0
      %72 = vst [vmem:[#allocation12] sm:$0xff] 0.0
    $region37: #{tpu_custom_call.1} parent=1 // pred_fallthru
      _
    %v73 = vld [vmem:[#allocation3] sm:$0xf]
    %v74 = vld [vmem:[#allocation3 + $0x4] sm:$0xf]
    %v75 = vld [vmem:[#allocation3 + $0x8] sm:$0xf]
    %v76 = vld [vmem:[#allocation3 + $0xc] sm:$0xf]
    %v77 = vld [vmem:[#allocation3 + $0x10] sm:$0xf]
    %v78 = vld [vmem:[#allocation3 + $0x14] sm:$0xf]
    %v79 = vld [vmem:[#allocation3 + $0x18] sm:$0xf]
    %v80 = vld [vmem:[#allocation3 + $0x1c] sm:$0xf]
    %v81 = vld [vmem:[#allocation6] sm:$0xff]
    %v82 = vld [vmem:[#allocation6 + $0x8] sm:$0xff]
    %v83 = vld [vmem:[#allocation6 + $0x10] sm:$0xff]
    %v84 = vld [vmem:[#allocation6 + $0x18] sm:$0xff]
    %v85 = vld [vmem:[#allocation6 + $0x20] sm:$0xff]
    %v86 = vld [vmem:[#allocation6 + $0x28] sm:$0xff]
    %v87 = vld [vmem:[#allocation6 + $0x30] sm:$0xff]
    %v88 = vld [vmem:[#allocation6 + $0x38] sm:$0xff]
    %v89 = vld [vmem:[#allocation6 + $0x40] sm:$0xff]
    %v90 = vld [vmem:[#allocation6 + $0x48] sm:$0xff]
    %v91 = vld [vmem:[#allocation6 + $0x50] sm:$0xff]
    %v92 = vld [vmem:[#allocation6 + $0x58] sm:$0xff]
    %v93 = vld [vmem:[#allocation6 + $0x60] sm:$0xff]
    %v94 = vld [vmem:[#allocation6 + $0x68] sm:$0xff]
    %v95 = vld [vmem:[#allocation6 + $0x70] sm:$0xff]
    %v96 = vld [vmem:[#allocation6 + $0x78] sm:$0xff]
    %v97 = vld [vmem:[#allocation6 + $0x80] sm:$0xff]
    %v98 = vld [vmem:[#allocation6 + $0x88] sm:$0xff]
    %v99 = vld [vmem:[#allocation6 + $0x90] sm:$0xff]
    %v100 = vld [vmem:[#allocation6 + $0x98] sm:$0xff]
    %v101 = vld [vmem:[#allocation6 + $0xa0] sm:$0xff]
    %v102 = vld [vmem:[#allocation6 + $0xa8] sm:$0xff]
    %v103 = vld [vmem:[#allocation6 + $0xb0] sm:$0xff]
    %v104 = vld [vmem:[#allocation6 + $0xb8] sm:$0xff]
    %v105 = vld [vmem:[#allocation6 + $0xc0] sm:$0xff]
    %v106 = vld [vmem:[#allocation6 + $0xc8] sm:$0xff]
    %v107 = vld [vmem:[#allocation6 + $0xd0] sm:$0xff]
    %v108 = vld [vmem:[#allocation6 + $0xd8] sm:$0xff]
    %v109 = vld [vmem:[#allocation6 + $0xe0] sm:$0xff]
    %v110 = vld [vmem:[#allocation6 + $0xe8] sm:$0xff]
    %v111 = vld [vmem:[#allocation6 + $0xf0] sm:$0xff]
    %v112 = vld [vmem:[#allocation6 + $0xf8] sm:$0xff]
    %v113 = vld [vmem:[%s4] sm:$0xf]
    %v115 = vlaneseq
    %v116 = vshrl.u32 %v115, 7
    %v117 = vsub.s32 0, %v116
    %v118 = vrot.slane %v113, %v117
    %v119 = vlaneseq
    %v120 = vshrl.u32 %v119, 7
    %v121 = vsub.s32 1, %v120
    %v122 = vrot.slane %v113, %v121
    %v123 = vlaneseq
    %v124 = vshrl.u32 %v123, 7
    %v125 = vsub.s32 2, %v124
    %v126 = vrot.slane %v113, %v125
    %v127 = vlaneseq
    %v128 = vshrl.u32 %v127, 7
    %v129 = vsub.s32 3, %v128
    %v130 = vrot.slane %v113, %v129
    %v143 = vunpack.c.l.b16 %v73
    %v144 = vunpack.c.l.b16 %v74
    %v145 = vunpack.c.l.b16 %v75
    %v146 = vunpack.c.l.b16 %v76
    %v147 = vunpack.c.l.b16 %v77
    %v148 = vunpack.c.l.b16 %v78
    %v149 = vunpack.c.l.b16 %v79
    %v150 = vunpack.c.l.b16 %v80
    %v151 = vpack.c.b16 %v144, %v143
    %v152 = vpack.c.b16 %v146, %v145
    %v153 = vpack.c.b16 %v148, %v147
    %v154 = vpack.c.b16 %v150, %v149
    %v191 = vunpack.c.l.b16 %v81
    %v192 = vunpack.c.h.b16 %v81
    %v193 = vunpack.c.l.b16 %v82
    %v194 = vunpack.c.h.b16 %v82
    %v195 = vunpack.c.l.b16 %v83
    %v196 = vunpack.c.h.b16 %v83
    %v197 = vunpack.c.l.b16 %v84
    %v198 = vunpack.c.h.b16 %v84
    %v199 = vunpack.c.l.b16 %v85
    %v200 = vunpack.c.h.b16 %v85
    %v201 = vunpack.c.l.b16 %v86
    %v202 = vunpack.c.h.b16 %v86
    %v203 = vunpack.c.l.b16 %v87
    %v204 = vunpack.c.h.b16 %v87
    %v205 = vunpack.c.l.b16 %v88
    %v206 = vunpack.c.h.b16 %v88
    %v207 = vunpack.c.l.b16 %v89
    %v208 = vunpack.c.h.b16 %v89
    %v209 = vunpack.c.l.b16 %v90
    %v210 = vunpack.c.h.b16 %v90
    %v211 = vunpack.c.l.b16 %v91
    %v212 = vunpack.c.h.b16 %v91
    %v213 = vunpack.c.l.b16 %v92
    %v214 = vunpack.c.h.b16 %v92
    %v215 = vunpack.c.l.b16 %v93
    %v216 = vunpack.c.h.b16 %v93
    %v217 = vunpack.c.l.b16 %v94
    %v218 = vunpack.c.h.b16 %v94
    %v219 = vunpack.c.l.b16 %v95
    %v220 = vunpack.c.h.b16 %v95
    %v221 = vunpack.c.l.b16 %v96
    %v222 = vunpack.c.h.b16 %v96
    %v223 = vunpack.c.l.b16 %v97
    %v224 = vunpack.c.h.b16 %v97
    %v225 = vunpack.c.l.b16 %v98
    %v226 = vunpack.c.h.b16 %v98
    %v227 = vunpack.c.l.b16 %v99
    %v228 = vunpack.c.h.b16 %v99
    %v229 = vunpack.c.l.b16 %v100
    %v230 = vunpack.c.h.b16 %v100
    %v231 = vunpack.c.l.b16 %v101
    %v232 = vunpack.c.h.b16 %v101
    %v233 = vunpack.c.l.b16 %v102
    %v234 = vunpack.c.h.b16 %v102
    %v235 = vunpack.c.l.b16 %v103
    %v236 = vunpack.c.h.b16 %v103
    %v237 = vunpack.c.l.b16 %v104
    %v238 = vunpack.c.h.b16 %v104
    %v239 = vunpack.c.l.b16 %v105
    %v240 = vunpack.c.h.b16 %v105
    %v241 = vunpack.c.l.b16 %v106
    %v242 = vunpack.c.h.b16 %v106
    %v243 = vunpack.c.l.b16 %v107
    %v244 = vunpack.c.h.b16 %v107
    %v245 = vunpack.c.l.b16 %v108
    %v246 = vunpack.c.h.b16 %v108
    %v247 = vunpack.c.l.b16 %v109
    %v248 = vunpack.c.h.b16 %v109
    %v249 = vunpack.c.l.b16 %v110
    %v250 = vunpack.c.h.b16 %v110
    %v251 = vunpack.c.l.b16 %v111
    %v252 = vunpack.c.h.b16 %v111
    %v253 = vunpack.c.l.b16 %v112
    %v254 = vunpack.c.h.b16 %v112
    %v255 = vpack.c.b16 %v195, %v191
    %v256 = vpack.c.b16 %v196, %v192
    %v257 = vpack.c.b16 %v197, %v193
    %v258 = vpack.c.b16 %v198, %v194
    %v259 = vpack.c.b16 %v203, %v199
    %v260 = vpack.c.b16 %v204, %v200
    %v261 = vpack.c.b16 %v205, %v201
    %v262 = vpack.c.b16 %v206, %v202
    %v263 = vpack.c.b16 %v211, %v207
    %v264 = vpack.c.b16 %v212, %v208
    %v265 = vpack.c.b16 %v213, %v209
    %v266 = vpack.c.b16 %v214, %v210
    %v267 = vpack.c.b16 %v219, %v215
    %v268 = vpack.c.b16 %v220, %v216
    %v269 = vpack.c.b16 %v221, %v217
    %v270 = vpack.c.b16 %v222, %v218
    %v271 = vpack.c.b16 %v227, %v223
    %v272 = vpack.c.b16 %v228, %v224
    %v273 = vpack.c.b16 %v229, %v225
    %v274 = vpack.c.b16 %v230, %v226
    %v275 = vpack.c.b16 %v235, %v231
    %v276 = vpack.c.b16 %v236, %v232
    %v277 = vpack.c.b16 %v237, %v233
    %v278 = vpack.c.b16 %v238, %v234
    %v279 = vpack.c.b16 %v243, %v239
    %v280 = vpack.c.b16 %v244, %v240
    %v281 = vpack.c.b16 %v245, %v241
    %v282 = vpack.c.b16 %v246, %v242
    %v283 = vpack.c.b16 %v251, %v247
    %v284 = vpack.c.b16 %v252, %v248
    %v285 = vpack.c.b16 %v253, %v249
    %v286 = vpack.c.b16 %v254, %v250
    %319 = vmatprep.subr.bf16.mxu0 %v256
    %320 = vmatpush1.bf16.msra.mxu0 %v255
    %321 = vmatprep.subr.bf16.mxu0 %v260
    %322 = vmatpush1.bf16.msra.mxu0 %v259
    %323 = vmatprep.subr.bf16.mxu0 %v264
    %324 = vmatpush1.bf16.msra.mxu0 %v263
    %325 = vmatprep.subr.bf16.mxu0 %v268
    %326 = vmatpush1.bf16.msra.mxu0 %v267
    %327 = vmatprep.subr.bf16.mxu0 %v272
    %328 = vmatpush1.bf16.msra.mxu0 %v271
    %329 = vmatprep.subr.bf16.mxu0 %v276
    %330 = vmatpush1.bf16.msra.mxu0 %v275
    %331 = vmatprep.subr.bf16.mxu0 %v280
    %332 = vmatpush1.bf16.msra.mxu0 %v279
    %333 = vmatprep.subr.bf16.mxu0 %v284
    %334 = vmatpush1.bf16.msra.mxu0 %v283
    %335 = vmatprep.subr.bf16.mxu0 0
    %336 = vmatpush1.bf16.msra.mxu0 0
    %337 = vmatprep.subr.bf16.mxu0 0
    %338 = vmatpush1.bf16.msra.mxu0 0
    %339 = vmatprep.subr.bf16.mxu0 0
    %340 = vmatpush1.bf16.msra.mxu0 0
    %341 = vmatprep.subr.bf16.mxu0 0
    %342 = vmatpush1.bf16.msra.mxu0 0
    %343 = vmatprep.subr.bf16.mxu0 0
    %344 = vmatpush1.bf16.msra.mxu0 0
    %345 = vmatprep.subr.bf16.mxu0 0
    %346 = vmatpush1.bf16.msra.mxu0 0
    %347 = vmatprep.subr.bf16.mxu0 0
    %348 = vmatpush1.bf16.msra.mxu0 0
    %349 = vmatprep.subr.bf16.mxu0 0
    %350 = vmatpush1.bf16.msra.mxu0 0
    %351 = vmatprep.mubr.bf16.mxu0 0
    %352 = vmatmul.mubr.bf16.gmra.mrb[0].mxu0 %v151
    %v353 = vpop.f32.mrb[0].mxu0
    %v354 = vadd.f32 %v118, %v353
    %v355 = vpop.f32.mrb[0].mxu0
    %v356 = vadd.f32 %v122, %v355
    %v357 = vpop.f32.mrb[0].mxu0
    %v358 = vadd.f32 %v118, %v357
    %v359 = vpop.f32.mrb[0].mxu0
    %v360 = vadd.f32 %v122, %v359
    %361 = vmatprep.mubr.bf16.mxu0 0
    %362 = vmatmul.mubr.bf16.gmra.mrb[0].mxu0 %v152
    %v363 = vpop.f32.mrb[0].mxu0
    %v364 = vadd.f32 %v118, %v363
    %v365 = vpop.f32.mrb[0].mxu0
    %v366 = vadd.f32 %v122, %v365
    %v367 = vpop.f32.mrb[0].mxu0
    %v368 = vadd.f32 %v118, %v367
    %v369 = vpop.f32.mrb[0].mxu0
    %v370 = vadd.f32 %v122, %v369
    %371 = vmatprep.mubr.bf16.mxu0 0
    %372 = vmatmul.mubr.bf16.gmra.mrb[0].mxu0 %v153
    %v373 = vpop.f32.mrb[0].mxu0
    %v374 = vadd.f32 %v118, %v373
    %v375 = vpop.f32.mrb[0].mxu0
    %v376 = vadd.f32 %v122, %v375
    %v377 = vpop.f32.mrb[0].mxu0
    %v378 = vadd.f32 %v118, %v377
    %v379 = vpop.f32.mrb[0].mxu0
    %v380 = vadd.f32 %v122, %v379
    %381 = vmatprep.mubr.bf16.mxu0 0
    %382 = vmatmul.mubr.bf16.gmra.mrb[0].mxu0 %v154
    %v383 = vpop.f32.mrb[0].mxu0
    %v384 = vadd.f32 %v118, %v383
    %v385 = vpop.f32.mrb[0].mxu0
    %v386 = vadd.f32 %v122, %v385
    %v387 = vpop.f32.mrb[0].mxu0
    %v388 = vadd.f32 %v118, %v387
    %v389 = vpop.f32.mrb[0].mxu0
    %v390 = vadd.f32 %v122, %v389
    %391 = vdwg.mxu0
    %392 = vmatprep.subr.bf16.mxu0 %v258
    %393 = vmatpush1.bf16.msra.mxu0 %v257
    %394 = vmatprep.subr.bf16.mxu0 %v262
    %395 = vmatpush1.bf16.msra.mxu0 %v261
    %396 = vmatprep.subr.bf16.mxu0 %v266
    %397 = vmatpush1.bf16.msra.mxu0 %v265
    %398 = vmatprep.subr.bf16.mxu0 %v270
    %399 = vmatpush1.bf16.msra.mxu0 %v269
    %400 = vmatprep.subr.bf16.mxu0 %v274
    %401 = vmatpush1.bf16.msra.mxu0 %v273
    %402 = vmatprep.subr.bf16.mxu0 %v278
    %403 = vmatpush1.bf16.msra.mxu0 %v277
    %404 = vmatprep.subr.bf16.mxu0 %v282
    %405 = vmatpush1.bf16.msra.mxu0 %v281
    %406 = vmatprep.subr.bf16.mxu0 %v286
    %407 = vmatpush1.bf16.msra.mxu0 %v285
    %408 = vmatprep.subr.bf16.mxu0 0
    %409 = vmatpush1.bf16.msra.mxu0 0
    %410 = vmatprep.subr.bf16.mxu0 0
    %411 = vmatpush1.bf16.msra.mxu0 0
    %412 = vmatprep.subr.bf16.mxu0 0
    %413 = vmatpush1.bf16.msra.mxu0 0
    %414 = vmatprep.subr.bf16.mxu0 0
    %415 = vmatpush1.bf16.msra.mxu0 0
    %416 = vmatprep.subr.bf16.mxu0 0
    %417 = vmatpush1.bf16.msra.mxu0 0
    %418 = vmatprep.subr.bf16.mxu0 0
    %419 = vmatpush1.bf16.msra.mxu0 0
    %420 = vmatprep.subr.bf16.mxu0 0
    %421 = vmatpush1.bf16.msra.mxu0 0
    %422 = vmatprep.subr.bf16.mxu0 0
    %423 = vmatpush1.bf16.msra.mxu0 0
    %424 = vmatprep.mubr.bf16.mxu0 0
    %425 = vmatmul.mubr.bf16.gmra.mrb[0].mxu0 %v151
    %v426 = vpop.f32.mrb[0].mxu0
    %v427 = vadd.f32 %v126, %v426
    %v428 = vpop.f32.mrb[0].mxu0
    %v429 = vadd.f32 %v130, %v428
    %v430 = vpop.f32.mrb[0].mxu0
    %v431 = vadd.f32 %v126, %v430
    %v432 = vpop.f32.mrb[0].mxu0
    %v433 = vadd.f32 %v130, %v432
    %434 = vmatprep.mubr.bf16.mxu0 0
    %435 = vmatmul.mubr.bf16.gmra.mrb[0].mxu0 %v152
    %v436 = vpop.f32.mrb[0].mxu0
    %v437 = vadd.f32 %v126, %v436
    %v438 = vpop.f32.mrb[0].mxu0
    %v439 = vadd.f32 %v130, %v438
    %v440 = vpop.f32.mrb[0].mxu0
    %v441 = vadd.f32 %v126, %v440
    %v442 = vpop.f32.mrb[0].mxu0
    %v443 = vadd.f32 %v130, %v442
    %444 = vmatprep.mubr.bf16.mxu0 0
    %445 = vmatmul.mubr.bf16.gmra.mrb[0].mxu0 %v153
    %v446 = vpop.f32.mrb[0].mxu0
    %v447 = vadd.f32 %v126, %v446
    %v448 = vpop.f32.mrb[0].mxu0
    %v449 = vadd.f32 %v130, %v448
    %v450 = vpop.f32.mrb[0].mxu0
    %v451 = vadd.f32 %v126, %v450
    %v452 = vpop.f32.mrb[0].mxu0
    %v453 = vadd.f32 %v130, %v452
    %454 = vmatprep.mubr.bf16.mxu0 0
    %455 = vmatmul.mubr.bf16.gmra.mrb[0].mxu0 %v154
    %v456 = vpop.f32.mrb[0].mxu0
    %v457 = vadd.f32 %v126, %v456
    %v458 = vpop.f32.mrb[0].mxu0
    %v459 = vadd.f32 %v130, %v458
    %v460 = vpop.f32.mrb[0].mxu0
    %v461 = vadd.f32 %v126, %v460
    %v462 = vpop.f32.mrb[0].mxu0
    %v463 = vadd.f32 %v130, %v462
    %464 = vdwg.mxu0
    %465 = vst [vmem:[#allocation2] sm:$0xff] %v354
    %466 = vst [vmem:[#allocation2 + $0x8] sm:$0xff] %v356
    %467 = vst [vmem:[#allocation2 + $0x10] sm:$0xff] %v427
    %468 = vst [vmem:[#allocation2 + $0x18] sm:$0xff] %v429
    %469 = vst [vmem:[#allocation2 + $0x20] sm:$0xff] %v358
    %470 = vst [vmem:[#allocation2 + $0x28] sm:$0xff] %v360
    %471 = vst [vmem:[#allocation2 + $0x30] sm:$0xff] %v431
    %472 = vst [vmem:[#allocation2 + $0x38] sm:$0xff] %v433
    %473 = vst [vmem:[#allocation2 + $0x40] sm:$0xff] %v364
    %474 = vst [vmem:[#allocation2 + $0x48] sm:$0xff] %v366
    %475 = vst [vmem:[#allocation2 + $0x50] sm:$0xff] %v437
    %476 = vst [vmem:[#allocation2 + $0x58] sm:$0xff] %v439
    %477 = vst [vmem:[#allocation2 + $0x60] sm:$0xff] %v368
    %478 = vst [vmem:[#allocation2 + $0x68] sm:$0xff] %v370
    %479 = vst [vmem:[#allocation2 + $0x70] sm:$0xff] %v441
    %480 = vst [vmem:[#allocation2 + $0x78] sm:$0xff] %v443
    %481 = vst [vmem:[#allocation2 + $0x80] sm:$0xff] %v374
    %482 = vst [vmem:[#allocation2 + $0x88] sm:$0xff] %v376
    %483 = vst [vmem:[#allocation2 + $0x90] sm:$0xff] %v447
    %484 = vst [vmem:[#allocation2 + $0x98] sm:$0xff] %v449
    %485 = vst [vmem:[#allocation2 + $0xa0] sm:$0xff] %v378
    %486 = vst [vmem:[#allocation2 + $0xa8] sm:$0xff] %v380
    %487 = vst [vmem:[#allocation2 + $0xb0] sm:$0xff] %v451
    %488 = vst [vmem:[#allocation2 + $0xb8] sm:$0xff] %v453
    %489 = vst [vmem:[#allocation2 + $0xc0] sm:$0xff] %v384
    %490 = vst [vmem:[#allocation2 + $0xc8] sm:$0xff] %v386
    %491 = vst [vmem:[#allocation2 + $0xd0] sm:$0xff] %v457
    %492 = vst [vmem:[#allocation2 + $0xd8] sm:$0xff] %v459
    %493 = vst [vmem:[#allocation2 + $0xe0] sm:$0xff] %v388
    %494 = vst [vmem:[#allocation2 + $0xe8] sm:$0xff] %v390
    %495 = vst [vmem:[#allocation2 + $0xf0] sm:$0xff] %v461
    %496 = vst [vmem:[#allocation2 + $0xf8] sm:$0xff] %v463
    %v497 = vld [vmem:[#allocation8] sm:$0xff]
    %v498 = vld [vmem:[#allocation8 + $0x8] sm:$0xff]
    %v499 = vld [vmem:[#allocation8 + $0x10] sm:$0xff]
    %v500 = vld [vmem:[#allocation8 + $0x18] sm:$0xff]
    %v501 = vld [vmem:[#allocation8 + $0x20] sm:$0xff]
    %v502 = vld [vmem:[#allocation8 + $0x28] sm:$0xff]
    %v503 = vld [vmem:[#allocation8 + $0x30] sm:$0xff]
    %v504 = vld [vmem:[#allocation8 + $0x38] sm:$0xff]
    %v505 = vld [vmem:[#allocation8 + $0x40] sm:$0xff]
    %v506 = vld [vmem:[#allocation8 + $0x48] sm:$0xff]
    %v507 = vld [vmem:[#allocation8 + $0x50] sm:$0xff]
    %v508 = vld [vmem:[#allocation8 + $0x58] sm:$0xff]
    %v509 = vld [vmem:[#allocation8 + $0x60] sm:$0xff]
    %v510 = vld [vmem:[#allocation8 + $0x68] sm:$0xff]
    %v511 = vld [vmem:[#allocation8 + $0x70] sm:$0xff]
    %v512 = vld [vmem:[#allocation8 + $0x78] sm:$0xff]
    %v513 = vld [vmem:[#allocation8 + $0x80] sm:$0xff]
    %v514 = vld [vmem:[#allocation8 + $0x88] sm:$0xff]
    %v515 = vld [vmem:[#allocation8 + $0x90] sm:$0xff]
    %v516 = vld [vmem:[#allocation8 + $0x98] sm:$0xff]
    %v517 = vld [vmem:[#allocation8 + $0xa0] sm:$0xff]
    %v518 = vld [vmem:[#allocation8 + $0xa8] sm:$0xff]
    %v519 = vld [vmem:[#allocation8 + $0xb0] sm:$0xff]
    %v520 = vld [vmem:[#allocation8 + $0xb8] sm:$0xff]
    %v521 = vld [vmem:[#allocation8 + $0xc0] sm:$0xff]
    %v522 = vld [vmem:[#allocation8 + $0xc8] sm:$0xff]
    %v523 = vld [vmem:[#allocation8 + $0xd0] sm:$0xff]
    %v524 = vld [vmem:[#allocation8 + $0xd8] sm:$0xff]
    %v525 = vld [vmem:[#allocation8 + $0xe0] sm:$0xff]
    %v526 = vld [vmem:[#allocation8 + $0xe8] sm:$0xff]
    %v527 = vld [vmem:[#allocation8 + $0xf0] sm:$0xff]
    %v528 = vld [vmem:[#allocation8 + $0xf8] sm:$0xff]
    %v529 = vld [vmem:[%s1] sm:$0xff]
    %s530 = smul.u32 0, 8
    %v531 = vld [vmem:[#allocation10] sm:$0xff]
    %v532 = vld [vmem:[#allocation12] sm:$0xff]
    %v533 = vld [vmem:[#allocation2] sm:$0xff]
    %v534 = vld [vmem:[#allocation2 + $0x8] sm:$0xff]
    %v535 = vld [vmem:[#allocation2 + $0x10] sm:$0xff]
    %v536 = vld [vmem:[#allocation2 + $0x18] sm:$0xff]
    %v537 = vpack.c.bf16 %v531, %v531
    %v570 = vunpack.c.l.b16 %v497
    %v571 = vunpack.c.h.b16 %v497
    %v572 = vunpack.c.l.b16 %v498
    %v573 = vunpack.c.h.b16 %v498
    %v574 = vunpack.c.l.b16 %v499
    %v575 = vunpack.c.h.b16 %v499
    %v576 = vunpack.c.l.b16 %v500
    %v577 = vunpack.c.h.b16 %v500
    %v578 = vunpack.c.l.b16 %v501
    %v579 = vunpack.c.h.b16 %v501
    %v580 = vunpack.c.l.b16 %v502
    %v581 = vunpack.c.h.b16 %v502
    %v582 = vunpack.c.l.b16 %v503
    %v583 = vunpack.c.h.b16 %v503
    %v584 = vunpack.c.l.b16 %v504
    %v585 = vunpack.c.h.b16 %v504
    %v586 = vunpack.c.l.b16 %v505
    %v587 = vunpack.c.h.b16 %v505
    %v588 = vunpack.c.l.b16 %v506
    %v589 = vunpack.c.h.b16 %v506
    %v590 = vunpack.c.l.b16 %v507
    %v591 = vunpack.c.h.b16 %v507
    %v592 = vunpack.c.l.b16 %v508
    %v593 = vunpack.c.h.b16 %v508
    %v594 = vunpack.c.l.b16 %v509
    %v595 = vunpack.c.h.b16 %v509
    %v596 = vunpack.c.l.b16 %v510
    %v597 = vunpack.c.h.b16 %v510
    %v598 = vunpack.c.l.b16 %v511
    %v599 = vunpack.c.h.b16 %v511
    %v600 = vunpack.c.l.b16 %v512
    %v601 = vunpack.c.h.b16 %v512
    %v602 = vunpack.c.l.b16 %v513
    %v603 = vunpack.c.h.b16 %v513
    %v604 = vunpack.c.l.b16 %v514
    %v605 = vunpack.c.h.b16 %v514
    %v606 = vunpack.c.l.b16 %v515
    %v607 = vunpack.c.h.b16 %v515
    %v608 = vunpack.c.l.b16 %v516
    %v609 = vunpack.c.h.b16 %v516
    %v610 = vunpack.c.l.b16 %v517
    %v611 = vunpack.c.h.b16 %v517
    %v612 = vunpack.c.l.b16 %v518
    %v613 = vunpack.c.h.b16 %v518
    %v614 = vunpack.c.l.b16 %v519
    %v615 = vunpack.c.h.b16 %v519
    %v616 = vunpack.c.l.b16 %v520
    %v617 = vunpack.c.h.b16 %v520
    %v618 = vunpack.c.l.b16 %v521
    %v619 = vunpack.c.h.b16 %v521
    %v620 = vunpack.c.l.b16 %v522
    %v621 = vunpack.c.h.b16 %v522
    %v622 = vunpack.c.l.b16 %v523
    %v623 = vunpack.c.h.b16 %v523
    %v624 = vunpack.c.l.b16 %v524
    %v625 = vunpack.c.h.b16 %v524
    %v626 = vunpack.c.l.b16 %v525
    %v627 = vunpack.c.h.b16 %v525
    %v628 = vunpack.c.l.b16 %v526
    %v629 = vunpack.c.h.b16 %v526
    %v630 = vunpack.c.l.b16 %v527
    %v631 = vunpack.c.h.b16 %v527
    %v632 = vunpack.c.l.b16 %v528
    %v633 = vunpack.c.h.b16 %v528
    %v634 = vpack.c.b16 %v574, %v570
    %v635 = vpack.c.b16 %v575, %v571
    %v636 = vpack.c.b16 %v576, %v572
    %v637 = vpack.c.b16 %v577, %v573
    %v638 = vpack.c.b16 %v582, %v578
    %v639 = vpack.c.b16 %v583, %v579
    %v640 = vpack.c.b16 %v584, %v580
    %v641 = vpack.c.b16 %v585, %v581
    %v642 = vpack.c.b16 %v590, %v586
    %v643 = vpack.c.b16 %v591, %v587
    %v644 = vpack.c.b16 %v592, %v588
    %v645 = vpack.c.b16 %v593, %v589
    %v646 = vpack.c.b16 %v598, %v594
    %v647 = vpack.c.b16 %v599, %v595
    %v648 = vpack.c.b16 %v600, %v596
    %v649 = vpack.c.b16 %v601, %v597
    %v650 = vpack.c.b16 %v606, %v602
    %v651 = vpack.c.b16 %v607, %v603
    %v652 = vpack.c.b16 %v608, %v604
    %v653 = vpack.c.b16 %v609, %v605
    %v654 = vpack.c.b16 %v614, %v610
    %v655 = vpack.c.b16 %v615, %v611
    %v656 = vpack.c.b16 %v616, %v612
    %v657 = vpack.c.b16 %v617, %v613
    %v658 = vpack.c.b16 %v622, %v618
    %v659 = vpack.c.b16 %v623, %v619
    %v660 = vpack.c.b16 %v624, %v620
    %v661 = vpack.c.b16 %v625, %v621
    %v662 = vpack.c.b16 %v630, %v626
    %v663 = vpack.c.b16 %v631, %v627
    %v664 = vpack.c.b16 %v632, %v628
    %v665 = vpack.c.b16 %v633, %v629
    %698 = vmatprep.subr.bf16.mxu0 %v635
    %699 = vmatpush1.bf16.msra.mxu0 %v634
    %700 = vmatprep.subr.bf16.mxu0 %v639
    %701 = vmatpush1.bf16.msra.mxu0 %v638
    %702 = vmatprep.subr.bf16.mxu0 %v643
    %703 = vmatpush1.bf16.msra.mxu0 %v642
    %704 = vmatprep.subr.bf16.mxu0 %v647
    %705 = vmatpush1.bf16.msra.mxu0 %v646
    %706 = vmatprep.subr.bf16.mxu0 %v651
    %707 = vmatpush1.bf16.msra.mxu0 %v650
    %708 = vmatprep.subr.bf16.mxu0 %v655
    %709 = vmatpush1.bf16.msra.mxu0 %v654
    %710 = vmatprep.subr.bf16.mxu0 %v659
    %711 = vmatpush1.bf16.msra.mxu0 %v658
    %712 = vmatprep.subr.bf16.mxu0 %v663
    %713 = vmatpush1.bf16.msra.mxu0 %v662
    %714 = vmatprep.subr.bf16.mxu0 0
    %715 = vmatpush1.bf16.msra.mxu0 0
    %716 = vmatprep.subr.bf16.mxu0 0
    %717 = vmatpush1.bf16.msra.mxu0 0
    %718 = vmatprep.subr.bf16.mxu0 0
    %719 = vmatpush1.bf16.msra.mxu0 0
    %720 = vmatprep.subr.bf16.mxu0 0
    %721 = vmatpush1.bf16.msra.mxu0 0
    %722 = vmatprep.subr.bf16.mxu0 0
    %723 = vmatpush1.bf16.msra.mxu0 0
    %724 = vmatprep.subr.bf16.mxu0 0
    %725 = vmatpush1.bf16.msra.mxu0 0
    %726 = vmatprep.subr.bf16.mxu0 0
    %727 = vmatpush1.bf16.msra.mxu0 0
    %728 = vmatprep.subr.bf16.mxu0 0
    %729 = vmatpush1.bf16.msra.mxu0 0
    %730 = vmatprep.mubr.bf16.mxu0 0
    %731 = vmatmul.mubr.bf16.gmra.mrb[0].mxu0 %v537
    %v732 = vpop.f32.mrb[0].mxu0
    %v733 = vadd.f32 0.0, %v732
    %v734 = vpop.f32.mrb[0].mxu0
    %v735 = vadd.f32 0.0, %v734
    %v736 = vpop.f32.mrb[0].mxu0
    %v737 = vpop.f32.mrb[0].mxu0
    %738 = vdwg.mxu0
    %739 = vmatprep.subr.bf16.mxu0 %v637
    %740 = vmatpush1.bf16.msra.mxu0 %v636
    %741 = vmatprep.subr.bf16.mxu0 %v641
    %742 = vmatpush1.bf16.msra.mxu0 %v640
    %743 = vmatprep.subr.bf16.mxu0 %v645
    %744 = vmatpush1.bf16.msra.mxu0 %v644
    %745 = vmatprep.subr.bf16.mxu0 %v649
    %746 = vmatpush1.bf16.msra.mxu0 %v648
    %747 = vmatprep.subr.bf16.mxu0 %v653
    %748 = vmatpush1.bf16.msra.mxu0 %v652
    %749 = vmatprep.subr.bf16.mxu0 %v657
    %750 = vmatpush1.bf16.msra.mxu0 %v656
    %751 = vmatprep.subr.bf16.mxu0 %v661
    %752 = vmatpush1.bf16.msra.mxu0 %v660
    %753 = vmatprep.subr.bf16.mxu0 %v665
    %754 = vmatpush1.bf16.msra.mxu0 %v664
    %755 = vmatprep.subr.bf16.mxu0 0
    %756 = vmatpush1.bf16.msra.mxu0 0
    %757 = vmatprep.subr.bf16.mxu0 0
    %758 = vmatpush1.bf16.msra.mxu0 0
    %759 = vmatprep.subr.bf16.mxu0 0
    %760 = vmatpush1.bf16.msra.mxu0 0
    %761 = vmatprep.subr.bf16.mxu0 0
    %762 = vmatpush1.bf16.msra.mxu0 0
    %763 = vmatprep.subr.bf16.mxu0 0
    %764 = vmatpush1.bf16.msra.mxu0 0
    %765 = vmatprep.subr.bf16.mxu0 0
    %766 = vmatpush1.bf16.msra.mxu0 0
    %767 = vmatprep.subr.bf16.mxu0 0
    %768 = vmatpush1.bf16.msra.mxu0 0
    %769 = vmatprep.subr.bf16.mxu0 0
    %770 = vmatpush1.bf16.msra.mxu0 0
    %771 = vmatprep.mubr.bf16.mxu0 0
    %772 = vmatmul.mubr.bf16.gmra.mrb[0].mxu0 %v537
    %v773 = vpop.f32.mrb[0].mxu0
    %v774 = vadd.f32 0.0, %v773
    %v775 = vpop.f32.mrb[0].mxu0
    %v776 = vadd.f32 0.0, %v775
    %v777 = vpop.f32.mrb[0].mxu0
    %v778 = vpop.f32.mrb[0].mxu0
    %779 = vdwg.mxu0
    %v780 = vadd.f32 %v533, %v733
    %v781 = vadd.f32 %v534, %v735
    %v782 = vadd.f32 %v535, %v774
    %v783 = vadd.f32 %v536, %v776
    %v784 = vxor.u32 %v780, 2147483648
    %v785 = vmul.f32 %v784, 1.442695
    %v786 = vpow.pop %v785
    %v787 = vadd.f32 %v786, 1.0
    %v788 = vrcp.pop %v787
    %v789 = vmul.f32 1.0, %v788
    %v790 = vxor.u32 %v781, 2147483648
    %v791 = vmul.f32 %v790, 1.442695
    %v792 = vpow.pop %v791
    %v793 = vadd.f32 %v792, 1.0
    %v794 = vrcp.pop %v793
    %v795 = vmul.f32 1.0, %v794
    %v796 = vtanh.pop %v782
    %v797 = vxor.u32 %v783, 2147483648
    %v798 = vmul.f32 %v797, 1.442695
    %v799 = vpow.pop %v798
    %v800 = vadd.f32 %v799, 1.0
    %v801 = vrcp.pop %v800
    %v802 = vmul.f32 1.0, %v801
    %v803 = vmul.f32 %v795, %v532
    %v804 = vmul.f32 %v789, %v796
    %v805 = vadd.f32 %v803, %v804
    %v806 = vtanh.pop %v805
    %v807 = vmul.f32 %v802, %v806
    %v808 = vstv %s530
    %vm809 = vcmp.lt.s32.totalorder %v808, %v529
    %v810 = vsel %vm809, 1, 0
    %811 = vset.pattern.permute.xlu0 0
    %812 = vperm.xlu0 %811, %v810
    %v813 = vpop.permute.xlu0 %812
    %vm814 = vcmp.eq.s32.totalorder %v813, 1
    %v815 = vsel %vm814, %v807, %v531
    %v816 = vsel %vm814, %v805, %v532
    %v817 = vsel %vm814, %v807, 0.0
    %v818 = vpack.c.bf16 %v817, %v817
    %819 = vst [vmem:[#allocation9] sm:$0xf] %v818
    %s820 = scalar_lea.vmem [#allocation2], 32
    %v821 = vld [vmem:[%s820] sm:$0xff]
    %v822 = vld [vmem:[%s820 + $0x8] sm:$0xff]
    %v823 = vld [vmem:[%s820 + $0x10] sm:$0xff]
    %v824 = vld [vmem:[%s820 + $0x18] sm:$0xff]
    %v825 = vpack.c.bf16 %v815, %v815
    %826 = vmatprep.subr.bf16.mxu0 %v635
    %827 = vmatpush1.bf16.msra.mxu0 %v634
    %828 = vmatprep.subr.bf16.mxu0 %v639
    %829 = vmatpush1.bf16.msra.mxu0 %v638
    %830 = vmatprep.subr.bf16.mxu0 %v643
    %831 = vmatpush1.bf16.msra.mxu0 %v642
    %832 = vmatprep.subr.bf16.mxu0 %v647
    %833 = vmatpush1.bf16.msra.mxu0 %v646
    %834 = vmatprep.subr.bf16.mxu0 %v651
    %835 = vmatpush1.bf16.msra.mxu0 %v650
    %836 = vmatprep.subr.bf16.mxu0 %v655
    %837 = vmatpush1.bf16.msra.mxu0 %v654
    %838 = vmatprep.subr.bf16.mxu0 %v659
    %839 = vmatpush1.bf16.msra.mxu0 %v658
    %840 = vmatprep.subr.bf16.mxu0 %v663
    %841 = vmatpush1.bf16.msra.mxu0 %v662
    %842 = vmatprep.subr.bf16.mxu0 0
    %843 = vmatpush1.bf16.msra.mxu0 0
    %844 = vmatprep.subr.bf16.mxu0 0
    %845 = vmatpush1.bf16.msra.mxu0 0
    %846 = vmatprep.subr.bf16.mxu0 0
    %847 = vmatpush1.bf16.msra.mxu0 0
    %848 = vmatprep.subr.bf16.mxu0 0
    %849 = vmatpush1.bf16.msra.mxu0 0
    %850 = vmatprep.subr.bf16.mxu0 0
    %851 = vmatpush1.bf16.msra.mxu0 0
    %852 = vmatprep.subr.bf16.mxu0 0
    %853 = vmatpush1.bf16.msra.mxu0 0
    %854 = vmatprep.subr.bf16.mxu0 0
    %855 = vmatpush1.bf16.msra.mxu0 0
    %856 = vmatprep.subr.bf16.mxu0 0
    %857 = vmatpush1.bf16.msra.mxu0 0
    %858 = vmatprep.mubr.bf16.mxu0 0
    %859 = vmatmul.mubr.bf16.gmra.mrb[0].mxu0 %v825
    %v860 = vpop.f32.mrb[0].mxu0
    %v861 = vadd.f32 0.0, %v860
    %v862 = vpop.f32.mrb[0].mxu0
    %v863 = vadd.f32 0.0, %v862
    %v864 = vpop.f32.mrb[0].mxu0
    %v865 = vpop.f32.mrb[0].mxu0
    %866 = vdwg.mxu0
    %867 = vmatprep.subr.bf16.mxu0 %v637
    %868 = vmatpush1.bf16.msra.mxu0 %v636
    %869 = vmatprep.subr.bf16.mxu0 %v641
    %870 = vmatpush1.bf16.msra.mxu0 %v640
    %871 = vmatprep.subr.bf16.mxu0 %v645
    %872 = vmatpush1.bf16.msra.mxu0 %v644
    %873 = vmatprep.subr.bf16.mxu0 %v649
    %874 = vmatpush1.bf16.msra.mxu0 %v648
    %875 = vmatprep.subr.bf16.mxu0 %v653
    %876 = vmatpush1.bf16.msra.mxu0 %v652
    %877 = vmatprep.subr.bf16.mxu0 %v657
    %878 = vmatpush1.bf16.msra.mxu0 %v656
    %879 = vmatprep.subr.bf16.mxu0 %v661
    %880 = vmatpush1.bf16.msra.mxu0 %v660
    %881 = vmatprep.subr.bf16.mxu0 %v665
    %882 = vmatpush1.bf16.msra.mxu0 %v664
    %883 = vmatprep.subr.bf16.mxu0 0
    %884 = vmatpush1.bf16.msra.mxu0 0
    %885 = vmatprep.subr.bf16.mxu0 0
    %886 = vmatpush1.bf16.msra.mxu0 0
    %887 = vmatprep.subr.bf16.mxu0 0
    %888 = vmatpush1.bf16.msra.mxu0 0
    %889 = vmatprep.subr.bf16.mxu0 0
    %890 = vmatpush1.bf16.msra.mxu0 0
    %891 = vmatprep.subr.bf16.mxu0 0
    %892 = vmatpush1.bf16.msra.mxu0 0
    %893 = vmatprep.subr.bf16.mxu0 0
    %894 = vmatpush1.bf16.msra.mxu0 0
    %895 = vmatprep.subr.bf16.mxu0 0
    %896 = vmatpush1.bf16.msra.mxu0 0
    %897 = vmatprep.subr.bf16.mxu0 0
    %898 = vmatpush1.bf16.msra.mxu0 0
    %899 = vmatprep.mubr.bf16.mxu0 0
    %900 = vmatmul.mubr.bf16.gmra.mrb[0].mxu0 %v825
    %v901 = vpop.f32.mrb[0].mxu0
    %v902 = vadd.f32 0.0, %v901
    %v903 = vpop.f32.mrb[0].mxu0
    %v904 = vadd.f32 0.0, %v903
    %v905 = vpop.f32.mrb[0].mxu0
    %v906 = vpop.f32.mrb[0].mxu0
    %907 = vdwg.mxu0
    %v908 = vadd.f32 %v821, %v861
    %v909 = vadd.f32 %v822, %v863
    %v910 = vadd.f32 %v823, %v902
    %v911 = vadd.f32 %v824, %v904
    %v912 = vxor.u32 %v908, 2147483648
    %v913 = vmul.f32 %v912, 1.442695
    %v914 = vpow.pop %v913
    %v915 = vadd.f32 %v914, 1.0
    %v916 = vrcp.pop %v915
    %v917 = vmul.f32 1.0, %v916
    %v918 = vxor.u32 %v909, 2147483648
    %v919 = vmul.f32 %v918, 1.442695
    %v920 = vpow.pop %v919
    %v921 = vadd.f32 %v920, 1.0
    %v922 = vrcp.pop %v921
    %v923 = vmul.f32 1.0, %v922
    %v924 = vtanh.pop %v910
    %v925 = vxor.u32 %v911, 2147483648
    %v926 = vmul.f32 %v925, 1.442695
    %v927 = vpow.pop %v926
    %v928 = vadd.f32 %v927, 1.0
    %v929 = vrcp.pop %v928
    %v930 = vmul.f32 1.0, %v929
    %v931 = vmul.f32 %v923, %v816
    %v932 = vmul.f32 %v917, %v924
    %v933 = vadd.f32 %v931, %v932
    %v934 = vtanh.pop %v933
    %v935 = vmul.f32 %v930, %v934
    %s936 = sadd.s32 %s530, 1
    %v937 = vstv %s936
    %vm938 = vcmp.lt.s32.totalorder %v937, %v529
    %v939 = vsel %vm938, 1, 0
    %940 = vset.pattern.permute.xlu0 0
    %941 = vperm.xlu0 %940, %v939
    %v942 = vpop.permute.xlu0 %941
    %vm943 = vcmp.eq.s32.totalorder %v942, 1
    %v944 = vsel %vm943, %v935, %v815
    %v945 = vsel %vm943, %v933, %v816
    %v946 = vsel %vm943, %v935, 0.0
    %v947 = vpack.c.bf16 %v946, %v946
    %s948 = scalar_lea.vmem [#allocation9], 4
    %949 = vst [vmem:[%s948] sm:$0xf] %v947
    %s950 = scalar_lea.vmem [#allocation2], 64
    %v951 = vld [vmem:[%s950] sm:$0xff]
    %v952 = vld [vmem:[%s950 + $0x8] sm:$0xff]
    %v953 = vld [vmem:[%s950 + $0x10] sm:$0xff]
    %v954 = vld [vmem:[%s950 + $0x18] sm:$0xff]
    %v955 = vpack.c.bf16 %v944, %v944
    %956 = vmatprep.subr.bf16.mxu0 %v635
    %957 = vmatpush1.bf16.msra.mxu0 %v634
    %958 = vmatprep.subr.bf16.mxu0 %v639
    %959 = vmatpush1.bf16.msra.mxu0 %v638
    %960 = vmatprep.subr.bf16.mxu0 %v643
    %961 = vmatpush1.bf16.msra.mxu0 %v642
    %962 = vmatprep.subr.bf16.mxu0 %v647
    %963 = vmatpush1.bf16.msra.mxu0 %v646
    %964 = vmatprep.subr.bf16.mxu0 %v651
    %965 = vmatpush1.bf16.msra.mxu0 %v650
    %966 = vmatprep.subr.bf16.mxu0 %v655
    %967 = vmatpush1.bf16.msra.mxu0 %v654
    %968 = vmatprep.subr.bf16.mxu0 %v659
    %969 = vmatpush1.bf16.msra.mxu0 %v658
    %970 = vmatprep.subr.bf16.mxu0 %v663
    %971 = vmatpush1.bf16.msra.mxu0 %v662
    %972 = vmatprep.subr.bf16.mxu0 0
    %973 = vmatpush1.bf16.msra.mxu0 0
    %974 = vmatprep.subr.bf16.mxu0 0
    %975 = vmatpush1.bf16.msra.mxu0 0
    %976 = vmatprep.subr.bf16.mxu0 0
    %977 = vmatpush1.bf16.msra.mxu0 0
    %978 = vmatprep.subr.bf16.mxu0 0
    %979 = vmatpush1.bf16.msra.mxu0 0
    %980 = vmatprep.subr.bf16.mxu0 0
    %981 = vmatpush1.bf16.msra.mxu0 0
    %982 = vmatprep.subr.bf16.mxu0 0
    %983 = vmatpush1.bf16.msra.mxu0 0
    %984 = vmatprep.subr.bf16.mxu0 0
    %985 = vmatpush1.bf16.msra.mxu0 0
    %986 = vmatprep.subr.bf16.mxu0 0
    %987 = vmatpush1.bf16.msra.mxu0 0
    %988 = vmatprep.mubr.bf16.mxu0 0
    %989 = vmatmul.mubr.bf16.gmra.mrb[0].mxu0 %v955
    %v990 = vpop.f32.mrb[0].mxu0
    %v991 = vadd.f32 0.0, %v990
    %v992 = vpop.f32.mrb[0].mxu0
    %v993 = vadd.f32 0.0, %v992
    %v994 = vpop.f32.mrb[0].mxu0
    %v995 = vpop.f32.mrb[0].mxu0
    %996 = vdwg.mxu0
    %997 = vmatprep.subr.bf16.mxu0 %v637
    %998 = vmatpush1.bf16.msra.mxu0 %v636
    %999 = vmatprep.subr.bf16.mxu0 %v641
    %1000 = vmatpush1.bf16.msra.mxu0 %v640
    %1001 = vmatprep.subr.bf16.mxu0 %v645
    %1002 = vmatpush1.bf16.msra.mxu0 %v644
    %1003 = vmatprep.subr.bf16.mxu0 %v649
    %1004 = vmatpush1.bf16.msra.mxu0 %v648
    %1005 = vmatprep.subr.bf16.mxu0 %v653
    %1006 = vmatpush1.bf16.msra.mxu0 %v652
    %1007 = vmatprep.subr.bf16.mxu0 %v657
    %1008 = vmatpush1.bf16.msra.mxu0 %v656
    %1009 = vmatprep.subr.bf16.mxu0 %v661
    %1010 = vmatpush1.bf16.msra.mxu0 %v660
    %1011 = vmatprep.subr.bf16.mxu0 %v665
    %1012 = vmatpush1.bf16.msra.mxu0 %v664
    %1013 = vmatprep.subr.bf16.mxu0 0
    %1014 = vmatpush1.bf16.msra.mxu0 0
    %1015 = vmatprep.subr.bf16.mxu0 0
    %1016 = vmatpush1.bf16.msra.mxu0 0
    %1017 = vmatprep.subr.bf16.mxu0 0
    %1018 = vmatpush1.bf16.msra.mxu0 0
    %1019 = vmatprep.subr.bf16.mxu0 0
    %1020 = vmatpush1.bf16.msra.mxu0 0
    %1021 = vmatprep.subr.bf16.mxu0 0
    %1022 = vmatpush1.bf16.msra.mxu0 0
    %1023 = vmatprep.subr.bf16.mxu0 0
    %1024 = vmatpush1.bf16.msra.mxu0 0
    %1025 = vmatprep.subr.bf16.mxu0 0
    %1026 = vmatpush1.bf16.msra.mxu0 0
    %1027 = vmatprep.subr.bf16.mxu0 0
    %1028 = vmatpush1.bf16.msra.mxu0 0
    %1029 = vmatprep.mubr.bf16.mxu0 0
    %1030 = vmatmul.mubr.bf16.gmra.mrb[0].mxu0 %v955
    %v1031 = vpop.f32.mrb[0].mxu0
    %v1032 = vadd.f32 0.0, %v1031
    %v1033 = vpop.f32.mrb[0].mxu0
    %v1034 = vadd.f32 0.0, %v1033
    %v1035 = vpop.f32.mrb[0].mxu0
    %v1036 = vpop.f32.mrb[0].mxu0
    %1037 = vdwg.mxu0
    %v1038 = vadd.f32 %v951, %v991
    %v1039 = vadd.f32 %v952, %v993
    %v1040 = vadd.f32 %v953, %v1032
    %v1041 = vadd.f32 %v954, %v1034
    %v1042 = vxor.u32 %v1038, 2147483648
    %v1043 = vmul.f32 %v1042, 1.442695
    %v1044 = vpow.pop %v1043
    %v1045 = vadd.f32 %v1044, 1.0
    %v1046 = vrcp.pop %v1045
    %v1047 = vmul.f32 1.0, %v1046
    %v1048 = vxor.u32 %v1039, 2147483648
    %v1049 = vmul.f32 %v1048, 1.442695
    %v1050 = vpow.pop %v1049
    %v1051 = vadd.f32 %v1050, 1.0
    %v1052 = vrcp.pop %v1051
    %v1053 = vmul.f32 1.0, %v1052
    %v1054 = vtanh.pop %v1040
    %v1055 = vxor.u32 %v1041, 2147483648
    %v1056 = vmul.f32 %v1055, 1.442695
    %v1057 = vpow.pop %v1056
    %v1058 = vadd.f32 %v1057, 1.0
    %v1059 = vrcp.pop %v1058
    %v1060 = vmul.f32 1.0, %v1059
    %v1061 = vmul.f32 %v1053, %v945
    %v1062 = vmul.f32 %v1047, %v1054
    %v1063 = vadd.f32 %v1061, %v1062
    %v1064 = vtanh.pop %v1063
    %v1065 = vmul.f32 %v1060, %v1064
    %s1066 = sadd.s32 %s530, 2
    %v1067 = vstv %s1066
    %vm1068 = vcmp.lt.s32.totalorder %v1067, %v529
    %v1069 = vsel %vm1068, 1, 0
    %1070 = vset.pattern.permute.xlu0 0
    %1071 = vperm.xlu0 %1070, %v1069
    %v1072 = vpop.permute.xlu0 %1071
    %vm1073 = vcmp.eq.s32.totalorder %v1072, 1
    %v1074 = vsel %vm1073, %v1065, %v944
    %v1075 = vsel %vm1073, %v1063, %v945
    %v1076 = vsel %vm1073, %v1065, 0.0
    %v1077 = vpack.c.bf16 %v1076, %v1076
    %s1078 = scalar_lea.vmem [#allocation9], 8
    %1079 = vst [vmem:[%s1078] sm:$0xf] %v1077
    %s1080 = scalar_lea.vmem [#allocation2], 96
    %v1081 = vld [vmem:[%s1080] sm:$0xff]
    %v1082 = vld [vmem:[%s1080 + $0x8] sm:$0xff]
    %v1083 = vld [vmem:[%s1080 + $0x10] sm:$0xff]
    %v1084 = vld [vmem:[%s1080 + $0x18] sm:$0xff]
    %v1085 = vpack.c.bf16 %v1074, %v1074
    %1086 = vmatprep.subr.bf16.mxu0 %v635
    %1087 = vmatpush1.bf16.msra.mxu0 %v634
    %1088 = vmatprep.subr.bf16.mxu0 %v639
    %1089 = vmatpush1.bf16.msra.mxu0 %v638
    %1090 = vmatprep.subr.bf16.mxu0 %v643
    %1091 = vmatpush1.bf16.msra.mxu0 %v642
    %1092 = vmatprep.subr.bf16.mxu0 %v647
    %1093 = vmatpush1.bf16.msra.mxu0 %v646
    %1094 = vmatprep.subr.bf16.mxu0 %v651
    %1095 = vmatpush1.bf16.msra.mxu0 %v650
    %1096 = vmatprep.subr.bf16.mxu0 %v655
    %1097 = vmatpush1.bf16.msra.mxu0 %v654
    %1098 = vmatprep.subr.bf16.mxu0 %v659
    %1099 = vmatpush1.bf16.msra.mxu0 %v658
    %1100 = vmatprep.subr.bf16.mxu0 %v663
    %1101 = vmatpush1.bf16.msra.mxu0 %v662
    %1102 = vmatprep.subr.bf16.mxu0 0
    %1103 = vmatpush1.bf16.msra.mxu0 0
    %1104 = vmatprep.subr.bf16.mxu0 0
    %1105 = vmatpush1.bf16.msra.mxu0 0
    %1106 = vmatprep.subr.bf16.mxu0 0
    %1107 = vmatpush1.bf16.msra.mxu0 0
    %1108 = vmatprep.subr.bf16.mxu0 0
    %1109 = vmatpush1.bf16.msra.mxu0 0
    %1110 = vmatprep.subr.bf16.mxu0 0
    %1111 = vmatpush1.bf16.msra.mxu0 0
    %1112 = vmatprep.subr.bf16.mxu0 0
    %1113 = vmatpush1.bf16.msra.mxu0 0
    %1114 = vmatprep.subr.bf16.mxu0 0
    %1115 = vmatpush1.bf16.msra.mxu0 0
    %1116 = vmatprep.subr.bf16.mxu0 0
    %1117 = vmatpush1.bf16.msra.mxu0 0
    %1118 = vmatprep.mubr.bf16.mxu0 0
    %1119 = vmatmul.mubr.bf16.gmra.mrb[0].mxu0 %v1085
    %v1120 = vpop.f32.mrb[0].mxu0
    %v1121 = vadd.f32 0.0, %v1120
    %v1122 = vpop.f32.mrb[0].mxu0
    %v1123 = vadd.f32 0.0, %v1122
    %v1124 = vpop.f32.mrb[0].mxu0
    %v1125 = vpop.f32.mrb[0].mxu0
    %1126 = vdwg.mxu0
    %1127 = vmatprep.subr.bf16.mxu0 %v637
    %1128 = vmatpush1.bf16.msra.mxu0 %v636
    %1129 = vmatprep.subr.bf16.mxu0 %v641
    %1130 = vmatpush1.bf16.msra.mxu0 %v640
    %1131 = vmatprep.subr.bf16.mxu0 %v645
    %1132 = vmatpush1.bf16.msra.mxu0 %v644
    %1133 = vmatprep.subr.bf16.mxu0 %v649
    %1134 = vmatpush1.bf16.msra.mxu0 %v648
    %1135 = vmatprep.subr.bf16.mxu0 %v653
    %1136 = vmatpush1.bf16.msra.mxu0 %v652
    %1137 = vmatprep.subr.bf16.mxu0 %v657
    %1138 = vmatpush1.bf16.msra.mxu0 %v656
    %1139 = vmatprep.subr.bf16.mxu0 %v661
    %1140 = vmatpush1.bf16.msra.mxu0 %v660
    %1141 = vmatprep.subr.bf16.mxu0 %v665
    %1142 = vmatpush1.bf16.msra.mxu0 %v664
    %1143 = vmatprep.subr.bf16.mxu0 0
    %1144 = vmatpush1.bf16.msra.mxu0 0
    %1145 = vmatprep.subr.bf16.mxu0 0
    %1146 = vmatpush1.bf16.msra.mxu0 0
    %1147 = vmatprep.subr.bf16.mxu0 0
    %1148 = vmatpush1.bf16.msra.mxu0 0
    %1149 = vmatprep.subr.bf16.mxu0 0
    %1150 = vmatpush1.bf16.msra.mxu0 0
    %1151 = vmatprep.subr.bf16.mxu0 0
    %1152 = vmatpush1.bf16.msra.mxu0 0
    %1153 = vmatprep.subr.bf16.mxu0 0
    %1154 = vmatpush1.bf16.msra.mxu0 0
    %1155 = vmatprep.subr.bf16.mxu0 0
    %1156 = vmatpush1.bf16.msra.mxu0 0
    %1157 = vmatprep.subr.bf16.mxu0 0
    %1158 = vmatpush1.bf16.msra.mxu0 0
    %1159 = vmatprep.mubr.bf16.mxu0 0
    %1160 = vmatmul.mubr.bf16.gmra.mrb[0].mxu0 %v1085
    %v1161 = vpop.f32.mrb[0].mxu0
    %v1162 = vadd.f32 0.0, %v1161
    %v1163 = vpop.f32.mrb[0].mxu0
    %v1164 = vadd.f32 0.0, %v1163
    %v1165 = vpop.f32.mrb[0].mxu0
    %v1166 = vpop.f32.mrb[0].mxu0
    %1167 = vdwg.mxu0
    %v1168 = vadd.f32 %v1081, %v1121
    %v1169 = vadd.f32 %v1082, %v1123
    %v1170 = vadd.f32 %v1083, %v1162
    %v1171 = vadd.f32 %v1084, %v1164
    %v1172 = vxor.u32 %v1168, 2147483648
    %v1173 = vmul.f32 %v1172, 1.442695
    %v1174 = vpow.pop %v1173
    %v1175 = vadd.f32 %v1174, 1.0
    %v1176 = vrcp.pop %v1175
    %v1177 = vmul.f32 1.0, %v1176
    %v1178 = vxor.u32 %v1169, 2147483648
    %v1179 = vmul.f32 %v1178, 1.442695
    %v1180 = vpow.pop %v1179
    %v1181 = vadd.f32 %v1180, 1.0
    %v1182 = vrcp.pop %v1181
    %v1183 = vmul.f32 1.0, %v1182
    %v1184 = vtanh.pop %v1170
    %v1185 = vxor.u32 %v1171, 2147483648
    %v1186 = vmul.f32 %v1185, 1.442695
    %v1187 = vpow.pop %v1186
    %v1188 = vadd.f32 %v1187, 1.0
    %v1189 = vrcp.pop %v1188
    %v1190 = vmul.f32 1.0, %v1189
    %v1191 = vmul.f32 %v1183, %v1075
    %v1192 = vmul.f32 %v1177, %v1184
    %v1193 = vadd.f32 %v1191, %v1192
    %v1194 = vtanh.pop %v1193
    %v1195 = vmul.f32 %v1190, %v1194
    %s1196 = sadd.s32 %s530, 3
    %v1197 = vstv %s1196
    %vm1198 = vcmp.lt.s32.totalorder %v1197, %v529
    %v1199 = vsel %vm1198, 1, 0
    %1200 = vset.pattern.permute.xlu0 0
    %1201 = vperm.xlu0 %1200, %v1199
    %v1202 = vpop.permute.xlu0 %1201
    %vm1203 = vcmp.eq.s32.totalorder %v1202, 1
    %v1204 = vsel %vm1203, %v1195, %v1074
    %v1205 = vsel %vm1203, %v1193, %v1075
    %v1206 = vsel %vm1203, %v1195, 0.0
    %v1207 = vpack.c.bf16 %v1206, %v1206
    %s1208 = scalar_lea.vmem [#allocation9], 12
    %1209 = vst [vmem:[%s1208] sm:$0xf] %v1207
    %s1210 = scalar_lea.vmem [#allocation2], 128
    %v1211 = vld [vmem:[%s1210] sm:$0xff]
    %v1212 = vld [vmem:[%s1210 + $0x8] sm:$0xff]
    %v1213 = vld [vmem:[%s1210 + $0x10] sm:$0xff]
    %v1214 = vld [vmem:[%s1210 + $0x18] sm:$0xff]
    %v1215 = vpack.c.bf16 %v1204, %v1204
    %1216 = vmatprep.subr.bf16.mxu0 %v635
    %1217 = vmatpush1.bf16.msra.mxu0 %v634
    %1218 = vmatprep.subr.bf16.mxu0 %v639
    %1219 = vmatpush1.bf16.msra.mxu0 %v638
    %1220 = vmatprep.subr.bf16.mxu0 %v643
    %1221 = vmatpush1.bf16.msra.mxu0 %v642
    %1222 = vmatprep.subr.bf16.mxu0 %v647
    %1223 = vmatpush1.bf16.msra.mxu0 %v646
    %1224 = vmatprep.subr.bf16.mxu0 %v651
    %1225 = vmatpush1.bf16.msra.mxu0 %v650
    %1226 = vmatprep.subr.bf16.mxu0 %v655
    %1227 = vmatpush1.bf16.msra.mxu0 %v654
    %1228 = vmatprep.subr.bf16.mxu0 %v659
    %1229 = vmatpush1.bf16.msra.mxu0 %v658
    %1230 = vmatprep.subr.bf16.mxu0 %v663
    %1231 = vmatpush1.bf16.msra.mxu0 %v662
    %1232 = vmatprep.subr.bf16.mxu0 0
    %1233 = vmatpush1.bf16.msra.mxu0 0
    %1234 = vmatprep.subr.bf16.mxu0 0
    %1235 = vmatpush1.bf16.msra.mxu0 0
    %1236 = vmatprep.subr.bf16.mxu0 0
    %1237 = vmatpush1.bf16.msra.mxu0 0
    %1238 = vmatprep.subr.bf16.mxu0 0
    %1239 = vmatpush1.bf16.msra.mxu0 0
    %1240 = vmatprep.subr.bf16.mxu0 0
    %1241 = vmatpush1.bf16.msra.mxu0 0
    %1242 = vmatprep.subr.bf16.mxu0 0
    %1243 = vmatpush1.bf16.msra.mxu0 0
    %1244 = vmatprep.subr.bf16.mxu0 0
    %1245 = vmatpush1.bf16.msra.mxu0 0
    %1246 = vmatprep.subr.bf16.mxu0 0
    %1247 = vmatpush1.bf16.msra.mxu0 0
    %1248 = vmatprep.mubr.bf16.mxu0 0
    %1249 = vmatmul.mubr.bf16.gmra.mrb[0].mxu0 %v1215
    %v1250 = vpop.f32.mrb[0].mxu0
    %v1251 = vadd.f32 0.0, %v1250
    %v1252 = vpop.f32.mrb[0].mxu0
    %v1253 = vadd.f32 0.0, %v1252
    %v1254 = vpop.f32.mrb[0].mxu0
    %v1255 = vpop.f32.mrb[0].mxu0
    %1256 = vdwg.mxu0
    %1257 = vmatprep.subr.bf16.mxu0 %v637
    %1258 = vmatpush1.bf16.msra.mxu0 %v636
    %1259 = vmatprep.subr.bf16.mxu0 %v641
    %1260 = vmatpush1.bf16.msra.mxu0 %v640
    %1261 = vmatprep.subr.bf16.mxu0 %v645
    %1262 = vmatpush1.bf16.msra.mxu0 %v644
    %1263 = vmatprep.subr.bf16.mxu0 %v649
    %1264 = vmatpush1.bf16.msra.mxu0 %v648
    %1265 = vmatprep.subr.bf16.mxu0 %v653
    %1266 = vmatpush1.bf16.msra.mxu0 %v652
    %1267 = vmatprep.subr.bf16.mxu0 %v657
    %1268 = vmatpush1.bf16.msra.mxu0 %v656
    %1269 = vmatprep.subr.bf16.mxu0 %v661
    %1270 = vmatpush1.bf16.msra.mxu0 %v660
    %1271 = vmatprep.subr.bf16.mxu0 %v665
    %1272 = vmatpush1.bf16.msra.mxu0 %v664
    %1273 = vmatprep.subr.bf16.mxu0 0
    %1274 = vmatpush1.bf16.msra.mxu0 0
    %1275 = vmatprep.subr.bf16.mxu0 0
    %1276 = vmatpush1.bf16.msra.mxu0 0
    %1277 = vmatprep.subr.bf16.mxu0 0
    %1278 = vmatpush1.bf16.msra.mxu0 0
    %1279 = vmatprep.subr.bf16.mxu0 0
    %1280 = vmatpush1.bf16.msra.mxu0 0
    %1281 = vmatprep.subr.bf16.mxu0 0
    %1282 = vmatpush1.bf16.msra.mxu0 0
    %1283 = vmatprep.subr.bf16.mxu0 0
    %1284 = vmatpush1.bf16.msra.mxu0 0
    %1285 = vmatprep.subr.bf16.mxu0 0
    %1286 = vmatpush1.bf16.msra.mxu0 0
    %1287 = vmatprep.subr.bf16.mxu0 0
    %1288 = vmatpush1.bf16.msra.mxu0 0
    %1289 = vmatprep.mubr.bf16.mxu0 0
    %1290 = vmatmul.mubr.bf16.gmra.mrb[0].mxu0 %v1215
    %v1291 = vpop.f32.mrb[0].mxu0
    %v1292 = vadd.f32 0.0, %v1291
    %v1293 = vpop.f32.mrb[0].mxu0
    %v1294 = vadd.f32 0.0, %v1293
    %v1295 = vpop.f32.mrb[0].mxu0
    %v1296 = vpop.f32.mrb[0].mxu0
    %1297 = vdwg.mxu0
    %v1298 = vadd.f32 %v1211, %v1251
    %v1299 = vadd.f32 %v1212, %v1253
    %v1300 = vadd.f32 %v1213, %v1292
    %v1301 = vadd.f32 %v1214, %v1294
    %v1302 = vxor.u32 %v1298, 2147483648
    %v1303 = vmul.f32 %v1302, 1.442695
    %v1304 = vpow.pop %v1303
    %v1305 = vadd.f32 %v1304, 1.0
    %v1306 = vrcp.pop %v1305
    %v1307 = vmul.f32 1.0, %v1306
    %v1308 = vxor.u32 %v1299, 2147483648
    %v1309 = vmul.f32 %v1308, 1.442695
    %v1310 = vpow.pop %v1309
    %v1311 = vadd.f32 %v1310, 1.0
    %v1312 = vrcp.pop %v1311
    %v1313 = vmul.f32 1.0, %v1312
    %v1314 = vtanh.pop %v1300
    %v1315 = vxor.u32 %v1301, 2147483648
    %v1316 = vmul.f32 %v1315, 1.442695
    %v1317 = vpow.pop %v1316
    %v1318 = vadd.f32 %v1317, 1.0
    %v1319 = vrcp.pop %v1318
    %v1320 = vmul.f32 1.0, %v1319
    %v1321 = vmul.f32 %v1313, %v1205
    %v1322 = vmul.f32 %v1307, %v1314
    %v1323 = vadd.f32 %v1321, %v1322
    %v1324 = vtanh.pop %v1323
    %v1325 = vmul.f32 %v1320, %v1324
    %s1326 = sadd.s32 %s530, 4
    %v1327 = vstv %s1326
    %vm1328 = vcmp.lt.s32.totalorder %v1327, %v529
    %v1329 = vsel %vm1328, 1, 0
    %1330 = vset.pattern.permute.xlu0 0
    %1331 = vperm.xlu0 %1330, %v1329
    %v1332 = vpop.permute.xlu0 %1331
    %vm1333 = vcmp.eq.s32.totalorder %v1332, 1
    %v1334 = vsel %vm1333, %v1325, %v1204
    %v1335 = vsel %vm1333, %v1323, %v1205
    %v1336 = vsel %vm1333, %v1325, 0.0
    %v1337 = vpack.c.bf16 %v1336, %v1336
    %s1338 = scalar_lea.vmem [#allocation9], 16
    %1339 = vst [vmem:[%s1338] sm:$0xf] %v1337
    %s1340 = scalar_lea.vmem [#allocation2], 160
    %v1341 = vld [vmem:[%s1340] sm:$0xff]
    %v1342 = vld [vmem:[%s1340 + $0x8] sm:$0xff]
    %v1343 = vld [vmem:[%s1340 + $0x10] sm:$0xff]
    %v1344 = vld [vmem:[%s1340 + $0x18] sm:$0xff]
    %v1345 = vpack.c.bf16 %v1334, %v1334
    %1346 = vmatprep.subr.bf16.mxu0 %v635
    %1347 = vmatpush1.bf16.msra.mxu0 %v634
    %1348 = vmatprep.subr.bf16.mxu0 %v639
    %1349 = vmatpush1.bf16.msra.mxu0 %v638
    %1350 = vmatprep.subr.bf16.mxu0 %v643
    %1351 = vmatpush1.bf16.msra.mxu0 %v642
    %1352 = vmatprep.subr.bf16.mxu0 %v647
    %1353 = vmatpush1.bf16.msra.mxu0 %v646
    %1354 = vmatprep.subr.bf16.mxu0 %v651
    %1355 = vmatpush1.bf16.msra.mxu0 %v650
    %1356 = vmatprep.subr.bf16.mxu0 %v655
    %1357 = vmatpush1.bf16.msra.mxu0 %v654
    %1358 = vmatprep.subr.bf16.mxu0 %v659
    %1359 = vmatpush1.bf16.msra.mxu0 %v658
    %1360 = vmatprep.subr.bf16.mxu0 %v663
    %1361 = vmatpush1.bf16.msra.mxu0 %v662
    %1362 = vmatprep.subr.bf16.mxu0 0
    %1363 = vmatpush1.bf16.msra.mxu0 0
    %1364 = vmatprep.subr.bf16.mxu0 0
    %1365 = vmatpush1.bf16.msra.mxu0 0
    %1366 = vmatprep.subr.bf16.mxu0 0
    %1367 = vmatpush1.bf16.msra.mxu0 0
    %1368 = vmatprep.subr.bf16.mxu0 0
    %1369 = vmatpush1.bf16.msra.mxu0 0
    %1370 = vmatprep.subr.bf16.mxu0 0
    %1371 = vmatpush1.bf16.msra.mxu0 0
    %1372 = vmatprep.subr.bf16.mxu0 0
    %1373 = vmatpush1.bf16.msra.mxu0 0
    %1374 = vmatprep.subr.bf16.mxu0 0
    %1375 = vmatpush1.bf16.msra.mxu0 0
    %1376 = vmatprep.subr.bf16.mxu0 0
    %1377 = vmatpush1.bf16.msra.mxu0 0
    %1378 = vmatprep.mubr.bf16.mxu0 0
    %1379 = vmatmul.mubr.bf16.gmra.mrb[0].mxu0 %v1345
    %v1380 = vpop.f32.mrb[0].mxu0
    %v1381 = vadd.f32 0.0, %v1380
    %v1382 = vpop.f32.mrb[0].mxu0
    %v1383 = vadd.f32 0.0, %v1382
    %v1384 = vpop.f32.mrb[0].mxu0
    %v1385 = vpop.f32.mrb[0].mxu0
    %1386 = vdwg.mxu0
    %1387 = vmatprep.subr.bf16.mxu0 %v637
    %1388 = vmatpush1.bf16.msra.mxu0 %v636
    %1389 = vmatprep.subr.bf16.mxu0 %v641
    %1390 = vmatpush1.bf16.msra.mxu0 %v640
    %1391 = vmatprep.subr.bf16.mxu0 %v645
    %1392 = vmatpush1.bf16.msra.mxu0 %v644
    %1393 = vmatprep.subr.bf16.mxu0 %v649
    %1394 = vmatpush1.bf16.msra.mxu0 %v648
    %1395 = vmatprep.subr.bf16.mxu0 %v653
    %1396 = vmatpush1.bf16.msra.mxu0 %v652
    %1397 = vmatprep.subr.bf16.mxu0 %v657
    %1398 = vmatpush1.bf16.msra.mxu0 %v656
    %1399 = vmatprep.subr.bf16.mxu0 %v661
    %1400 = vmatpush1.bf16.msra.mxu0 %v660
    %1401 = vmatprep.subr.bf16.mxu0 %v665
    %1402 = vmatpush1.bf16.msra.mxu0 %v664
    %1403 = vmatprep.subr.bf16.mxu0 0
    %1404 = vmatpush1.bf16.msra.mxu0 0
    %1405 = vmatprep.subr.bf16.mxu0 0
    %1406 = vmatpush1.bf16.msra.mxu0 0
    %1407 = vmatprep.subr.bf16.mxu0 0
    %1408 = vmatpush1.bf16.msra.mxu0 0
    %1409 = vmatprep.subr.bf16.mxu0 0
    %1410 = vmatpush1.bf16.msra.mxu0 0
    %1411 = vmatprep.subr.bf16.mxu0 0
    %1412 = vmatpush1.bf16.msra.mxu0 0
    %1413 = vmatprep.subr.bf16.mxu0 0
    %1414 = vmatpush1.bf16.msra.mxu0 0
    %1415 = vmatprep.subr.bf16.mxu0 0
    %1416 = vmatpush1.bf16.msra.mxu0 0
    %1417 = vmatprep.subr.bf16.mxu0 0
    %1418 = vmatpush1.bf16.msra.mxu0 0
    %1419 = vmatprep.mubr.bf16.mxu0 0
    %1420 = vmatmul.mubr.bf16.gmra.mrb[0].mxu0 %v1345
    %v1421 = vpop.f32.mrb[0].mxu0
    %v1422 = vadd.f32 0.0, %v1421
    %v1423 = vpop.f32.mrb[0].mxu0
    %v1424 = vadd.f32 0.0, %v1423
    %v1425 = vpop.f32.mrb[0].mxu0
    %v1426 = vpop.f32.mrb[0].mxu0
    %1427 = vdwg.mxu0
    %v1428 = vadd.f32 %v1341, %v1381
    %v1429 = vadd.f32 %v1342, %v1383
    %v1430 = vadd.f32 %v1343, %v1422
    %v1431 = vadd.f32 %v1344, %v1424
    %v1432 = vxor.u32 %v1428, 2147483648
    %v1433 = vmul.f32 %v1432, 1.442695
    %v1434 = vpow.pop %v1433
    %v1435 = vadd.f32 %v1434, 1.0
    %v1436 = vrcp.pop %v1435
    %v1437 = vmul.f32 1.0, %v1436
    %v1438 = vxor.u32 %v1429, 2147483648
    %v1439 = vmul.f32 %v1438, 1.442695
    %v1440 = vpow.pop %v1439
    %v1441 = vadd.f32 %v1440, 1.0
    %v1442 = vrcp.pop %v1441
    %v1443 = vmul.f32 1.0, %v1442
    %v1444 = vtanh.pop %v1430
    %v1445 = vxor.u32 %v1431, 2147483648
    %v1446 = vmul.f32 %v1445, 1.442695
    %v1447 = vpow.pop %v1446
    %v1448 = vadd.f32 %v1447, 1.0
    %v1449 = vrcp.pop %v1448
    %v1450 = vmul.f32 1.0, %v1449
    %v1451 = vmul.f32 %v1443, %v1335
    %v1452 = vmul.f32 %v1437, %v1444
    %v1453 = vadd.f32 %v1451, %v1452
    %v1454 = vtanh.pop %v1453
    %v1455 = vmul.f32 %v1450, %v1454
    %s1456 = sadd.s32 %s530, 5
    %v1457 = vstv %s1456
    %vm1458 = vcmp.lt.s32.totalorder %v1457, %v529
    %v1459 = vsel %vm1458, 1, 0
    %1460 = vset.pattern.permute.xlu0 0
    %1461 = vperm.xlu0 %1460, %v1459
    %v1462 = vpop.permute.xlu0 %1461
    %vm1463 = vcmp.eq.s32.totalorder %v1462, 1
    %v1464 = vsel %vm1463, %v1455, %v1334
    %v1465 = vsel %vm1463, %v1453, %v1335
    %v1466 = vsel %vm1463, %v1455, 0.0
    %v1467 = vpack.c.bf16 %v1466, %v1466
    %s1468 = scalar_lea.vmem [#allocation9], 20
    %1469 = vst [vmem:[%s1468] sm:$0xf] %v1467
    %s1470 = scalar_lea.vmem [#allocation2], 192
    %v1471 = vld [vmem:[%s1470] sm:$0xff]
    %v1472 = vld [vmem:[%s1470 + $0x8] sm:$0xff]
    %v1473 = vld [vmem:[%s1470 + $0x10] sm:$0xff]
    %v1474 = vld [vmem:[%s1470 + $0x18] sm:$0xff]
    %v1475 = vpack.c.bf16 %v1464, %v1464
    %1476 = vmatprep.subr.bf16.mxu0 %v635
    %1477 = vmatpush1.bf16.msra.mxu0 %v634
    %1478 = vmatprep.subr.bf16.mxu0 %v639
    %1479 = vmatpush1.bf16.msra.mxu0 %v638
    %1480 = vmatprep.subr.bf16.mxu0 %v643
    %1481 = vmatpush1.bf16.msra.mxu0 %v642
    %1482 = vmatprep.subr.bf16.mxu0 %v647
    %1483 = vmatpush1.bf16.msra.mxu0 %v646
    %1484 = vmatprep.subr.bf16.mxu0 %v651
    %1485 = vmatpush1.bf16.msra.mxu0 %v650
    %1486 = vmatprep.subr.bf16.mxu0 %v655
    %1487 = vmatpush1.bf16.msra.mxu0 %v654
    %1488 = vmatprep.subr.bf16.mxu0 %v659
    %1489 = vmatpush1.bf16.msra.mxu0 %v658
    %1490 = vmatprep.subr.bf16.mxu0 %v663
    %1491 = vmatpush1.bf16.msra.mxu0 %v662
    %1492 = vmatprep.subr.bf16.mxu0 0
    %1493 = vmatpush1.bf16.msra.mxu0 0
    %1494 = vmatprep.subr.bf16.mxu0 0
    %1495 = vmatpush1.bf16.msra.mxu0 0
    %1496 = vmatprep.subr.bf16.mxu0 0
    %1497 = vmatpush1.bf16.msra.mxu0 0
    %1498 = vmatprep.subr.bf16.mxu0 0
    %1499 = vmatpush1.bf16.msra.mxu0 0
    %1500 = vmatprep.subr.bf16.mxu0 0
    %1501 = vmatpush1.bf16.msra.mxu0 0
    %1502 = vmatprep.subr.bf16.mxu0 0
    %1503 = vmatpush1.bf16.msra.mxu0 0
    %1504 = vmatprep.subr.bf16.mxu0 0
    %1505 = vmatpush1.bf16.msra.mxu0 0
    %1506 = vmatprep.subr.bf16.mxu0 0
    %1507 = vmatpush1.bf16.msra.mxu0 0
    %1508 = vmatprep.mubr.bf16.mxu0 0
    %1509 = vmatmul.mubr.bf16.gmra.mrb[0].mxu0 %v1475
    %v1510 = vpop.f32.mrb[0].mxu0
    %v1511 = vadd.f32 0.0, %v1510
    %v1512 = vpop.f32.mrb[0].mxu0
    %v1513 = vadd.f32 0.0, %v1512
    %v1514 = vpop.f32.mrb[0].mxu0
    %v1515 = vpop.f32.mrb[0].mxu0
    %1516 = vdwg.mxu0
    %1517 = vmatprep.subr.bf16.mxu0 %v637
    %1518 = vmatpush1.bf16.msra.mxu0 %v636
    %1519 = vmatprep.subr.bf16.mxu0 %v641
    %1520 = vmatpush1.bf16.msra.mxu0 %v640
    %1521 = vmatprep.subr.bf16.mxu0 %v645
    %1522 = vmatpush1.bf16.msra.mxu0 %v644
    %1523 = vmatprep.subr.bf16.mxu0 %v649
    %1524 = vmatpush1.bf16.msra.mxu0 %v648
    %1525 = vmatprep.subr.bf16.mxu0 %v653
    %1526 = vmatpush1.bf16.msra.mxu0 %v652
    %1527 = vmatprep.subr.bf16.mxu0 %v657
    %1528 = vmatpush1.bf16.msra.mxu0 %v656
    %1529 = vmatprep.subr.bf16.mxu0 %v661
    %1530 = vmatpush1.bf16.msra.mxu0 %v660
    %1531 = vmatprep.subr.bf16.mxu0 %v665
    %1532 = vmatpush1.bf16.msra.mxu0 %v664
    %1533 = vmatprep.subr.bf16.mxu0 0
    %1534 = vmatpush1.bf16.msra.mxu0 0
    %1535 = vmatprep.subr.bf16.mxu0 0
    %1536 = vmatpush1.bf16.msra.mxu0 0
    %1537 = vmatprep.subr.bf16.mxu0 0
    %1538 = vmatpush1.bf16.msra.mxu0 0
    %1539 = vmatprep.subr.bf16.mxu0 0
    %1540 = vmatpush1.bf16.msra.mxu0 0
    %1541 = vmatprep.subr.bf16.mxu0 0
    %1542 = vmatpush1.bf16.msra.mxu0 0
    %1543 = vmatprep.subr.bf16.mxu0 0
    %1544 = vmatpush1.bf16.msra.mxu0 0
    %1545 = vmatprep.subr.bf16.mxu0 0
    %1546 = vmatpush1.bf16.msra.mxu0 0
    %1547 = vmatprep.subr.bf16.mxu0 0
    %1548 = vmatpush1.bf16.msra.mxu0 0
    %1549 = vmatprep.mubr.bf16.mxu0 0
    %1550 = vmatmul.mubr.bf16.gmra.mrb[0].mxu0 %v1475
    %v1551 = vpop.f32.mrb[0].mxu0
    %v1552 = vadd.f32 0.0, %v1551
    %v1553 = vpop.f32.mrb[0].mxu0
    %v1554 = vadd.f32 0.0, %v1553
    %v1555 = vpop.f32.mrb[0].mxu0
    %v1556 = vpop.f32.mrb[0].mxu0
    %1557 = vdwg.mxu0
    %v1558 = vadd.f32 %v1471, %v1511
    %v1559 = vadd.f32 %v1472, %v1513
    %v1560 = vadd.f32 %v1473, %v1552
    %v1561 = vadd.f32 %v1474, %v1554
    %v1562 = vxor.u32 %v1558, 2147483648
    %v1563 = vmul.f32 %v1562, 1.442695
    %v1564 = vpow.pop %v1563
    %v1565 = vadd.f32 %v1564, 1.0
    %v1566 = vrcp.pop %v1565
    %v1567 = vmul.f32 1.0, %v1566
    %v1568 = vxor.u32 %v1559, 2147483648
    %v1569 = vmul.f32 %v1568, 1.442695
    %v1570 = vpow.pop %v1569
    %v1571 = vadd.f32 %v1570, 1.0
    %v1572 = vrcp.pop %v1571
    %v1573 = vmul.f32 1.0, %v1572
    %v1574 = vtanh.pop %v1560
    %v1575 = vxor.u32 %v1561, 2147483648
    %v1576 = vmul.f32 %v1575, 1.442695
    %v1577 = vpow.pop %v1576
    %v1578 = vadd.f32 %v1577, 1.0
    %v1579 = vrcp.pop %v1578
    %v1580 = vmul.f32 1.0, %v1579
    %v1581 = vmul.f32 %v1573, %v1465
    %v1582 = vmul.f32 %v1567, %v1574
    %v1583 = vadd.f32 %v1581, %v1582
    %v1584 = vtanh.pop %v1583
    %v1585 = vmul.f32 %v1580, %v1584
    %s1586 = sadd.s32 %s530, 6
    %v1587 = vstv %s1586
    %vm1588 = vcmp.lt.s32.totalorder %v1587, %v529
    %v1589 = vsel %vm1588, 1, 0
    %1590 = vset.pattern.permute.xlu0 0
    %1591 = vperm.xlu0 %1590, %v1589
    %v1592 = vpop.permute.xlu0 %1591
    %vm1593 = vcmp.eq.s32.totalorder %v1592, 1
    %v1594 = vsel %vm1593, %v1585, %v1464
    %v1595 = vsel %vm1593, %v1583, %v1465
    %v1596 = vsel %vm1593, %v1585, 0.0
    %v1597 = vpack.c.bf16 %v1596, %v1596
    %s1598 = scalar_lea.vmem [#allocation9], 24
    %1599 = vst [vmem:[%s1598] sm:$0xf] %v1597
    %s1600 = scalar_lea.vmem [#allocation2], 224
    %v1601 = vld [vmem:[%s1600] sm:$0xff]
    %v1602 = vld [vmem:[%s1600 + $0x8] sm:$0xff]
    %v1603 = vld [vmem:[%s1600 + $0x10] sm:$0xff]
    %v1604 = vld [vmem:[%s1600 + $0x18] sm:$0xff]
    %v1605 = vpack.c.bf16 %v1594, %v1594
    %1606 = vmatprep.subr.bf16.mxu0 %v635
    %1607 = vmatpush1.bf16.msra.mxu0 %v634
    %1608 = vmatprep.subr.bf16.mxu0 %v639
    %1609 = vmatpush1.bf16.msra.mxu0 %v638
    %1610 = vmatprep.subr.bf16.mxu0 %v643
    %1611 = vmatpush1.bf16.msra.mxu0 %v642
    %1612 = vmatprep.subr.bf16.mxu0 %v647
    %1613 = vmatpush1.bf16.msra.mxu0 %v646
    %1614 = vmatprep.subr.bf16.mxu0 %v651
    %1615 = vmatpush1.bf16.msra.mxu0 %v650
    %1616 = vmatprep.subr.bf16.mxu0 %v655
    %1617 = vmatpush1.bf16.msra.mxu0 %v654
    %1618 = vmatprep.subr.bf16.mxu0 %v659
    %1619 = vmatpush1.bf16.msra.mxu0 %v658
    %1620 = vmatprep.subr.bf16.mxu0 %v663
    %1621 = vmatpush1.bf16.msra.mxu0 %v662
    %1622 = vmatprep.subr.bf16.mxu0 0
    %1623 = vmatpush1.bf16.msra.mxu0 0
    %1624 = vmatprep.subr.bf16.mxu0 0
    %1625 = vmatpush1.bf16.msra.mxu0 0
    %1626 = vmatprep.subr.bf16.mxu0 0
    %1627 = vmatpush1.bf16.msra.mxu0 0
    %1628 = vmatprep.subr.bf16.mxu0 0
    %1629 = vmatpush1.bf16.msra.mxu0 0
    %1630 = vmatprep.subr.bf16.mxu0 0
    %1631 = vmatpush1.bf16.msra.mxu0 0
    %1632 = vmatprep.subr.bf16.mxu0 0
    %1633 = vmatpush1.bf16.msra.mxu0 0
    %1634 = vmatprep.subr.bf16.mxu0 0
    %1635 = vmatpush1.bf16.msra.mxu0 0
    %1636 = vmatprep.subr.bf16.mxu0 0
    %1637 = vmatpush1.bf16.msra.mxu0 0
    %1638 = vmatprep.mubr.bf16.mxu0 0
    %1639 = vmatmul.mubr.bf16.gmra.mrb[0].mxu0 %v1605
    %v1640 = vpop.f32.mrb[0].mxu0
    %v1641 = vadd.f32 0.0, %v1640
    %v1642 = vpop.f32.mrb[0].mxu0
    %v1643 = vadd.f32 0.0, %v1642
    %v1644 = vpop.f32.mrb[0].mxu0
    %v1645 = vpop.f32.mrb[0].mxu0
    %1646 = vdwg.mxu0
    %1647 = vmatprep.subr.bf16.mxu0 %v637
    %1648 = vmatpush1.bf16.msra.mxu0 %v636
    %1649 = vmatprep.subr.bf16.mxu0 %v641
    %1650 = vmatpush1.bf16.msra.mxu0 %v640
    %1651 = vmatprep.subr.bf16.mxu0 %v645
    %1652 = vmatpush1.bf16.msra.mxu0 %v644
    %1653 = vmatprep.subr.bf16.mxu0 %v649
    %1654 = vmatpush1.bf16.msra.mxu0 %v648
    %1655 = vmatprep.subr.bf16.mxu0 %v653
    %1656 = vmatpush1.bf16.msra.mxu0 %v652
    %1657 = vmatprep.subr.bf16.mxu0 %v657
    %1658 = vmatpush1.bf16.msra.mxu0 %v656
    %1659 = vmatprep.subr.bf16.mxu0 %v661
    %1660 = vmatpush1.bf16.msra.mxu0 %v660
    %1661 = vmatprep.subr.bf16.mxu0 %v665
    %1662 = vmatpush1.bf16.msra.mxu0 %v664
    %1663 = vmatprep.subr.bf16.mxu0 0
    %1664 = vmatpush1.bf16.msra.mxu0 0
    %1665 = vmatprep.subr.bf16.mxu0 0
    %1666 = vmatpush1.bf16.msra.mxu0 0
    %1667 = vmatprep.subr.bf16.mxu0 0
    %1668 = vmatpush1.bf16.msra.mxu0 0
    %1669 = vmatprep.subr.bf16.mxu0 0
    %1670 = vmatpush1.bf16.msra.mxu0 0
    %1671 = vmatprep.subr.bf16.mxu0 0
    %1672 = vmatpush1.bf16.msra.mxu0 0
    %1673 = vmatprep.subr.bf16.mxu0 0
    %1674 = vmatpush1.bf16.msra.mxu0 0
    %1675 = vmatprep.subr.bf16.mxu0 0
    %1676 = vmatpush1.bf16.msra.mxu0 0
    %1677 = vmatprep.subr.bf16.mxu0 0
    %1678 = vmatpush1.bf16.msra.mxu0 0
    %1679 = vmatprep.mubr.bf16.mxu0 0
    %1680 = vmatmul.mubr.bf16.gmra.mrb[0].mxu0 %v1605
    %v1681 = vpop.f32.mrb[0].mxu0
    %v1682 = vadd.f32 0.0, %v1681
    %v1683 = vpop.f32.mrb[0].mxu0
    %v1684 = vadd.f32 0.0, %v1683
    %v1685 = vpop.f32.mrb[0].mxu0
    %v1686 = vpop.f32.mrb[0].mxu0
    %1687 = vdwg.mxu0
    %v1688 = vadd.f32 %v1601, %v1641
    %v1689 = vadd.f32 %v1602, %v1643
    %v1690 = vadd.f32 %v1603, %v1682
    %v1691 = vadd.f32 %v1604, %v1684
    %v1692 = vxor.u32 %v1688, 2147483648
    %v1693 = vmul.f32 %v1692, 1.442695
    %v1694 = vpow.pop %v1693
    %v1695 = vadd.f32 %v1694, 1.0
    %v1696 = vrcp.pop %v1695
    %v1697 = vmul.f32 1.0, %v1696
    %v1698 = vxor.u32 %v1689, 2147483648
    %v1699 = vmul.f32 %v1698, 1.442695
    %v1700 = vpow.pop %v1699
    %v1701 = vadd.f32 %v1700, 1.0
    %v1702 = vrcp.pop %v1701
    %v1703 = vmul.f32 1.0, %v1702
    %v1704 = vtanh.pop %v1690
    %v1705 = vxor.u32 %v1691, 2147483648
    %v1706 = vmul.f32 %v1705, 1.442695
    %v1707 = vpow.pop %v1706
    %v1708 = vadd.f32 %v1707, 1.0
    %v1709 = vrcp.pop %v1708
    %v1710 = vmul.f32 1.0, %v1709
    %v1711 = vmul.f32 %v1703, %v1595
    %v1712 = vmul.f32 %v1697, %v1704
    %v1713 = vadd.f32 %v1711, %v1712
    %v1714 = vtanh.pop %v1713
    %v1715 = vmul.f32 %v1710, %v1714
    %s1716 = sadd.s32 %s530, 7
    %v1717 = vstv %s1716
    %vm1718 = vcmp.lt.s32.totalorder %v1717, %v529
    %v1719 = vsel %vm1718, 1, 0
    %1720 = vset.pattern.permute.xlu0 0
    %1721 = vperm.xlu0 %1720, %v1719
    %v1722 = vpop.permute.xlu0 %1721
    %vm1723 = vcmp.eq.s32.totalorder %v1722, 1
    %v1724 = vsel %vm1723, %v1715, %v1594
    %v1725 = vsel %vm1723, %v1713, %v1595
    %v1726 = vsel %vm1723, %v1715, 0.0
    %v1727 = vpack.c.bf16 %v1726, %v1726
    %s1728 = scalar_lea.vmem [#allocation9], 28
    %1729 = vst [vmem:[%s1728] sm:$0xf] %v1727
    %1730 = vst [vmem:[#allocation10] sm:$0xff] %v1724
    %1731 = vst [vmem:[#allocation12] sm:$0xff] %v1725
    // Predicated region
    $region38: #{tpu_custom_call.1} parent=1 // pred_check
      _
    $region39: #{tpu_custom_call.1} parent=1 // pred_check_branch
      %1733 = sbr.rel (0) target = $region41
    $region40: #{tpu_custom_call.1} parent=1 // pred_region
      %s1735 = ssub.s32 512, 512
      %1736 = vsyncadd [#allocation5], %s1735
      %s1737 = sshll.u32 [#allocation9], 4
      %s1738 = int_to_ptr.vmem [resolvable:$true] %s1737
      %1743 = dma.vmem_to_hbm [thread:$0]  %s1738, 512, %s5, [#allocation5], 64, 64, 4
    $region41: #{tpu_custom_call.1} parent=1 // pred_fallthru
      _
    // Predicated region
    $region42: #{tpu_custom_call.1} parent=1 // pred_check
      _
    $region43: #{tpu_custom_call.1} parent=1 // pred_check_branch
      %1745 = sbr.rel (0) target = $region45
    $region44: #{tpu_custom_call.1} parent=1 // pred_region
      %s1747 = ssub.s32 128, 128
      %1748 = vsyncadd [#allocation11], %s1747
      %s1750 = sshll.u32 [#allocation10], 4
      %s1751 = int_to_ptr.vmem [resolvable:$true] %s1750
      %1753 = dma.vmem_to_hbm [thread:$0]  %s1751, 128, %s6, [#allocation11]
    $region45: #{tpu_custom_call.1} parent=1 // pred_fallthru
      _
    // Predicated region
    $region46: #{tpu_custom_call.1} parent=1 // pred_check
      _
    $region47: #{tpu_custom_call.1} parent=1 // pred_check_branch
      %1755 = sbr.rel (0) target = $region49
    $region48: #{tpu_custom_call.1} parent=1 // pred_region
      %s1757 = ssub.s32 128, 128
      %1758 = vsyncadd [#allocation11], %s1757
      %s1760 = sshll.u32 [#allocation12], 4
      %s1761 = int_to_ptr.vmem [resolvable:$true] %s1760
      %1763 = dma.vmem_to_hbm [thread:$0]  %s1761, 128, %s7, [#allocation11]
    $region49: #{tpu_custom_call.1} parent=1 // pred_fallthru
      _
    // Predicated region
    $region50: #{tpu_custom_call.1} parent=1 // pred_check
      _
    $region51: #{tpu_custom_call.1} parent=1 // pred_check_branch
      %1765 = sbr.rel (0) target = $region53
    $region52: #{tpu_custom_call.1} parent=1 // pred_region
      %1766 = dma.done [#allocation5], 512
    $region53: #{tpu_custom_call.1} parent=1 // pred_fallthru
      _
    // Predicated region
    $region54: #{tpu_custom_call.1} parent=1 // pred_check
      _
    $region55: #{tpu_custom_call.1} parent=1 // pred_check_branch
      %1768 = sbr.rel (0) target = $region57
    $region56: #{tpu_custom_call.1} parent=1 // pred_region
      %1769 = dma.done [#allocation11], 128
    $region57: #{tpu_custom_call.1} parent=1 // pred_fallthru
      _
    // Predicated region
    $region58: #{tpu_custom_call.1} parent=1 // pred_check
      _
    $region59: #{tpu_custom_call.1} parent=1 // pred_check_branch
      %1771 = sbr.rel (0) target = $region61
    $region60: #{tpu_custom_call.1} parent=1 // pred_region
      %1772 = dma.done [#allocation11], 128
    $region61: #{tpu_custom_call.1} parent=1 // pred_fallthru
      _
    %1773 = vsyncpa [#allocation4], 1
    %1774 = vsyncpa [#allocation7], 1
    %1775 = vsyncpa [#allocation5], 1
    %1776 = vsyncpa [#allocation11], 1

</llo_original>
